<compile_context>
chip_gen: v7x
topology: tpu7x:2x2x1
jax: 0.10.0
libtpu: 0.0.40
codegen_flags: <defaults>
</compile_context>

<pallas_src>
import functools

import jax
import jax.numpy as jnp
from jax.experimental import pallas as pl
from jax.experimental.pallas import tpu as pltpu


# MXU operand dtype (f32 accumulation everywhere).
MXU_DTYPE = jnp.bfloat16
LANE = 128


def _round_up(x, m):
    return (x + m - 1) // m * m


def _vmem_limit_bytes():
    # Device-aware scoped-VMEM budget (v5e/v6e: 128 MiB physical, v7x: 64 MiB).
    try:
        cap = pltpu.get_tpu_info().vmem_capacity_bytes
        return int(min(cap * 3 // 4, 64 * 1024 * 1024))
    except Exception:
        return 32 * 1024 * 1024


# ----------------------------------------------------------------------------
# In-kernel helpers (f32 elementwise path)
# ----------------------------------------------------------------------------

def _layer_norm(x, g, b, dim_true, eps=1e-5):
    """LayerNorm over a zero-padded last axis using the TRUE feature count.

    Padded lanes of `x` are exactly zero by construction, so plain lane sums give
    the true-dim statistics without any masking (var = E[x^2] - mu^2 form).
    """
    inv = 1.0 / dim_true
    mu = jnp.sum(x, axis=-1, keepdims=True) * inv
    var = jnp.sum(x * x, axis=-1, keepdims=True) * inv - mu * mu
    return (x - mu) * jax.lax.rsqrt(var + eps) * g + b


def _softmax_lastdim(s):
    s = s - jnp.max(s, axis=-1, keepdims=True)
    e = jnp.exp(s)
    return e * pl.reciprocal(jnp.sum(e, axis=-1, keepdims=True), approx=True)


# ----------------------------------------------------------------------------
# HRNet-stem conv kernel: 3x3 / stride-2 / pad-1 + folded BN + ReLU (NHWC)
# ----------------------------------------------------------------------------

def _conv3x3_s2_bn_relu_kernel(p00_ref, p01_ref, p10_ref, p11_ref,
                               w_ref, scale_ref, bias_ref, o_ref, *, Ho, Wo):
    """One batch image per grid step.

    The 9 taps are fused along the contraction axis: the 9 shifted windows of the
    4 stride-2 phase planes are concatenated on K inside VMEM and contracted against
    the (9*Cin, Cout) tap-major weight in a SINGLE MXU matmul.
    """
    Cin = p00_ref.shape[-1]
    Cout = w_ref.shape[-1]
    phases = (p00_ref[...], p01_ref[...], p10_ref[...], p11_ref[...])

    taps = []
    for kh in range(3):
        for kw in range(3):
            ph = phases[(kh % 2) * 2 + (kw % 2)]
            oi, oj = kh // 2, kw // 2
            taps.append(ph[:, oi:oi + Ho, oj:oj + Wo, :])          # (1, Ho, Wo, Cin)
    im2col = jnp.concatenate(taps, axis=-1).reshape(Ho * Wo, 9 * Cin)

    acc = jnp.dot(im2col.astype(MXU_DTYPE), w_ref[...],
                  preferred_element_type=jnp.float32)              # (Ho*Wo, Cout)
    y = jnp.maximum(acc * scale_ref[...] + bias_ref[...], 0.0)
    # TODO(synk): a lane-dense (Ho, Wo*Cout) store would avoid masked vst on the
    # Cout<128 lane axis; kept at the natural layout (leading-dim-only reshape).
    o_ref[...] = y.reshape(1, Ho, Wo, Cout)


def _stride2_phase_planes(x_nhwc):
    # zero-pad by 1 on H, W and split into the 4 stride-2 phases (H, W even).
    xp = jnp.pad(x_nhwc, ((0, 0), (1, 1), (1, 1), (0, 0)))
    return tuple(xp[:, r::2, c::2, :] for r in range(2) for c in range(2))


def _conv3x3_s2_bn_relu(x_nhwc, w_fused, scale, bias, vmem_limit):
    B, H, W, Cin = x_nhwc.shape
    assert H % 2 == 0 and W % 2 == 0, "stride-2 phase decomposition assumes even H, W"
    Ho, Wo = H // 2, W // 2
    Cout = w_fused.shape[-1]
    planes = _stride2_phase_planes(x_nhwc)            # 4 x (B, Ho+1, Wo+1, Cin)

    kern = functools.partial(_conv3x3_s2_bn_relu_kernel, Ho=Ho, Wo=Wo)
    grid_spec = pltpu.PrefetchScalarGridSpec(
        num_scalar_prefetch=0,
        grid=(B,),
        in_specs=[pl.BlockSpec((1, Ho + 1, Wo + 1, Cin), lambda b: (b, 0, 0, 0))
                  for _ in range(4)]
        + [pl.BlockSpec(w_fused.shape, lambda b: (0, 0)),
           pl.BlockSpec(scale.shape, lambda b: (0, 0)),
           pl.BlockSpec(bias.shape, lambda b: (0, 0))],
        out_specs=pl.BlockSpec((1, Ho, Wo, Cout), lambda b: (b, 0, 0, 0)),
    )
    return pl.pallas_call(
        kern,
        out_shape=jax.ShapeDtypeStruct((B, Ho, Wo, Cout), jnp.float32),
        grid_spec=grid_spec,
        compiler_params=pltpu.CompilerParams(
            dimension_semantics=("parallel",), vmem_limit_bytes=vmem_limit),
    )(*planes, w_fused, scale, bias)


# ----------------------------------------------------------------------------
# Fused TokenPose_TB_base transformer kernel
# grid = (batch "parallel", depth "arbitrary"); token stream resident in VMEM scratch
# ----------------------------------------------------------------------------

def _transformer_kernel(patches_ref, pw_ref, pb_ref, kp_ref, pos_ref,
                        ln1g_ref, ln1b_ref, wq_ref, wk_ref, wv_ref, wo_ref, bo_ref,
                        ln2g_ref, ln2b_ref, w1_ref, b1_ref, w2_ref, b2_ref,
                        hg_ref, hbeta_ref, hw_ref, hbias_ref,
                        o_ref, x_ref,
                        *, num_kp, dim_true):
    l = pl.program_id(1)

    # ---- depth step 0 of each image: patch embedding + keypoint tokens + pos-emb ----
    @pl.when(l == 0)
    def _init():
        pe = jnp.dot(patches_ref[0].astype(MXU_DTYPE), pw_ref[...],
                     preferred_element_type=jnp.float32) + pb_ref[...]
        x_ref[:num_kp, :] = kp_ref[...]
        x_ref[num_kp:, :] = pe
        x_ref[...] = x_ref[...] + pos_ref[...]

    x = x_ref[...]                                           # (N, dim_pad) f32

    # ---- multi-head self-attention (pre-norm) ----
    h = _layer_norm(x, ln1g_ref[0], ln1b_ref[0], dim_true)
    heads = wq_ref.shape[1]
    h_heads = jnp.broadcast_to(h.astype(MXU_DTYPE)[None], (heads,) + h.shape)
    # batched-over-heads projections: no lane-axis slicing / per-head stacking.
    q = jnp.einsum('hnd,hdf->hnf', h_heads, wq_ref[0],
                   preferred_element_type=jnp.float32)       # softmax scale folded in wq
    k = jnp.einsum('hnd,hdf->hnf', h_heads, wk_ref[0],
                   preferred_element_type=jnp.float32)
    v = jnp.einsum('hnd,hdf->hnf', h_heads, wv_ref[0],
                   preferred_element_type=jnp.float32)
    s = jnp.einsum('hnf,hmf->hnm', q.astype(MXU_DTYPE), k.astype(MXU_DTYPE),
                   preferred_element_type=jnp.float32)       # (heads, N, N)
    # TODO(synk): at real TokenPose-B N (~273) tile this KV axis flash-style so the
    # full score tensor is never materialized (needed for v7x's 64 MiB VMEM).
    a = _softmax_lastdim(s)                                  # f32 (VPU/EUP path)
    out = jnp.einsum('hnm,hmf->hnf', a.astype(MXU_DTYPE), v.astype(MXU_DTYPE),
                     preferred_element_type=jnp.float32)     # (heads, N, dh)
    # output projection: one batched matmul + static head-sum on the VPU.
    # TODO(synk): on v7x, MRB accumulation (matmul_push_rhs/acc_lhs/pop) or a single
    # K=heads*dh matmul after a (N, inner) relayout folds this sum into the MXU.
    proj = jnp.einsum('hnf,hfd->hnd', out.astype(MXU_DTYPE), wo_ref[0],
                      preferred_element_type=jnp.float32)    # (heads, N, dim_pad)
    att = proj[0]
    for hh in range(1, heads):
        att = att + proj[hh]
    x = x + att + bo_ref[0]

    # ---- feed-forward (pre-norm) ----
    h2 = _layer_norm(x, ln2g_ref[0], ln2b_ref[0], dim_true)
    m = jnp.dot(h2.astype(MXU_DTYPE), w1_ref[0],
                preferred_element_type=jnp.float32) + b1_ref[0]
    # TODO(synk): PyTorch nn.GELU default is exact (erf); tanh approximation used.
    m = jax.nn.gelu(m, approximate=True)
    x = x + jnp.dot(m.astype(MXU_DTYPE), w2_ref[0],
                    preferred_element_type=jnp.float32) + b2_ref[0]

    x_ref[...] = x

    # ---- last depth step: keypoint tokens -> LayerNorm -> Linear head ----
    @pl.when(l == pl.num_programs(1) - 1)
    def _head():
        hfin = _layer_norm(x[:num_kp, :], hg_ref[...], hbeta_ref[...], dim_true)
        heat = jnp.dot(hfin.astype(MXU_DTYPE), hw_ref[...],
                       preferred_element_type=jnp.float32) + hbias_ref[...]
        o_ref[...] = heat.reshape(o_ref.shape)


def _run_transformer(patches, pr, *, num_kp, depth, dim_true, hm_dim, vmem_limit):
    B, n_patch, _ = patches.shape
    N = num_kp + n_patch
    dim_pad = pr['pos_embedding'].shape[-1]

    def per_batch(shape):
        nd = len(shape)
        return pl.BlockSpec((1,) + tuple(shape[1:]),
                            lambda b, l: (b,) + (0,) * (nd - 1))

    def const(shape):
        nd = len(shape)
        return pl.BlockSpec(tuple(shape), lambda b, l: (0,) * nd)

    def per_layer(shape):
        nd = len(shape)
        return pl.BlockSpec((1,) + tuple(shape[1:]),
                            lambda b, l: (l,) + (0,) * (nd - 1))

    in_specs = [
        per_batch(patches.shape),
        const(pr['patch_w'].shape), const(pr['patch_b'].shape),
        const(pr['keypoint_token'].shape), const(pr['pos_embedding'].shape),
        per_layer(pr['ln1_g'].shape), per_layer(pr['ln1_b'].shape),
        per_layer(pr['wq'].shape), per_layer(pr['wk'].shape), per_layer(pr['wv'].shape),
        per_layer(pr['wo'].shape), per_layer(pr['bo'].shape),
        per_layer(pr['ln2_g'].shape), per_layer(pr['ln2_b'].shape),
        per_layer(pr['w1'].shape), per_layer(pr['b1'].shape),
        per_layer(pr['w2'].shape), per_layer(pr['b2'].shape),
        const(pr['head_ln_g'].shape), const(pr['head_ln_b'].shape),
        const(pr['head_w'].shape), const(pr['head_b'].shape),
    ]
    out_specs = pl.BlockSpec((1, num_kp, hm_dim), lambda b, l: (b, 0, 0))

    kern = functools.partial(_transformer_kernel, num_kp=num_kp, dim_true=dim_true)
    grid_spec = pltpu.PrefetchScalarGridSpec(
        num_scalar_prefetch=0,
        grid=(B, depth),
        in_specs=in_specs,
        out_specs=out_specs,
        scratch_shapes=[pltpu.VMEM((N, dim_pad), jnp.float32)])

    return pl.pallas_call(
        kern,
        out_shape=jax.ShapeDtypeStruct((B, num_kp, hm_dim), jnp.float32),
        grid_spec=grid_spec,
        compiler_params=pltpu.CompilerParams(
            dimension_semantics=("parallel", "arbitrary"),
            vmem_limit_bytes=vmem_limit),
    )(patches, pr['patch_w'], pr['patch_b'], pr['keypoint_token'], pr['pos_embedding'],
      pr['ln1_g'], pr['ln1_b'], pr['wq'], pr['wk'], pr['wv'], pr['wo'], pr['bo'],
      pr['ln2_g'], pr['ln2_b'], pr['w1'], pr['b1'], pr['w2'], pr['b2'],
      pr['head_ln_g'], pr['head_ln_b'], pr['head_w'], pr['head_b'])


# ----------------------------------------------------------------------------
# Parameter preparation (outside kernels, once): BN / preprocess / scale folding,
# per-layer stacking for depth streaming, lane padding of the token dim, MXU casts.
# ----------------------------------------------------------------------------

def prepare_params(params, cfg):
    eps = 1e-5
    heads = cfg['TRANSFORMER_HEADS']
    dim_head = cfg['DIM_HEAD']
    dim = cfg['DIM']
    inner = heads * dim_head
    mlp_dim = dim * cfg['TRANSFORMER_MLP_RATIO']
    dim_pad = _round_up(dim, LANE)
    mlp_pad = _round_up(mlp_dim, LANE)

    def padc(a, tgt):                 # zero-pad last axis to tgt
        return jnp.pad(a, [(0, 0)] * (a.ndim - 1) + [(0, tgt - a.shape[-1])])

    def padr(a, tgt):                 # zero-pad second-to-last axis to tgt
        pads = [(0, 0)] * a.ndim
        pads[-2] = (0, tgt - a.shape[-2])
        return jnp.pad(a, pads)

    def fold_conv(w, gamma, beta, rmean, rvar, in_scale=None):
        if in_scale is not None:                      # fold 1/std of DATA_PREPROCESS
            w = w * in_scale.reshape(1, -1, 1, 1)
        # (Cout, Cin, 3, 3) -> (kh, kw, Cin, Cout) -> (9*Cin, Cout): tap-major,
        # matching the in-kernel concatenation order of the 9 shifted windows.
        taps = jnp.transpose(w, (2, 3, 1, 0)).reshape(9 * w.shape[1], w.shape[0])
        s = gamma * jax.lax.rsqrt(rvar + eps)
        return (taps.astype(MXU_DTYPE),
                s.reshape(1, -1).astype(jnp.float32),
                (beta - rmean * s).reshape(1, -1).astype(jnp.float32))

    inv_std = (1.0 / jnp.array([0.229, 0.224, 0.225], jnp.float32)
               if cfg['DATA_PREPROCESS'] else None)
    c1 = fold_conv(params['conv1_w'], params['bn1_g'], params['bn1_b'],
                   params['bn1_rm'], params['bn1_rv'], inv_std)
    c2 = fold_conv(params['conv2_w'], params['bn2_g'], params['bn2_b'],
                   params['bn2_rm'], params['bn2_rv'])

    scale = dim_head ** -0.5
    ln1_g, ln1_b, wq, wk, wv, wo, bo = [], [], [], [], [], [], []
    ln2_g, ln2_b, w1, b1, w2, b2 = [], [], [], [], [], []
    for lyr in params['layers']:
        # LN gamma/beta padded with ZEROS so padded lanes stay exactly zero.
        ln1_g.append(padc(lyr['ln1_g'], dim_pad))
        ln1_b.append(padc(lyr['ln1_b'], dim_pad))
        ln2_g.append(padc(lyr['ln2_g'], dim_pad))
        ln2_b.append(padc(lyr['ln2_b'], dim_pad))
        wqkv = lyr['wqkv']                           # (dim, 3*inner), head-major inner

        def split(i):
            wp = wqkv[:, i * inner:(i + 1) * inner].reshape(dim, heads, dim_head)
            return padr(jnp.transpose(wp, (1, 0, 2)), dim_pad)   # (heads, dim_pad, dh)

        wq.append(split(0) * scale)                  # fold softmax scale into Q weights
        wk.append(split(1))
        wv.append(split(2))
        wo.append(padc(lyr['wo'].reshape(heads, dim_head, dim), dim_pad))
        bo.append(padc(lyr['bo'], dim_pad))
        w1.append(padc(padr(lyr['w1'], dim_pad), mlp_pad))
        b1.append(padc(lyr['b1'], mlp_pad))
        w2.append(padc(padr(lyr['w2'], mlp_pad), dim_pad))
        b2.append(padc(lyr['b2'], dim_pad))

    stk = lambda xs, dt=jnp.float32: jnp.stack(xs).astype(dt)
    return {
        'conv1': c1, 'conv2': c2,
        'patch_w': padc(params['patch_w'], dim_pad).astype(MXU_DTYPE),
        'patch_b': padc(params['patch_b'], dim_pad),
        'keypoint_token': padc(params['keypoint_token'][0], dim_pad),   # (K, dim_pad)
        'pos_embedding': padc(params['pos_embedding'][0], dim_pad),     # (N, dim_pad)
        'ln1_g': stk(ln1_g), 'ln1_b': stk(ln1_b),
        'wq': stk(wq, MXU_DTYPE), 'wk': stk(wk, MXU_DTYPE), 'wv': stk(wv, MXU_DTYPE),
        'wo': stk(wo, MXU_DTYPE), 'bo': stk(bo),
        'ln2_g': stk(ln2_g), 'ln2_b': stk(ln2_b),
        'w1': stk(w1, MXU_DTYPE), 'b1': stk(b1),
        'w2': stk(w2, MXU_DTYPE), 'b2': stk(b2),
        'head_ln_g': padc(params['head_ln_g'], dim_pad),
        'head_ln_b': padc(params['head_ln_b'], dim_pad),
        'head_w': padr(params['head_w'], dim_pad).astype(MXU_DTYPE),
        'head_b': params['head_b'],
    }


# ----------------------------------------------------------------------------
# Full forward
# ----------------------------------------------------------------------------

def tokenpose_b_forward(x, prepared, cfg):
    B = x.shape[0]
    K = cfg['NUM_JOINTS']
    dim = cfg['DIM']
    depth = cfg['TRANSFORMER_DEPTH']
    p1, p2 = cfg['PATCH_SIZE'][1], cfg['PATCH_SIZE'][0]
    heat_h, heat_w = cfg['HEATMAP_SIZE'][1], cfg['HEATMAP_SIZE'][0]
    hm_dim = heat_h * heat_w
    vmem_limit = _vmem_limit_bytes()

    # NCHW -> NHWC.  The (x - mean) half of DATA_PREPROCESS rides on this XLA layout
    # glue; 1/std is folded into conv1's weights so zero-padding semantics stay exact.
    x = jnp.transpose(x, (0, 2, 3, 1))
    if cfg['DATA_PREPROCESS']:
        x = x - jnp.array([0.485, 0.456, 0.406], jnp.float32)

    # ---- pre_feature: HRNet stem (stride 4), NHWC end-to-end ----
    f = _conv3x3_s2_bn_relu(x, *prepared['conv1'], vmem_limit)
    f = _conv3x3_s2_bn_relu(f, *prepared['conv2'], vmem_limit)   # (B, Hf, Wf, C)

    # ---- 'b c (h p1) (w p2) -> b (h w) (p1 p2 c)' on the NHWC feature map ----
    _, Hf, Wf, Cf = f.shape
    hg, wg = Hf // p1, Wf // p2
    n_patch = hg * wg
    patches = f.reshape(B, hg, p1, wg, p2, Cf).transpose(0, 1, 3, 2, 4, 5)
    patches = patches.reshape(B, n_patch, p1 * p2 * Cf).astype(MXU_DTYPE)

    # ---- fused transformer (embedding + tokens + pos-emb + depth blocks + head) ----
    heat = _run_transformer(patches, prepared, num_kp=K, depth=depth,
                            dim_true=dim, hm_dim=hm_dim, vmem_limit=vmem_limit)

    # 'b c (p1 p2) -> b c p1 p2'
    return heat.reshape(B, K, heat_h, heat_w)


# ----------------------------------------------------------------------------
# Deterministic synthetic parameters (PyTorch-style layouts)
# ----------------------------------------------------------------------------

def init_params(key, cfg):
    dim = cfg['DIM']
    stem = cfg['STEM_CHANNEL']
    base = cfg['BASE_CHANNEL']
    depth = cfg['TRANSFORMER_DEPTH']
    heads = cfg['TRANSFORMER_HEADS']
    dim_head = cfg['DIM_HEAD']
    inner = heads * dim_head
    mlp_dim = dim * cfg['TRANSFORMER_MLP_RATIO']
    p1, p2 = cfg['PATCH_SIZE'][1], cfg['PATCH_SIZE'][0]
    feat_h, feat_w = cfg['IMAGE_SIZE'][1] // 4, cfg['IMAGE_SIZE'][0] // 4
    n_patches = (feat_h // p1) * (feat_w // p2)
    K = cfg['NUM_JOINTS']
    patch_dim = base * p1 * p2
    hm_dim = cfg['HEATMAP_SIZE'][0] * cfg['HEATMAP_SIZE'][1]
    # NOTE: dim(=32) > 0.5 * hidden_heatmap_dim, so the single LN+Linear head applies.

    keys = iter(jax.random.split(key, 32 + depth * 8))

    def nrm(shape, s=0.02):
        return jax.random.normal(next(keys), shape, jnp.float32) * s

    ones = lambda s: jnp.ones(s, jnp.float32)
    zeros = lambda s: jnp.zeros(s, jnp.float32)

    params = {
        'conv1_w': nrm((stem, 3, 3, 3), 0.1),
        'bn1_g': ones((stem,)), 'bn1_b': zeros((stem,)),
        'bn1_rm': zeros((stem,)), 'bn1_rv': ones((stem,)),
        'conv2_w': nrm((base, stem, 3, 3), 0.1),
        'bn2_g': ones((base,)), 'bn2_b': zeros((base,)),
        'bn2_rm': zeros((base,)), 'bn2_rv': ones((base,)),
        'patch_w': nrm((patch_dim, dim)),
        'patch_b': zeros((1, dim)),
        'keypoint_token': nrm((1, K, dim)),
        'pos_embedding': nrm((1, n_patches + K, dim)),
        'head_ln_g': ones((1, dim)), 'head_ln_b': zeros((1, dim)),
        'head_w': nrm((dim, hm_dim)),
        'head_b': zeros((1, hm_dim)),
        'layers': [],
    }
    for _ in range(depth):
        params['layers'].append({
            'ln1_g': ones((1, dim)), 'ln1_b': zeros((1, dim)),
            'wqkv': nrm((dim, 3 * inner)),   # to_qkv: Linear(dim, inner*3, bias=False)
            'wo': nrm((inner, dim)), 'bo': zeros((1, dim)),
            'ln2_g': ones((1, dim)), 'ln2_b': zeros((1, dim)),
            'w1': nrm((dim, mlp_dim)), 'b1': zeros((1, mlp_dim)),
            'w2': nrm((mlp_dim, dim)), 'b2': zeros((1, dim)),
        })
    return params


# ----------------------------------------------------------------------------

if __name__ == "__main__":
    cfg = {
        'DATA_PREPROCESS': True,
        'IMAGE_SIZE': [16, 16],        # [W, H]
        'PATCH_SIZE': [2, 2],          # [W, H]
        'NUM_JOINTS': 4,
        'DIM': 32,
        'STEM_CHANNEL': 8,
        'BASE_CHANNEL': 8,
        'TRANSFORMER_DEPTH': 2,
        'TRANSFORMER_HEADS': 2,
        'DIM_HEAD': 64,                # Attention dim_head default in TokenPose
        'TRANSFORMER_MLP_RATIO': 2,
        'HEATMAP_SIZE': [8, 8],        # [W, H]
        'POS_EMBEDDING_TYPE': 'learnable',
    }

    key = jax.random.PRNGKey(0)
    kx, kparams = jax.random.split(key)
    x = jax.random.uniform(kx, (2, 3, cfg['IMAGE_SIZE'][1], cfg['IMAGE_SIZE'][0]),
                           dtype=jnp.float32)

    raw_params = init_params(kparams, cfg)
    prepared = prepare_params(raw_params, cfg)      # one-time folding / stacking / padding

    fwd = jax.jit(functools.partial(tokenpose_b_forward, cfg=cfg))
    out = fwd(x, prepared)
    out = jax.block_until_ready(out)

    assert out.shape == (2, cfg['NUM_JOINTS'], cfg['HEATMAP_SIZE'][1], cfg['HEATMAP_SIZE'][0])
    assert bool(jnp.all(jnp.isfinite(out)))
    print("KERNEL_OK")
</pallas_src>

<mosaic_0001>
module attributes {stable_mosaic.version = 11 : i64} {
  func.func @_conv3x3_s2_bn_relu_kernel(%arg0: i32, %arg1: memref<1x9x9x3xf32, #tpu.memory_space<vmem>>, %arg2: memref<1x9x9x3xf32, #tpu.memory_space<vmem>>, %arg3: memref<1x9x9x3xf32, #tpu.memory_space<vmem>>, %arg4: memref<1x9x9x3xf32, #tpu.memory_space<vmem>>, %arg5: memref<27x8xbf16, #tpu.memory_space<vmem>>, %arg6: memref<1x8xf32, #tpu.memory_space<vmem>>, %arg7: memref<1x8xf32, #tpu.memory_space<vmem>>, %arg8: memref<1x8x8x8xf32, #tpu.memory_space<vmem>>) attributes {dimension_semantics = [#tpu.dimension_semantics<parallel>], iteration_bounds = array<i64: 2>, scalar_prefetch = 0 : i64, scratch_operands = 0 : i64, tpu.core_type = #tpu.core_type<tc>, window_params = [{transform_indices = @transform_0, window_bounds = array<i64: 1, 9, 9, 3>}, {transform_indices = @transform_1, window_bounds = array<i64: 1, 9, 9, 3>}, {transform_indices = @transform_2, window_bounds = array<i64: 1, 9, 9, 3>}, {transform_indices = @transform_3, window_bounds = array<i64: 1, 9, 9, 3>}, {pipeline_mode = #tpu.pipeline_mode<synchronous>, transform_indices = @transform_4, window_bounds = array<i64: 27, 8>}, {pipeline_mode = #tpu.pipeline_mode<synchronous>, transform_indices = @transform_5, window_bounds = array<i64: 1, 8>}, {pipeline_mode = #tpu.pipeline_mode<synchronous>, transform_indices = @transform_6, window_bounds = array<i64: 1, 8>}, {transform_indices = @transform_7, window_bounds = array<i64: 1, 8, 8, 8>}]} {
    %c0 = arith.constant 0 : index
    %c0_0 = arith.constant 0 : index
    %c0_1 = arith.constant 0 : index
    %c0_2 = arith.constant 0 : index
    %0 = vector.load %arg1[%c0, %c0_0, %c0_1, %c0_2] : memref<1x9x9x3xf32, #tpu.memory_space<vmem>>, vector<1x9x9x3xf32>
    %c0_3 = arith.constant 0 : index
    %c0_4 = arith.constant 0 : index
    %c0_5 = arith.constant 0 : index
    %c0_6 = arith.constant 0 : index
    %1 = vector.load %arg2[%c0_3, %c0_4, %c0_5, %c0_6] : memref<1x9x9x3xf32, #tpu.memory_space<vmem>>, vector<1x9x9x3xf32>
    %c0_7 = arith.constant 0 : index
    %c0_8 = arith.constant 0 : index
    %c0_9 = arith.constant 0 : index
    %c0_10 = arith.constant 0 : index
    %2 = vector.load %arg3[%c0_7, %c0_8, %c0_9, %c0_10] : memref<1x9x9x3xf32, #tpu.memory_space<vmem>>, vector<1x9x9x3xf32>
    %c0_11 = arith.constant 0 : index
    %c0_12 = arith.constant 0 : index
    %c0_13 = arith.constant 0 : index
    %c0_14 = arith.constant 0 : index
    %3 = vector.load %arg4[%c0_11, %c0_12, %c0_13, %c0_14] : memref<1x9x9x3xf32, #tpu.memory_space<vmem>>, vector<1x9x9x3xf32>
    %4 = vector.extract_strided_slice %0 {offsets = [0, 0, 0, 0], sizes = [1, 8, 8, 3], strides = [1, 1, 1, 1]} : vector<1x9x9x3xf32> to vector<1x8x8x3xf32>
    %5 = vector.extract_strided_slice %1 {offsets = [0, 0, 0, 0], sizes = [1, 8, 8, 3], strides = [1, 1, 1, 1]} : vector<1x9x9x3xf32> to vector<1x8x8x3xf32>
    %6 = vector.extract_strided_slice %0 {offsets = [0, 0, 1, 0], sizes = [1, 8, 8, 3], strides = [1, 1, 1, 1]} : vector<1x9x9x3xf32> to vector<1x8x8x3xf32>
    %7 = vector.extract_strided_slice %2 {offsets = [0, 0, 0, 0], sizes = [1, 8, 8, 3], strides = [1, 1, 1, 1]} : vector<1x9x9x3xf32> to vector<1x8x8x3xf32>
    %8 = vector.extract_strided_slice %3 {offsets = [0, 0, 0, 0], sizes = [1, 8, 8, 3], strides = [1, 1, 1, 1]} : vector<1x9x9x3xf32> to vector<1x8x8x3xf32>
    %9 = vector.extract_strided_slice %2 {offsets = [0, 0, 1, 0], sizes = [1, 8, 8, 3], strides = [1, 1, 1, 1]} : vector<1x9x9x3xf32> to vector<1x8x8x3xf32>
    %10 = vector.extract_strided_slice %0 {offsets = [0, 1, 0, 0], sizes = [1, 8, 8, 3], strides = [1, 1, 1, 1]} : vector<1x9x9x3xf32> to vector<1x8x8x3xf32>
    %11 = vector.extract_strided_slice %1 {offsets = [0, 1, 0, 0], sizes = [1, 8, 8, 3], strides = [1, 1, 1, 1]} : vector<1x9x9x3xf32> to vector<1x8x8x3xf32>
    %12 = vector.extract_strided_slice %0 {offsets = [0, 1, 1, 0], sizes = [1, 8, 8, 3], strides = [1, 1, 1, 1]} : vector<1x9x9x3xf32> to vector<1x8x8x3xf32>
    %13 = tpu.concatenate %4, %5, %6, %7, %8, %9, %10, %11, %12 in 3 : vector<1x8x8x3xf32>, vector<1x8x8x3xf32>, vector<1x8x8x3xf32>, vector<1x8x8x3xf32>, vector<1x8x8x3xf32>, vector<1x8x8x3xf32>, vector<1x8x8x3xf32>, vector<1x8x8x3xf32>, vector<1x8x8x3xf32> -> vector<1x8x8x27xf32>
    %14 = vector.shape_cast %13 : vector<1x8x8x27xf32> to vector<64x27xf32>
    %15 = arith.truncf %14 : vector<64x27xf32> to vector<64x27xbf16>
    %c0_15 = arith.constant 0 : index
    %c0_16 = arith.constant 0 : index
    %16 = vector.load %arg5[%c0_15, %c0_16] : memref<27x8xbf16, #tpu.memory_space<vmem>>, vector<27x8xbf16>
    %cst = arith.constant dense<0.000000e+00> : vector<64x8xf32>
    %17 = tpu.matmul %15, %16, %cst {dimension_numbers = #tpu.dot_dimension_numbers<[1], [0], [0], [1], [0, 0, 1, 1], [], []>} : vector<64x27xbf16>, vector<27x8xbf16>, vector<64x8xf32> -> vector<64x8xf32>
    %c0_17 = arith.constant 0 : index
    %c0_18 = arith.constant 0 : index
    %18 = vector.load %arg6[%c0_17, %c0_18] : memref<1x8xf32, #tpu.memory_space<vmem>>, vector<1x8xf32>
    %19 = vector.broadcast %18 : vector<1x8xf32> to vector<64x8xf32>
    %20 = arith.mulf %17, %19 : vector<64x8xf32>
    %c0_19 = arith.constant 0 : index
    %c0_20 = arith.constant 0 : index
    %21 = vector.load %arg7[%c0_19, %c0_20] : memref<1x8xf32, #tpu.memory_space<vmem>>, vector<1x8xf32>
    %22 = vector.broadcast %21 : vector<1x8xf32> to vector<64x8xf32>
    %23 = arith.addf %20, %22 : vector<64x8xf32>
    %cst_21 = arith.constant 0.000000e+00 : f32
    %24 = vector.broadcast %cst_21 : f32 to vector<64x8xf32>
    %25 = arith.maximumf %23, %24 : vector<64x8xf32>
    %26 = vector.shape_cast %25 : vector<64x8xf32> to vector<1x8x8x8xf32>
    %c0_22 = arith.constant 0 : index
    %c0_23 = arith.constant 0 : index
    %c0_24 = arith.constant 0 : index
    %c0_25 = arith.constant 0 : index
    %27 = vector.load %arg8[%c0_22, %c0_23, %c0_24, %c0_25] : memref<1x8x8x8xf32, #tpu.memory_space<vmem>>, vector<1x8x8x8xf32>
    tpu.vector_store %arg8[%c0_22, %c0_23, %c0_24, %c0_25], %26 {strides = array<i32>} : memref<1x8x8x8xf32, #tpu.memory_space<vmem>>, vector<1x8x8x8xf32>,
    return
  }
  func.func @transform_0(%arg0: i32) -> (i32, i32, i32, i32) {
    %c0_i32 = arith.constant 0 : i32
    %c0_i32_0 = arith.constant 0 : i32
    %c0_i32_1 = arith.constant 0 : i32
    %c0_i32_2 = arith.constant 0 : i32
    return %arg0, %c0_i32, %c0_i32_0, %c0_i32_1 : i32, i32, i32, i32
  }
  func.func @transform_1(%arg0: i32) -> (i32, i32, i32, i32) {
    %c0_i32 = arith.constant 0 : i32
    %c0_i32_0 = arith.constant 0 : i32
    %c0_i32_1 = arith.constant 0 : i32
    %c0_i32_2 = arith.constant 0 : i32
    return %arg0, %c0_i32, %c0_i32_0, %c0_i32_1 : i32, i32, i32, i32
  }
  func.func @transform_2(%arg0: i32) -> (i32, i32, i32, i32) {
    %c0_i32 = arith.constant 0 : i32
    %c0_i32_0 = arith.constant 0 : i32
    %c0_i32_1 = arith.constant 0 : i32
    %c0_i32_2 = arith.constant 0 : i32
    return %arg0, %c0_i32, %c0_i32_0, %c0_i32_1 : i32, i32, i32, i32
  }
  func.func @transform_3(%arg0: i32) -> (i32, i32, i32, i32) {
    %c0_i32 = arith.constant 0 : i32
    %c0_i32_0 = arith.constant 0 : i32
    %c0_i32_1 = arith.constant 0 : i32
    %c0_i32_2 = arith.constant 0 : i32
    return %arg0, %c0_i32, %c0_i32_0, %c0_i32_1 : i32, i32, i32, i32
  }
  func.func @transform_4(%arg0: i32) -> (i32, i32) {
    %c0_i32 = arith.constant 0 : i32
    %c0_i32_0 = arith.constant 0 : i32
    %c0_i32_1 = arith.constant 0 : i32
    return %c0_i32, %c0_i32_0 : i32, i32
  }
  func.func @transform_5(%arg0: i32) -> (i32, i32) {
    %c0_i32 = arith.constant 0 : i32
    %c0_i32_0 = arith.constant 0 : i32
    %c0_i32_1 = arith.constant 0 : i32
    return %c0_i32, %c0_i32_0 : i32, i32
  }
  func.func @transform_6(%arg0: i32) -> (i32, i32) {
    %c0_i32 = arith.constant 0 : i32
    %c0_i32_0 = arith.constant 0 : i32
    %c0_i32_1 = arith.constant 0 : i32
    return %c0_i32, %c0_i32_0 : i32, i32
  }
  func.func @transform_7(%arg0: i32) -> (i32, i32, i32, i32) {
    %c0_i32 = arith.constant 0 : i32
    %c0_i32_0 = arith.constant 0 : i32
    %c0_i32_1 = arith.constant 0 : i32
    %c0_i32_2 = arith.constant 0 : i32
    return %arg0, %c0_i32, %c0_i32_0, %c0_i32_1 : i32, i32, i32, i32
  }
}

module attributes {stable_mosaic.version = 11 : i64} {
  func.func @_conv3x3_s2_bn_relu_kernel(%arg0: i32, %arg1: memref<1x5x5x8xf32, #tpu.memory_space<vmem>>, %arg2: memref<1x5x5x8xf32, #tpu.memory_space<vmem>>, %arg3: memref<1x5x5x8xf32, #tpu.memory_space<vmem>>, %arg4: memref<1x5x5x8xf32, #tpu.memory_space<vmem>>, %arg5: memref<72x8xbf16, #tpu.memory_space<vmem>>, %arg6: memref<1x8xf32, #tpu.memory_space<vmem>>, %arg7: memref<1x8xf32, #tpu.memory_space<vmem>>, %arg8: memref<1x4x4x8xf32, #tpu.memory_space<vmem>>) attributes {dimension_semantics = [#tpu.dimension_semantics<parallel>], iteration_bounds = array<i64: 2>, scalar_prefetch = 0 : i64, scratch_operands = 0 : i64, tpu.core_type = #tpu.core_type<tc>, window_params = [{transform_indices = @transform_0, window_bounds = array<i64: 1, 5, 5, 8>}, {transform_indices = @transform_1, window_bounds = array<i64: 1, 5, 5, 8>}, {transform_indices = @transform_2, window_bounds = array<i64: 1, 5, 5, 8>}, {transform_indices = @transform_3, window_bounds = array<i64: 1, 5, 5, 8>}, {pipeline_mode = #tpu.pipeline_mode<synchronous>, transform_indices = @transform_4, window_bounds = array<i64: 72, 8>}, {pipeline_mode = #tpu.pipeline_mode<synchronous>, transform_indices = @transform_5, window_bounds = array<i64: 1, 8>}, {pipeline_mode = #tpu.pipeline_mode<synchronous>, transform_indices = @transform_6, window_bounds = array<i64: 1, 8>}, {transform_indices = @transform_7, window_bounds = array<i64: 1, 4, 4, 8>}]} {
    %c0 = arith.constant 0 : index
    %c0_0 = arith.constant 0 : index
    %c0_1 = arith.constant 0 : index
    %c0_2 = arith.constant 0 : index
    %0 = vector.load %arg1[%c0, %c0_0, %c0_1, %c0_2] : memref<1x5x5x8xf32, #tpu.memory_space<vmem>>, vector<1x5x5x8xf32>
    %c0_3 = arith.constant 0 : index
    %c0_4 = arith.constant 0 : index
    %c0_5 = arith.constant 0 : index
    %c0_6 = arith.constant 0 : index
    %1 = vector.load %arg2[%c0_3, %c0_4, %c0_5, %c0_6] : memref<1x5x5x8xf32, #tpu.memory_space<vmem>>, vector<1x5x5x8xf32>
    %c0_7 = arith.constant 0 : index
    %c0_8 = arith.constant 0 : index
    %c0_9 = arith.constant 0 : index
    %c0_10 = arith.constant 0 : index
    %2 = vector.load %arg3[%c0_7, %c0_8, %c0_9, %c0_10] : memref<1x5x5x8xf32, #tpu.memory_space<vmem>>, vector<1x5x5x8xf32>
    %c0_11 = arith.constant 0 : index
    %c0_12 = arith.constant 0 : index
    %c0_13 = arith.constant 0 : index
    %c0_14 = arith.constant 0 : index
    %3 = vector.load %arg4[%c0_11, %c0_12, %c0_13, %c0_14] : memref<1x5x5x8xf32, #tpu.memory_space<vmem>>, vector<1x5x5x8xf32>
    %4 = vector.extract_strided_slice %0 {offsets = [0, 0, 0, 0], sizes = [1, 4, 4, 8], strides = [1, 1, 1, 1]} : vector<1x5x5x8xf32> to vector<1x4x4x8xf32>
    %5 = vector.extract_strided_slice %1 {offsets = [0, 0, 0, 0], sizes = [1, 4, 4, 8], strides = [1, 1, 1, 1]} : vector<1x5x5x8xf32> to vector<1x4x4x8xf32>
    %6 = vector.extract_strided_slice %0 {offsets = [0, 0, 1, 0], sizes = [1, 4, 4, 8], strides = [1, 1, 1, 1]} : vector<1x5x5x8xf32> to vector<1x4x4x8xf32>
    %7 = vector.extract_strided_slice %2 {offsets = [0, 0, 0, 0], sizes = [1, 4, 4, 8], strides = [1, 1, 1, 1]} : vector<1x5x5x8xf32> to vector<1x4x4x8xf32>
    %8 = vector.extract_strided_slice %3 {offsets = [0, 0, 0, 0], sizes = [1, 4, 4, 8], strides = [1, 1, 1, 1]} : vector<1x5x5x8xf32> to vector<1x4x4x8xf32>
    %9 = vector.extract_strided_slice %2 {offsets = [0, 0, 1, 0], sizes = [1, 4, 4, 8], strides = [1, 1, 1, 1]} : vector<1x5x5x8xf32> to vector<1x4x4x8xf32>
    %10 = vector.extract_strided_slice %0 {offsets = [0, 1, 0, 0], sizes = [1, 4, 4, 8], strides = [1, 1, 1, 1]} : vector<1x5x5x8xf32> to vector<1x4x4x8xf32>
    %11 = vector.extract_strided_slice %1 {offsets = [0, 1, 0, 0], sizes = [1, 4, 4, 8], strides = [1, 1, 1, 1]} : vector<1x5x5x8xf32> to vector<1x4x4x8xf32>
    %12 = vector.extract_strided_slice %0 {offsets = [0, 1, 1, 0], sizes = [1, 4, 4, 8], strides = [1, 1, 1, 1]} : vector<1x5x5x8xf32> to vector<1x4x4x8xf32>
    %13 = tpu.concatenate %4, %5, %6, %7, %8, %9, %10, %11, %12 in 3 : vector<1x4x4x8xf32>, vector<1x4x4x8xf32>, vector<1x4x4x8xf32>, vector<1x4x4x8xf32>, vector<1x4x4x8xf32>, vector<1x4x4x8xf32>, vector<1x4x4x8xf32>, vector<1x4x4x8xf32>, vector<1x4x4x8xf32> -> vector<1x4x4x72xf32>
    %14 = vector.shape_cast %13 : vector<1x4x4x72xf32> to vector<16x72xf32>
    %15 = arith.truncf %14 : vector<16x72xf32> to vector<16x72xbf16>
    %c0_15 = arith.constant 0 : index
    %c0_16 = arith.constant 0 : index
    %16 = vector.load %arg5[%c0_15, %c0_16] : memref<72x8xbf16, #tpu.memory_space<vmem>>, vector<72x8xbf16>
    %cst = arith.constant dense<0.000000e+00> : vector<16x8xf32>
    %17 = tpu.matmul %15, %16, %cst {dimension_numbers = #tpu.dot_dimension_numbers<[1], [0], [0], [1], [0, 0, 1, 1], [], []>} : vector<16x72xbf16>, vector<72x8xbf16>, vector<16x8xf32> -> vector<16x8xf32>
    %c0_17 = arith.constant 0 : index
    %c0_18 = arith.constant 0 : index
    %18 = vector.load %arg6[%c0_17, %c0_18] : memref<1x8xf32, #tpu.memory_space<vmem>>, vector<1x8xf32>
    %19 = vector.broadcast %18 : vector<1x8xf32> to vector<16x8xf32>
    %20 = arith.mulf %17, %19 : vector<16x8xf32>
    %c0_19 = arith.constant 0 : index
    %c0_20 = arith.constant 0 : index
    %21 = vector.load %arg7[%c0_19, %c0_20] : memref<1x8xf32, #tpu.memory_space<vmem>>, vector<1x8xf32>
    %22 = vector.broadcast %21 : vector<1x8xf32> to vector<16x8xf32>
    %23 = arith.addf %20, %22 : vector<16x8xf32>
    %cst_21 = arith.constant 0.000000e+00 : f32
    %24 = vector.broadcast %cst_21 : f32 to vector<16x8xf32>
    %25 = arith.maximumf %23, %24 : vector<16x8xf32>
    %26 = vector.shape_cast %25 : vector<16x8xf32> to vector<1x4x4x8xf32>
    %c0_22 = arith.constant 0 : index
    %c0_23 = arith.constant 0 : index
    %c0_24 = arith.constant 0 : index
    %c0_25 = arith.constant 0 : index
    %27 = vector.load %arg8[%c0_22, %c0_23, %c0_24, %c0_25] : memref<1x4x4x8xf32, #tpu.memory_space<vmem>>, vector<1x4x4x8xf32>
    tpu.vector_store %arg8[%c0_22, %c0_23, %c0_24, %c0_25], %26 {strides = array<i32>} : memref<1x4x4x8xf32, #tpu.memory_space<vmem>>, vector<1x4x4x8xf32>,
    return
  }
  func.func @transform_0(%arg0: i32) -> (i32, i32, i32, i32) {
    %c0_i32 = arith.constant 0 : i32
    %c0_i32_0 = arith.constant 0 : i32
    %c0_i32_1 = arith.constant 0 : i32
    %c0_i32_2 = arith.constant 0 : i32
    return %arg0, %c0_i32, %c0_i32_0, %c0_i32_1 : i32, i32, i32, i32
  }
  func.func @transform_1(%arg0: i32) -> (i32, i32, i32, i32) {
    %c0_i32 = arith.constant 0 : i32
    %c0_i32_0 = arith.constant 0 : i32
    %c0_i32_1 = arith.constant 0 : i32
    %c0_i32_2 = arith.constant 0 : i32
    return %arg0, %c0_i32, %c0_i32_0, %c0_i32_1 : i32, i32, i32, i32
  }
  func.func @transform_2(%arg0: i32) -> (i32, i32, i32, i32) {
    %c0_i32 = arith.constant 0 : i32
    %c0_i32_0 = arith.constant 0 : i32
    %c0_i32_1 = arith.constant 0 : i32
    %c0_i32_2 = arith.constant 0 : i32
    return %arg0, %c0_i32, %c0_i32_0, %c0_i32_1 : i32, i32, i32, i32
  }
  func.func @transform_3(%arg0: i32) -> (i32, i32, i32, i32) {
    %c0_i32 = arith.constant 0 : i32
    %c0_i32_0 = arith.constant 0 : i32
    %c0_i32_1 = arith.constant 0 : i32
    %c0_i32_2 = arith.constant 0 : i32
    return %arg0, %c0_i32, %c0_i32_0, %c0_i32_1 : i32, i32, i32, i32
  }
  func.func @transform_4(%arg0: i32) -> (i32, i32) {
    %c0_i32 = arith.constant 0 : i32
    %c0_i32_0 = arith.constant 0 : i32
    %c0_i32_1 = arith.constant 0 : i32
    return %c0_i32, %c0_i32_0 : i32, i32
  }
  func.func @transform_5(%arg0: i32) -> (i32, i32) {
    %c0_i32 = arith.constant 0 : i32
    %c0_i32_0 = arith.constant 0 : i32
    %c0_i32_1 = arith.constant 0 : i32
    return %c0_i32, %c0_i32_0 : i32, i32
  }
  func.func @transform_6(%arg0: i32) -> (i32, i32) {
    %c0_i32 = arith.constant 0 : i32
    %c0_i32_0 = arith.constant 0 : i32
    %c0_i32_1 = arith.constant 0 : i32
    return %c0_i32, %c0_i32_0 : i32, i32
  }
  func.func @transform_7(%arg0: i32) -> (i32, i32, i32, i32) {
    %c0_i32 = arith.constant 0 : i32
    %c0_i32_0 = arith.constant 0 : i32
    %c0_i32_1 = arith.constant 0 : i32
    %c0_i32_2 = arith.constant 0 : i32
    return %arg0, %c0_i32, %c0_i32_0, %c0_i32_1 : i32, i32, i32, i32
  }
}

module attributes {stable_mosaic.version = 11 : i64} {
  func.func @_transformer_kernel(%arg0: i32, %arg1: i32, %arg2: memref<1x4x32xbf16, #tpu.memory_space<vmem>>, %arg3: memref<32x128xbf16, #tpu.memory_space<vmem>>, %arg4: memref<1x128xf32, #tpu.memory_space<vmem>>, %arg5: memref<4x128xf32, #tpu.memory_space<vmem>>, %arg6: memref<8x128xf32, #tpu.memory_space<vmem>>, %arg7: memref<1x1x128xf32, #tpu.memory_space<vmem>>, %arg8: memref<1x1x128xf32, #tpu.memory_space<vmem>>, %arg9: memref<1x2x128x64xbf16, #tpu.memory_space<vmem>>, %arg10: memref<1x2x128x64xbf16, #tpu.memory_space<vmem>>, %arg11: memref<1x2x128x64xbf16, #tpu.memory_space<vmem>>, %arg12: memref<1x2x64x128xbf16, #tpu.memory_space<vmem>>, %arg13: memref<1x1x128xf32, #tpu.memory_space<vmem>>, %arg14: memref<1x1x128xf32, #tpu.memory_space<vmem>>, %arg15: memref<1x1x128xf32, #tpu.memory_space<vmem>>, %arg16: memref<1x128x128xbf16, #tpu.memory_space<vmem>>, %arg17: memref<1x1x128xf32, #tpu.memory_space<vmem>>, %arg18: memref<1x128x128xbf16, #tpu.memory_space<vmem>>, %arg19: memref<1x1x128xf32, #tpu.memory_space<vmem>>, %arg20: memref<1x128xf32, #tpu.memory_space<vmem>>, %arg21: memref<1x128xf32, #tpu.memory_space<vmem>>, %arg22: memref<128x64xbf16, #tpu.memory_space<vmem>>, %arg23: memref<1x64xf32, #tpu.memory_space<vmem>>, %arg24: memref<1x4x64xf32, #tpu.memory_space<vmem>>, %arg25: memref<8x128xf32, #tpu.memory_space<vmem>>) attributes {dimension_semantics = [#tpu.dimension_semantics<parallel>, #tpu.dimension_semantics<arbitrary>], iteration_bounds = array<i64: 2, 2>, scalar_prefetch = 0 : i64, scratch_operands = 1 : i64, tpu.core_type = #tpu.core_type<tc>, window_params = [{transform_indices = @transform_0, window_bounds = array<i64: 1, 4, 32>}, {pipeline_mode = #tpu.pipeline_mode<synchronous>, transform_indices = @transform_1, window_bounds = array<i64: 32, 128>}, {pipeline_mode = #tpu.pipeline_mode<synchronous>, transform_indices = @transform_2, window_bounds = array<i64: 1, 128>}, {pipeline_mode = #tpu.pipeline_mode<synchronous>, transform_indices = @transform_3, window_bounds = array<i64: 4, 128>}, {pipeline_mode = #tpu.pipeline_mode<synchronous>, transform_indices = @transform_4, window_bounds = array<i64: 8, 128>}, {transform_indices = @transform_5, window_bounds = array<i64: 1, 1, 128>}, {transform_indices = @transform_6, window_bounds = array<i64: 1, 1, 128>}, {transform_indices = @transform_7, window_bounds = array<i64: 1, 2, 128, 64>}, {transform_indices = @transform_8, window_bounds = array<i64: 1, 2, 128, 64>}, {transform_indices = @transform_9, window_bounds = array<i64: 1, 2, 128, 64>}, {transform_indices = @transform_10, window_bounds = array<i64: 1, 2, 64, 128>}, {transform_indices = @transform_11, window_bounds = array<i64: 1, 1, 128>}, {transform_indices = @transform_12, window_bounds = array<i64: 1, 1, 128>}, {transform_indices = @transform_13, window_bounds = array<i64: 1, 1, 128>}, {transform_indices = @transform_14, window_bounds = array<i64: 1, 128, 128>}, {transform_indices = @transform_15, window_bounds = array<i64: 1, 1, 128>}, {transform_indices = @transform_16, window_bounds = array<i64: 1, 128, 128>}, {transform_indices = @transform_17, window_bounds = array<i64: 1, 1, 128>}, {pipeline_mode = #tpu.pipeline_mode<synchronous>, transform_indices = @transform_18, window_bounds = array<i64: 1, 128>}, {pipeline_mode = #tpu.pipeline_mode<synchronous>, transform_indices = @transform_19, window_bounds = array<i64: 1, 128>}, {pipeline_mode = #tpu.pipeline_mode<synchronous>, transform_indices = @transform_20, window_bounds = array<i64: 128, 64>}, {pipeline_mode = #tpu.pipeline_mode<synchronous>, transform_indices = @transform_21, window_bounds = array<i64: 1, 64>}, {transform_indices = @transform_22, window_bounds = array<i64: 1, 4, 64>}]} {
    %c0_i32 = arith.constant 0 : i32
    %0 = arith.cmpi eq, %arg1, %c0_i32 : i32
    %1 = arith.extui %0 : i1 to i32
    %c0_i32_0 = arith.constant 0 : i32
    %2 = arith.cmpi ne, %1, %c0_i32_0 : i32
    scf.if %2 {
      %c0_71 = arith.constant 0 : index
      %c0_72 = arith.constant 0 : index
      %c0_73 = arith.constant 0 : index
      %133 = vector.load %arg2[%c0_71, %c0_72, %c0_73] : memref<1x4x32xbf16, #tpu.memory_space<vmem>>, vector<1x4x32xbf16>
      %134 = vector.shape_cast %133 : vector<1x4x32xbf16> to vector<4x32xbf16>
      %c0_74 = arith.constant 0 : index
      %c0_75 = arith.constant 0 : index
      %135 = vector.load %arg3[%c0_74, %c0_75] : memref<32x128xbf16, #tpu.memory_space<vmem>>, vector<32x128xbf16>
      %cst_76 = arith.constant dense<0.000000e+00> : vector<4x128xf32>
      %136 = tpu.matmul %134, %135, %cst_76 {dimension_numbers = #tpu.dot_dimension_numbers<[1], [0], [0], [1], [0, 0, 1, 1], [], []>} : vector<4x32xbf16>, vector<32x128xbf16>, vector<4x128xf32> -> vector<4x128xf32>
      %c0_77 = arith.constant 0 : index
      %c0_78 = arith.constant 0 : index
      %137 = vector.load %arg4[%c0_77, %c0_78] : memref<1x128xf32, #tpu.memory_space<vmem>>, vector<1x128xf32>
      %138 = vector.broadcast %137 : vector<1x128xf32> to vector<4x128xf32>
      %139 = arith.addf %136, %138 : vector<4x128xf32>
      %c0_79 = arith.constant 0 : index
      %c0_80 = arith.constant 0 : index
      %140 = vector.load %arg5[%c0_79, %c0_80] : memref<4x128xf32, #tpu.memory_space<vmem>>, vector<4x128xf32>
      %c0_81 = arith.constant 0 : index
      %c0_82 = arith.constant 0 : index
      %141 = vector.load %arg25[%c0_81, %c0_82] : memref<8x128xf32, #tpu.memory_space<vmem>>, vector<4x128xf32>
      tpu.vector_store %arg25[%c0_81, %c0_82], %140 {strides = array<i32>} : memref<8x128xf32, #tpu.memory_space<vmem>>, vector<4x128xf32>,
      %c4 = arith.constant 4 : index
      %c0_83 = arith.constant 0 : index
      %142 = vector.load %arg25[%c4, %c0_83] : memref<8x128xf32, #tpu.memory_space<vmem>>, vector<4x128xf32>
      tpu.vector_store %arg25[%c4, %c0_83], %139 {strides = array<i32>} : memref<8x128xf32, #tpu.memory_space<vmem>>, vector<4x128xf32>,
      %c0_84 = arith.constant 0 : index
      %c0_85 = arith.constant 0 : index
      %143 = vector.load %arg25[%c0_84, %c0_85] : memref<8x128xf32, #tpu.memory_space<vmem>>, vector<8x128xf32>
      %c0_86 = arith.constant 0 : index
      %c0_87 = arith.constant 0 : index
      %144 = vector.load %arg6[%c0_86, %c0_87] : memref<8x128xf32, #tpu.memory_space<vmem>>, vector<8x128xf32>
      %145 = arith.addf %143, %144 : vector<8x128xf32>
      %c0_88 = arith.constant 0 : index
      %c0_89 = arith.constant 0 : index
      %146 = vector.load %arg25[%c0_88, %c0_89] : memref<8x128xf32, #tpu.memory_space<vmem>>, vector<8x128xf32>
      tpu.vector_store %arg25[%c0_88, %c0_89], %145 {strides = array<i32>} : memref<8x128xf32, #tpu.memory_space<vmem>>, vector<8x128xf32>,
    } else {
    }
    %c0 = arith.constant 0 : index
    %c0_1 = arith.constant 0 : index
    %3 = vector.load %arg25[%c0, %c0_1] : memref<8x128xf32, #tpu.memory_space<vmem>>, vector<8x128xf32>
    %c0_2 = arith.constant 0 : index
    %c0_3 = arith.constant 0 : index
    %c0_4 = arith.constant 0 : index
    %4 = vector.load %arg7[%c0_2, %c0_3, %c0_4] : memref<1x1x128xf32, #tpu.memory_space<vmem>>, vector<1x1x128xf32>
    %5 = vector.shape_cast %4 : vector<1x1x128xf32> to vector<1x128xf32>
    %c0_5 = arith.constant 0 : index
    %c0_6 = arith.constant 0 : index
    %c0_7 = arith.constant 0 : index
    %6 = vector.load %arg8[%c0_5, %c0_6, %c0_7] : memref<1x1x128xf32, #tpu.memory_space<vmem>>, vector<1x1x128xf32>
    %7 = vector.shape_cast %6 : vector<1x1x128xf32> to vector<1x128xf32>
    %cst = arith.constant dense<0.000000e+00> : vector<8xf32>
    %8 = vector.multi_reduction <add>, %3, %cst [1] : vector<8x128xf32> to vector<8xf32>
    %9 = vector.shape_cast %8 : vector<8xf32> to vector<8x1xf32>
    %cst_8 = arith.constant 3.125000e-02 : f32
    %10 = vector.broadcast %cst_8 : f32 to vector<8x1xf32>
    %11 = arith.mulf %9, %10 : vector<8x1xf32>
    %12 = arith.mulf %3, %3 : vector<8x128xf32>
    %cst_9 = arith.constant dense<0.000000e+00> : vector<8xf32>
    %13 = vector.multi_reduction <add>, %12, %cst_9 [1] : vector<8x128xf32> to vector<8xf32>
    %14 = vector.shape_cast %13 : vector<8xf32> to vector<8x1xf32>
    %cst_10 = arith.constant 3.125000e-02 : f32
    %15 = vector.broadcast %cst_10 : f32 to vector<8x1xf32>
    %16 = arith.mulf %14, %15 : vector<8x1xf32>
    %17 = arith.mulf %11, %11 : vector<8x1xf32>
    %18 = arith.subf %16, %17 : vector<8x1xf32>
    %19 = vector.broadcast %11 : vector<8x1xf32> to vector<8x128xf32>
    %20 = arith.subf %3, %19 : vector<8x128xf32>
    %cst_11 = arith.constant 9.99999974E-6 : f32
    %21 = vector.broadcast %cst_11 : f32 to vector<8x1xf32>
    %22 = arith.addf %18, %21 : vector<8x1xf32>
    %23 = math.rsqrt %22 : vector<8x1xf32>
    %24 = vector.broadcast %23 : vector<8x1xf32> to vector<8x128xf32>
    %25 = arith.mulf %20, %24 : vector<8x128xf32>
    %26 = vector.broadcast %5 : vector<1x128xf32> to vector<8x128xf32>
    %27 = arith.mulf %25, %26 : vector<8x128xf32>
    %28 = vector.broadcast %7 : vector<1x128xf32> to vector<8x128xf32>
    %29 = arith.addf %27, %28 : vector<8x128xf32>
    %30 = arith.truncf %29 : vector<8x128xf32> to vector<8x128xbf16>
    %31 = vector.shape_cast %30 : vector<8x128xbf16> to vector<1x8x128xbf16>
    %32 = vector.shape_cast %31 : vector<1x8x128xbf16> to vector<1x8x128xbf16>
    %33 = vector.broadcast %32 : vector<1x8x128xbf16> to vector<2x8x128xbf16>
    %c0_12 = arith.constant 0 : index
    %c0_13 = arith.constant 0 : index
    %c0_14 = arith.constant 0 : index
    %c0_15 = arith.constant 0 : index
    %34 = vector.load %arg9[%c0_12, %c0_13, %c0_14, %c0_15] : memref<1x2x128x64xbf16, #tpu.memory_space<vmem>>, vector<1x2x128x64xbf16>
    %35 = vector.shape_cast %34 : vector<1x2x128x64xbf16> to vector<2x128x64xbf16>
    "tpu.trace_start"() <{level = 10 : i32, message = "hnd,hdf->hnf"}> : () -> ()
    %cst_16 = arith.constant dense<0.000000e+00> : vector<2x8x64xf32>
    %36 = tpu.matmul %33, %35, %cst_16 {dimension_numbers = #tpu.dot_dimension_numbers<[2], [1], [1], [2], [0, 0, 0, 1, 1, 2], [0], [0]>} : vector<2x8x128xbf16>, vector<2x128x64xbf16>, vector<2x8x64xf32> -> vector<2x8x64xf32>
    "tpu.trace_stop"() : () -> ()
    %c0_17 = arith.constant 0 : index
    %c0_18 = arith.constant 0 : index
    %c0_19 = arith.constant 0 : index
    %c0_20 = arith.constant 0 : index
    %37 = vector.load %arg10[%c0_17, %c0_18, %c0_19, %c0_20] : memref<1x2x128x64xbf16, #tpu.memory_space<vmem>>, vector<1x2x128x64xbf16>
    %38 = vector.shape_cast %37 : vector<1x2x128x64xbf16> to vector<2x128x64xbf16>
    "tpu.trace_start"() <{level = 10 : i32, message = "hnd,hdf->hnf"}> : () -> ()
    %cst_21 = arith.constant dense<0.000000e+00> : vector<2x8x64xf32>
    %39 = tpu.matmul %33, %38, %cst_21 {dimension_numbers = #tpu.dot_dimension_numbers<[2], [1], [1], [2], [0, 0, 0, 1, 1, 2], [0], [0]>} : vector<2x8x128xbf16>, vector<2x128x64xbf16>, vector<2x8x64xf32> -> vector<2x8x64xf32>
    "tpu.trace_stop"() : () -> ()
    %c0_22 = arith.constant 0 : index
    %c0_23 = arith.constant 0 : index
    %c0_24 = arith.constant 0 : index
    %c0_25 = arith.constant 0 : index
    %40 = vector.load %arg11[%c0_22, %c0_23, %c0_24, %c0_25] : memref<1x2x128x64xbf16, #tpu.memory_space<vmem>>, vector<1x2x128x64xbf16>
    %41 = vector.shape_cast %40 : vector<1x2x128x64xbf16> to vector<2x128x64xbf16>
    "tpu.trace_start"() <{level = 10 : i32, message = "hnd,hdf->hnf"}> : () -> ()
    %cst_26 = arith.constant dense<0.000000e+00> : vector<2x8x64xf32>
    %42 = tpu.matmul %33, %41, %cst_26 {dimension_numbers = #tpu.dot_dimension_numbers<[2], [1], [1], [2], [0, 0, 0, 1, 1, 2], [0], [0]>} : vector<2x8x128xbf16>, vector<2x128x64xbf16>, vector<2x8x64xf32> -> vector<2x8x64xf32>
    "tpu.trace_stop"() : () -> ()
    %43 = arith.truncf %36 : vector<2x8x64xf32> to vector<2x8x64xbf16>
    %44 = arith.truncf %39 : vector<2x8x64xf32> to vector<2x8x64xbf16>
    "tpu.trace_start"() <{level = 10 : i32, message = "hnf,hmf->hnm"}> : () -> ()
    %cst_27 = arith.constant dense<0.000000e+00> : vector<2x8x8xf32>
    %45 = tpu.matmul %43, %44, %cst_27 {dimension_numbers = #tpu.dot_dimension_numbers<[2], [2], [1], [1], [0, 0, 0, 1, 1, 1], [0], [0]>} : vector<2x8x64xbf16>, vector<2x8x64xbf16>, vector<2x8x8xf32> -> vector<2x8x8xf32>
    "tpu.trace_stop"() : () -> ()
    %cst_28 = arith.constant dense<0xFF800000> : vector<2x8xf32>
    %46 = vector.multi_reduction <maximumf>, %45, %cst_28 [2] : vector<2x8x8xf32> to vector<2x8xf32>
    %47 = vector.shape_cast %46 : vector<2x8xf32> to vector<2x8x1xf32>
    %48 = vector.broadcast %47 : vector<2x8x1xf32> to vector<2x8x8xf32>
    %49 = arith.subf %45, %48 : vector<2x8x8xf32>
    %50 = math.exp %49 : vector<2x8x8xf32>
    %cst_29 = arith.constant dense<0.000000e+00> : vector<2x8xf32>
    %51 = vector.multi_reduction <add>, %50, %cst_29 [2] : vector<2x8x8xf32> to vector<2x8xf32>
    %52 = vector.shape_cast %51 : vector<2x8xf32> to vector<2x8x1xf32>
    %53 = tpu.reciprocal %52 {approx = true} : vector<2x8x1xf32> -> vector<2x8x1xf32>
    %54 = vector.broadcast %53 : vector<2x8x1xf32> to vector<2x8x8xf32>
    %55 = arith.mulf %50, %54 : vector<2x8x8xf32>
    %56 = arith.truncf %55 : vector<2x8x8xf32> to vector<2x8x8xbf16>
    %57 = arith.truncf %42 : vector<2x8x64xf32> to vector<2x8x64xbf16>
    "tpu.trace_start"() <{level = 10 : i32, message = "hnm,hmf->hnf"}> : () -> ()
    %cst_30 = arith.constant dense<0.000000e+00> : vector<2x8x64xf32>
    %58 = tpu.matmul %56, %57, %cst_30 {dimension_numbers = #tpu.dot_dimension_numbers<[2], [1], [1], [2], [0, 0, 0, 1, 1, 2], [0], [0]>} : vector<2x8x8xbf16>, vector<2x8x64xbf16>, vector<2x8x64xf32> -> vector<2x8x64xf32>
    "tpu.trace_stop"() : () -> ()
    %59 = arith.truncf %58 : vector<2x8x64xf32> to vector<2x8x64xbf16>
    %c0_31 = arith.constant 0 : index
    %c0_32 = arith.constant 0 : index
    %c0_33 = arith.constant 0 : index
    %c0_34 = arith.constant 0 : index
    %60 = vector.load %arg12[%c0_31, %c0_32, %c0_33, %c0_34] : memref<1x2x64x128xbf16, #tpu.memory_space<vmem>>, vector<1x2x64x128xbf16>
    %61 = vector.shape_cast %60 : vector<1x2x64x128xbf16> to vector<2x64x128xbf16>
    "tpu.trace_start"() <{level = 10 : i32, message = "hnf,hfd->hnd"}> : () -> ()
    %cst_35 = arith.constant dense<0.000000e+00> : vector<2x8x128xf32>
    %62 = tpu.matmul %59, %61, %cst_35 {dimension_numbers = #tpu.dot_dimension_numbers<[2], [1], [1], [2], [0, 0, 0, 1, 1, 2], [0], [0]>} : vector<2x8x64xbf16>, vector<2x64x128xbf16>, vector<2x8x128xf32> -> vector<2x8x128xf32>
    "tpu.trace_stop"() : () -> ()
    %63 = vector.extract_strided_slice %62 {offsets = [0, 0, 0], sizes = [1, 8, 128], strides = [1, 1, 1]} : vector<2x8x128xf32> to vector<1x8x128xf32>
    %64 = vector.shape_cast %63 : vector<1x8x128xf32> to vector<8x128xf32>
    %65 = vector.extract_strided_slice %62 {offsets = [1, 0, 0], sizes = [1, 8, 128], strides = [1, 1, 1]} : vector<2x8x128xf32> to vector<1x8x128xf32>
    %66 = vector.shape_cast %65 : vector<1x8x128xf32> to vector<8x128xf32>
    %67 = arith.addf %64, %66 : vector<8x128xf32>
    %68 = arith.addf %3, %67 : vector<8x128xf32>
    %c0_36 = arith.constant 0 : index
    %c0_37 = arith.constant 0 : index
    %c0_38 = arith.constant 0 : index
    %69 = vector.load %arg13[%c0_36, %c0_37, %c0_38] : memref<1x1x128xf32, #tpu.memory_space<vmem>>, vector<1x1x128xf32>
    %70 = vector.shape_cast %69 : vector<1x1x128xf32> to vector<1x128xf32>
    %71 = vector.broadcast %70 : vector<1x128xf32> to vector<8x128xf32>
    %72 = arith.addf %68, %71 : vector<8x128xf32>
    %c0_39 = arith.constant 0 : index
    %c0_40 = arith.constant 0 : index
    %c0_41 = arith.constant 0 : index
    %73 = vector.load %arg14[%c0_39, %c0_40, %c0_41] : memref<1x1x128xf32, #tpu.memory_space<vmem>>, vector<1x1x128xf32>
    %74 = vector.shape_cast %73 : vector<1x1x128xf32> to vector<1x128xf32>
    %c0_42 = arith.constant 0 : index
    %c0_43 = arith.constant 0 : index
    %c0_44 = arith.constant 0 : index
    %75 = vector.load %arg15[%c0_42, %c0_43, %c0_44] : memref<1x1x128xf32, #tpu.memory_space<vmem>>, vector<1x1x128xf32>
    %76 = vector.shape_cast %75 : vector<1x1x128xf32> to vector<1x128xf32>
    %cst_45 = arith.constant dense<0.000000e+00> : vector<8xf32>
    %77 = vector.multi_reduction <add>, %72, %cst_45 [1] : vector<8x128xf32> to vector<8xf32>
    %78 = vector.shape_cast %77 : vector<8xf32> to vector<8x1xf32>
    %cst_46 = arith.constant 3.125000e-02 : f32
    %79 = vector.broadcast %cst_46 : f32 to vector<8x1xf32>
    %80 = arith.mulf %78, %79 : vector<8x1xf32>
    %81 = arith.mulf %72, %72 : vector<8x128xf32>
    %cst_47 = arith.constant dense<0.000000e+00> : vector<8xf32>
    %82 = vector.multi_reduction <add>, %81, %cst_47 [1] : vector<8x128xf32> to vector<8xf32>
    %83 = vector.shape_cast %82 : vector<8xf32> to vector<8x1xf32>
    %cst_48 = arith.constant 3.125000e-02 : f32
    %84 = vector.broadcast %cst_48 : f32 to vector<8x1xf32>
    %85 = arith.mulf %83, %84 : vector<8x1xf32>
    %86 = arith.mulf %80, %80 : vector<8x1xf32>
    %87 = arith.subf %85, %86 : vector<8x1xf32>
    %88 = vector.broadcast %80 : vector<8x1xf32> to vector<8x128xf32>
    %89 = arith.subf %72, %88 : vector<8x128xf32>
    %cst_49 = arith.constant 9.99999974E-6 : f32
    %90 = vector.broadcast %cst_49 : f32 to vector<8x1xf32>
    %91 = arith.addf %87, %90 : vector<8x1xf32>
    %92 = math.rsqrt %91 : vector<8x1xf32>
    %93 = vector.broadcast %92 : vector<8x1xf32> to vector<8x128xf32>
    %94 = arith.mulf %89, %93 : vector<8x128xf32>
    %95 = vector.broadcast %74 : vector<1x128xf32> to vector<8x128xf32>
    %96 = arith.mulf %94, %95 : vector<8x128xf32>
    %97 = vector.broadcast %76 : vector<1x128xf32> to vector<8x128xf32>
    %98 = arith.addf %96, %97 : vector<8x128xf32>
    %99 = arith.truncf %98 : vector<8x128xf32> to vector<8x128xbf16>
    %c0_50 = arith.constant 0 : index
    %c0_51 = arith.constant 0 : index
    %c0_52 = arith.constant 0 : index
    %100 = vector.load %arg16[%c0_50, %c0_51, %c0_52] : memref<1x128x128xbf16, #tpu.memory_space<vmem>>, vector<1x128x128xbf16>
    %101 = vector.shape_cast %100 : vector<1x128x128xbf16> to vector<128x128xbf16>
    %cst_53 = arith.constant dense<0.000000e+00> : vector<8x128xf32>
    %102 = tpu.matmul %99, %101, %cst_53 {dimension_numbers = #tpu.dot_dimension_numbers<[1], [0], [0], [1], [0, 0, 1, 1], [], []>} : vector<8x128xbf16>, vector<128x128xbf16>, vector<8x128xf32> -> vector<8x128xf32>
    %c0_54 = arith.constant 0 : index
    %c0_55 = arith.constant 0 : index
    %c0_56 = arith.constant 0 : index
    %103 = vector.load %arg17[%c0_54, %c0_55, %c0_56] : memref<1x1x128xf32, #tpu.memory_space<vmem>>, vector<1x1x128xf32>
    %104 = vector.shape_cast %103 : vector<1x1x128xf32> to vector<1x128xf32>
    %105 = vector.broadcast %104 : vector<1x128xf32> to vector<8x128xf32>
    %106 = arith.addf %102, %105 : vector<8x128xf32>
    %107 = arith.mulf %106, %106 : vector<8x128xf32>
    %108 = arith.mulf %106, %107 : vector<8x128xf32>
    %cst_57 = arith.constant 4.471500e-02 : f32
    %109 = vector.broadcast %cst_57 : f32 to vector<8x128xf32>
    %110 = arith.mulf %109, %108 : vector<8x128xf32>
    %111 = arith.addf %106, %110 : vector<8x128xf32>
    %cst_58 = arith.constant 0.797884583 : f32
    %112 = vector.broadcast %cst_58 : f32 to vector<8x128xf32>
    %113 = arith.mulf %112, %111 : vector<8x128xf32>
    %114 = math.tanh %113 : vector<8x128xf32>
    %cst_59 = arith.constant 1.000000e+00 : f32
    %115 = vector.broadcast %cst_59 : f32 to vector<8x128xf32>
    %116 = arith.addf %115, %114 : vector<8x128xf32>
    %cst_60 = arith.constant 5.000000e-01 : f32
    %117 = vector.broadcast %cst_60 : f32 to vector<8x128xf32>
    %118 = arith.mulf %117, %116 : vector<8x128xf32>
    %119 = arith.mulf %106, %118 : vector<8x128xf32>
    %120 = arith.truncf %119 : vector<8x128xf32> to vector<8x128xbf16>
    %c0_61 = arith.constant 0 : index
    %c0_62 = arith.constant 0 : index
    %c0_63 = arith.constant 0 : index
    %121 = vector.load %arg18[%c0_61, %c0_62, %c0_63] : memref<1x128x128xbf16, #tpu.memory_space<vmem>>, vector<1x128x128xbf16>
    %122 = vector.shape_cast %121 : vector<1x128x128xbf16> to vector<128x128xbf16>
    %cst_64 = arith.constant dense<0.000000e+00> : vector<8x128xf32>
    %123 = tpu.matmul %120, %122, %cst_64 {dimension_numbers = #tpu.dot_dimension_numbers<[1], [0], [0], [1], [0, 0, 1, 1], [], []>} : vector<8x128xbf16>, vector<128x128xbf16>, vector<8x128xf32> -> vector<8x128xf32>
    %124 = arith.addf %72, %123 : vector<8x128xf32>
    %c0_65 = arith.constant 0 : index
    %c0_66 = arith.constant 0 : index
    %c0_67 = arith.constant 0 : index
    %125 = vector.load %arg19[%c0_65, %c0_66, %c0_67] : memref<1x1x128xf32, #tpu.memory_space<vmem>>, vector<1x1x128xf32>
    %126 = vector.shape_cast %125 : vector<1x1x128xf32> to vector<1x128xf32>
    %127 = vector.broadcast %126 : vector<1x128xf32> to vector<8x128xf32>
    %128 = arith.addf %124, %127 : vector<8x128xf32>
    %c0_68 = arith.constant 0 : index
    %c0_69 = arith.constant 0 : index
    %129 = vector.load %arg25[%c0_68, %c0_69] : memref<8x128xf32, #tpu.memory_space<vmem>>, vector<8x128xf32>
    tpu.vector_store %arg25[%c0_68, %c0_69], %128 {strides = array<i32>} : memref<8x128xf32, #tpu.memory_space<vmem>>, vector<8x128xf32>,
    %c1_i32 = arith.constant 1 : i32
    %130 = arith.cmpi eq, %arg1, %c1_i32 : i32
    %131 = arith.extui %130 : i1 to i32
    %c0_i32_70 = arith.constant 0 : i32
    %132 = arith.cmpi ne, %131, %c0_i32_70 : i32
    scf.if %132 {
      %133 = vector.extract_strided_slice %128 {offsets = [0, 0], sizes = [4, 128], strides = [1, 1]} : vector<8x128xf32> to vector<4x128xf32>
      %c0_71 = arith.constant 0 : index
      %c0_72 = arith.constant 0 : index
      %134 = vector.load %arg20[%c0_71, %c0_72] : memref<1x128xf32, #tpu.memory_space<vmem>>, vector<1x128xf32>
      %c0_73 = arith.constant 0 : index
      %c0_74 = arith.constant 0 : index
      %135 = vector.load %arg21[%c0_73, %c0_74] : memref<1x128xf32, #tpu.memory_space<vmem>>, vector<1x128xf32>
      %cst_75 = arith.constant dense<0.000000e+00> : vector<4xf32>
      %136 = vector.multi_reduction <add>, %133, %cst_75 [1] : vector<4x128xf32> to vector<4xf32>
      %137 = vector.shape_cast %136 : vector<4xf32> to vector<4x1xf32>
      %cst_76 = arith.constant 3.125000e-02 : f32
      %138 = vector.broadcast %cst_76 : f32 to vector<4x1xf32>
      %139 = arith.mulf %137, %138 : vector<4x1xf32>
      %140 = arith.mulf %133, %133 : vector<4x128xf32>
      %cst_77 = arith.constant dense<0.000000e+00> : vector<4xf32>
      %141 = vector.multi_reduction <add>, %140, %cst_77 [1] : vector<4x128xf32> to vector<4xf32>
      %142 = vector.shape_cast %141 : vector<4xf32> to vector<4x1xf32>
      %cst_78 = arith.constant 3.125000e-02 : f32
      %143 = vector.broadcast %cst_78 : f32 to vector<4x1xf32>
      %144 = arith.mulf %142, %143 : vector<4x1xf32>
      %145 = arith.mulf %139, %139 : vector<4x1xf32>
      %146 = arith.subf %144, %145 : vector<4x1xf32>
      %147 = vector.broadcast %139 : vector<4x1xf32> to vector<4x128xf32>
      %148 = arith.subf %133, %147 : vector<4x128xf32>
      %cst_79 = arith.constant 9.99999974E-6 : f32
      %149 = vector.broadcast %cst_79 : f32 to vector<4x1xf32>
      %150 = arith.addf %146, %149 : vector<4x1xf32>
      %151 = math.rsqrt %150 : vector<4x1xf32>
      %152 = vector.broadcast %151 : vector<4x1xf32> to vector<4x128xf32>
      %153 = arith.mulf %148, %152 : vector<4x128xf32>
      %154 = vector.broadcast %134 : vector<1x128xf32> to vector<4x128xf32>
      %155 = arith.mulf %153, %154 : vector<4x128xf32>
      %156 = vector.broadcast %135 : vector<1x128xf32> to vector<4x128xf32>
      %157 = arith.addf %155, %156 : vector<4x128xf32>
      %158 = arith.truncf %157 : vector<4x128xf32> to vector<4x128xbf16>
      %c0_80 = arith.constant 0 : index
      %c0_81 = arith.constant 0 : index
      %159 = vector.load %arg22[%c0_80, %c0_81] : memref<128x64xbf16, #tpu.memory_space<vmem>>, vector<128x64xbf16>
      %cst_82 = arith.constant dense<0.000000e+00> : vector<4x64xf32>
      %160 = tpu.matmul %158, %159, %cst_82 {dimension_numbers = #tpu.dot_dimension_numbers<[1], [0], [0], [1], [0, 0, 1, 1], [], []>} : vector<4x128xbf16>, vector<128x64xbf16>, vector<4x64xf32> -> vector<4x64xf32>
      %c0_83 = arith.constant 0 : index
      %c0_84 = arith.constant 0 : index
      %161 = vector.load %arg23[%c0_83, %c0_84] : memref<1x64xf32, #tpu.memory_space<vmem>>, vector<1x64xf32>
      %162 = vector.broadcast %161 : vector<1x64xf32> to vector<4x64xf32>
      %163 = arith.addf %160, %162 : vector<4x64xf32>
      %164 = vector.shape_cast %163 : vector<4x64xf32> to vector<1x4x64xf32>
      %c0_85 = arith.constant 0 : index
      %c0_86 = arith.constant 0 : index
      %c0_87 = arith.constant 0 : index
      %165 = vector.load %arg24[%c0_85, %c0_86, %c0_87] : memref<1x4x64xf32, #tpu.memory_space<vmem>>, vector<1x4x64xf32>
      tpu.vector_store %arg24[%c0_85, %c0_86, %c0_87], %164 {strides = array<i32>} : memref<1x4x64xf32, #tpu.memory_space<vmem>>, vector<1x4x64xf32>,
    } else {
    }
    return
  }
  func.func @transform_0(%arg0: i32, %arg1: i32) -> (i32, i32, i32) {
    %c0_i32 = arith.constant 0 : i32
    %c0_i32_0 = arith.constant 0 : i32
    %c0_i32_1 = arith.constant 0 : i32
    return %arg0, %c0_i32, %c0_i32_0 : i32, i32, i32
  }
  func.func @transform_1(%arg0: i32, %arg1: i32) -> (i32, i32) {
    %c0_i32 = arith.constant 0 : i32
    %c0_i32_0 = arith.constant 0 : i32
    %c0_i32_1 = arith.constant 0 : i32
    return %c0_i32, %c0_i32_0 : i32, i32
  }
  func.func @transform_2(%arg0: i32, %arg1: i32) -> (i32, i32) {
    %c0_i32 = arith.constant 0 : i32
    %c0_i32_0 = arith.constant 0 : i32
    %c0_i32_1 = arith.constant 0 : i32
    return %c0_i32, %c0_i32_0 : i32, i32
  }
  func.func @transform_3(%arg0: i32, %arg1: i32) -> (i32, i32) {
    %c0_i32 = arith.constant 0 : i32
    %c0_i32_0 = arith.constant 0 : i32
    %c0_i32_1 = arith.constant 0 : i32
    return %c0_i32, %c0_i32_0 : i32, i32
  }
  func.func @transform_4(%arg0: i32, %arg1: i32) -> (i32, i32) {
    %c0_i32 = arith.constant 0 : i32
    %c0_i32_0 = arith.constant 0 : i32
    %c0_i32_1 = arith.constant 0 : i32
    return %c0_i32, %c0_i32_0 : i32, i32
  }
  func.func @transform_5(%arg0: i32, %arg1: i32) -> (i32, i32, i32) {
    %c0_i32 = arith.constant 0 : i32
    %c0_i32_0 = arith.constant 0 : i32
    %c0_i32_1 = arith.constant 0 : i32
    return %arg1, %c0_i32, %c0_i32_0 : i32, i32, i32
  }
  func.func @transform_6(%arg0: i32, %arg1: i32) -> (i32, i32, i32) {
    %c0_i32 = arith.constant 0 : i32
    %c0_i32_0 = arith.constant 0 : i32
    %c0_i32_1 = arith.constant 0 : i32
    return %arg1, %c0_i32, %c0_i32_0 : i32, i32, i32
  }
  func.func @transform_7(%arg0: i32, %arg1: i32) -> (i32, i32, i32, i32) {
    %c0_i32 = arith.constant 0 : i32
    %c0_i32_0 = arith.constant 0 : i32
    %c0_i32_1 = arith.constant 0 : i32
    %c0_i32_2 = arith.constant 0 : i32
    return %arg1, %c0_i32, %c0_i32_0, %c0_i32_1 : i32, i32, i32, i32
  }
  func.func @transform_8(%arg0: i32, %arg1: i32) -> (i32, i32, i32, i32) {
    %c0_i32 = arith.constant 0 : i32
    %c0_i32_0 = arith.constant 0 : i32
    %c0_i32_1 = arith.constant 0 : i32
    %c0_i32_2 = arith.constant 0 : i32
    return %arg1, %c0_i32, %c0_i32_0, %c0_i32_1 : i32, i32, i32, i32
  }
  func.func @transform_9(%arg0: i32, %arg1: i32) -> (i32, i32, i32, i32) {
    %c0_i32 = arith.constant 0 : i32
    %c0_i32_0 = arith.constant 0 : i32
    %c0_i32_1 = arith.constant 0 : i32
    %c0_i32_2 = arith.constant 0 : i32
    return %arg1, %c0_i32, %c0_i32_0, %c0_i32_1 : i32, i32, i32, i32
  }
  func.func @transform_10(%arg0: i32, %arg1: i32) -> (i32, i32, i32, i32) {
    %c0_i32 = arith.constant 0 : i32
    %c0_i32_0 = arith.constant 0 : i32
    %c0_i32_1 = arith.constant 0 : i32
    %c0_i32_2 = arith.constant 0 : i32
    return %arg1, %c0_i32, %c0_i32_0, %c0_i32_1 : i32, i32, i32, i32
  }
  func.func @transform_11(%arg0: i32, %arg1: i32) -> (i32, i32, i32) {
    %c0_i32 = arith.constant 0 : i32
    %c0_i32_0 = arith.constant 0 : i32
    %c0_i32_1 = arith.constant 0 : i32
    return %arg1, %c0_i32, %c0_i32_0 : i32, i32, i32
  }
  func.func @transform_12(%arg0: i32, %arg1: i32) -> (i32, i32, i32) {
    %c0_i32 = arith.constant 0 : i32
    %c0_i32_0 = arith.constant 0 : i32
    %c0_i32_1 = arith.constant 0 : i32
    return %arg1, %c0_i32, %c0_i32_0 : i32, i32, i32
  }
  func.func @transform_13(%arg0: i32, %arg1: i32) -> (i32, i32, i32) {
    %c0_i32 = arith.constant 0 : i32
    %c0_i32_0 = arith.constant 0 : i32
    %c0_i32_1 = arith.constant 0 : i32
    return %arg1, %c0_i32, %c0_i32_0 : i32, i32, i32
  }
  func.func @transform_14(%arg0: i32, %arg1: i32) -> (i32, i32, i32) {
    %c0_i32 = arith.constant 0 : i32
    %c0_i32_0 = arith.constant 0 : i32
    %c0_i32_1 = arith.constant 0 : i32
    return %arg1, %c0_i32, %c0_i32_0 : i32, i32, i32
  }
  func.func @transform_15(%arg0: i32, %arg1: i32) -> (i32, i32, i32) {
    %c0_i32 = arith.constant 0 : i32
    %c0_i32_0 = arith.constant 0 : i32
    %c0_i32_1 = arith.constant 0 : i32
    return %arg1, %c0_i32, %c0_i32_0 : i32, i32, i32
  }
  func.func @transform_16(%arg0: i32, %arg1: i32) -> (i32, i32, i32) {
    %c0_i32 = arith.constant 0 : i32
    %c0_i32_0 = arith.constant 0 : i32
    %c0_i32_1 = arith.constant 0 : i32
    return %arg1, %c0_i32, %c0_i32_0 : i32, i32, i32
  }
  func.func @transform_17(%arg0: i32, %arg1: i32) -> (i32, i32, i32) {
    %c0_i32 = arith.constant 0 : i32
    %c0_i32_0 = arith.constant 0 : i32
    %c0_i32_1 = arith.constant 0 : i32
    return %arg1, %c0_i32, %c0_i32_0 : i32, i32, i32
  }
  func.func @transform_18(%arg0: i32, %arg1: i32) -> (i32, i32) {
    %c0_i32 = arith.constant 0 : i32
    %c0_i32_0 = arith.constant 0 : i32
    %c0_i32_1 = arith.constant 0 : i32
    return %c0_i32, %c0_i32_0 : i32, i32
  }
  func.func @transform_19(%arg0: i32, %arg1: i32) -> (i32, i32) {
    %c0_i32 = arith.constant 0 : i32
    %c0_i32_0 = arith.constant 0 : i32
    %c0_i32_1 = arith.constant 0 : i32
    return %c0_i32, %c0_i32_0 : i32, i32
  }
  func.func @transform_20(%arg0: i32, %arg1: i32) -> (i32, i32) {
    %c0_i32 = arith.constant 0 : i32
    %c0_i32_0 = arith.constant 0 : i32
    %c0_i32_1 = arith.constant 0 : i32
    return %c0_i32, %c0_i32_0 : i32, i32
  }
  func.func @transform_21(%arg0: i32, %arg1: i32) -> (i32, i32) {
    %c0_i32 = arith.constant 0 : i32
    %c0_i32_0 = arith.constant 0 : i32
    %c0_i32_1 = arith.constant 0 : i32
    return %c0_i32, %c0_i32_0 : i32, i32
  }
  func.func @transform_22(%arg0: i32, %arg1: i32) -> (i32, i32, i32) {
    %c0_i32 = arith.constant 0 : i32
    %c0_i32_0 = arith.constant 0 : i32
    %c0_i32_1 = arith.constant 0 : i32
    return %arg0, %c0_i32, %c0_i32_0 : i32, i32, i32
  }
}

</mosaic_0001>

<llo_original>
// kernel: tokenpose_b_forward.4
$region0: #{tokenpose_b_forward.4}
  #allocation0 [shape = 'u32[]', space=smem, size = 0x4, offset = 0x4, fixed_abs, tag = 'smem constant byte address 0x4 - core index']
  #allocation1 [shape = 'u32[144,128]{1,0:T(1,128)}', space=vmem, size = 0x12000, scoped, tag = 'internal scratch']
  %s0 = inlined_call_operand.vmem [shape: f32[2,5,5,8], index: 0, kind: input, shape index: {}]
  %s1 = inlined_call_operand.vmem [shape: f32[2,5,5,8], index: 1, kind: input, shape index: {}]
  %s2 = inlined_call_operand.vmem [shape: f32[2,5,5,8], index: 2, kind: input, shape index: {}]
  %s3 = inlined_call_operand.vmem [shape: f32[2,5,5,8], index: 3, kind: input, shape index: {}]
  %s4 = inlined_call_operand.vmem [shape: bf16[72,8], index: 4, kind: input, shape index: {}]
  %s5 = inlined_call_operand.vmem [shape: f32[1,8], index: 5, kind: input, shape index: {}]
  %s6 = inlined_call_operand.vmem [shape: f32[1,8], index: 6, kind: input, shape index: {}]
  %s7 = inlined_call_operand.vmem [shape: f32[2,4,4,8], index: 7, kind: output, shape index: {}]
  %s8 = sld [smem:[#allocation0]]
  $region61: #{tokenpose_b_forward.4} parent=0
    _
  %s10 = ssub.s32 1, %s8
  %s11 = scalar_select 0, %s10, %s8
  loop: start=0, step=1, limit=4
  $region2: #{tokenpose_b_forward.4} parent=0 // loop_pre_header
    _
  $region3: #{tokenpose_b_forward.4} parent=0 // loop_header
    %s13 = sphi 0, %s17
    %p14 = scmp.ge.s32.totalorder %s13, 4
    %s23 = sphi 0, %s25
    %s26 = sphi 0, %s23
    %s27 = sphi 0, %s26
    %s43 = sphi 0, %s27
    %s49 = sphi 0, %s51
    %s52 = sphi 0, %s49
    %s53 = sphi 0, %s52
    %s69 = sphi 0, %s53
    %s75 = sphi 0, %s77
    %s78 = sphi 0, %s75
    %s79 = sphi 0, %s78
    %s95 = sphi 0, %s79
    %s101 = sphi 0, %s103
    %s104 = sphi 0, %s101
    %s105 = sphi 0, %s104
    %s121 = sphi 0, %s105
    %s125 = sphi 0, %s125
    %s127 = sphi 0, %s125
    %s128 = sphi 0, %s127
    %s142 = sphi 0, %s128
    %s146 = sphi 0, %s146
    %s148 = sphi 0, %s146
    %s149 = sphi 0, %s148
    %s163 = sphi 0, %s149
    %s167 = sphi 0, %s167
    %s169 = sphi 0, %s167
    %s170 = sphi 0, %s169
    %s184 = sphi 0, %s170
    %s190 = sphi 0, %s192
    %s193 = sphi 0, %s190
    %s194 = sphi 0, %s193
    %s210 = sphi 0, %s194
  $region4: #{tokenpose_b_forward.4} parent=0 // loop_header_branch
    %16 = sbr.rel (%p14) target = $region8
  $region5: #{tokenpose_b_forward.4} parent=0 // loop_body
    %s18 = ssub.s32 %s13, 1
    %s19 = ssub.s32 %s13, 2
    %s20 = sadd.s32 %s13, 1
    %s21 = ssub.s32 %s13, %s20
    %p22 = scmp.eq.s32.totalorder %s21, 0
    %s24 = sadd.s32 %s23, 1
    %s25 = scalar_select %p22, %s23, %s24
    %p28 = pneg %p22
    %p29 = scmp.eq.s32.totalorder %s13, 1
    %p30 = por %p28, %p29
    %p31 = scmp.ne.s32.totalorder %s23, %s26
    %p32 = scmp.eq.s32.totalorder %s13, 0
    %p33 = por %p31, %p32
    %p34 = scmp.ne.s32.totalorder %s23, %s26
    %p35 = scmp.eq.s32.totalorder %s18, 1
    %p36 = por %p34, %p35
    %p37 = scmp.ne.s32.totalorder %s26, %s27
    %p38 = scmp.eq.s32.totalorder %s18, 0
    %p39 = por %p37, %p38
    %p40 = scmp.ne.s32.totalorder %s26, %s27
    %p41 = scmp.eq.s32.totalorder %s19, 1
    %p42 = por %p40, %p41
    %p44 = scmp.ne.s32.totalorder %s27, %s43
    %p45 = scmp.eq.s32.totalorder %s19, 0
    %p46 = por %p44, %p45
    %s47 = ssub.s32 %s13, %s20
    %p48 = scmp.eq.s32.totalorder %s47, 0
    %s50 = sadd.s32 %s49, 1
    %s51 = scalar_select %p48, %s49, %s50
    %p54 = pneg %p48
    %p55 = scmp.eq.s32.totalorder %s13, 1
    %p56 = por %p54, %p55
    %p57 = scmp.ne.s32.totalorder %s49, %s52
    %p58 = scmp.eq.s32.totalorder %s13, 0
    %p59 = por %p57, %p58
    %p60 = scmp.ne.s32.totalorder %s49, %s52
    %p61 = scmp.eq.s32.totalorder %s18, 1
    %p62 = por %p60, %p61
    %p63 = scmp.ne.s32.totalorder %s52, %s53
    %p64 = scmp.eq.s32.totalorder %s18, 0
    %p65 = por %p63, %p64
    %p66 = scmp.ne.s32.totalorder %s52, %s53
    %p67 = scmp.eq.s32.totalorder %s19, 1
    %p68 = por %p66, %p67
    %p70 = scmp.ne.s32.totalorder %s53, %s69
    %p71 = scmp.eq.s32.totalorder %s19, 0
    %p72 = por %p70, %p71
    %s73 = ssub.s32 %s13, %s20
    %p74 = scmp.eq.s32.totalorder %s73, 0
    %s76 = sadd.s32 %s75, 1
    %s77 = scalar_select %p74, %s75, %s76
    %p80 = pneg %p74
    %p81 = scmp.eq.s32.totalorder %s13, 1
    %p82 = por %p80, %p81
    %p83 = scmp.ne.s32.totalorder %s75, %s78
    %p84 = scmp.eq.s32.totalorder %s13, 0
    %p85 = por %p83, %p84
    %p86 = scmp.ne.s32.totalorder %s75, %s78
    %p87 = scmp.eq.s32.totalorder %s18, 1
    %p88 = por %p86, %p87
    %p89 = scmp.ne.s32.totalorder %s78, %s79
    %p90 = scmp.eq.s32.totalorder %s18, 0
    %p91 = por %p89, %p90
    %p92 = scmp.ne.s32.totalorder %s78, %s79
    %p93 = scmp.eq.s32.totalorder %s19, 1
    %p94 = por %p92, %p93
    %p96 = scmp.ne.s32.totalorder %s79, %s95
    %p97 = scmp.eq.s32.totalorder %s19, 0
    %p98 = por %p96, %p97
    %s99 = ssub.s32 %s13, %s20
    %p100 = scmp.eq.s32.totalorder %s99, 0
    %s102 = sadd.s32 %s101, 1
    %s103 = scalar_select %p100, %s101, %s102
    %p106 = pneg %p100
    %p107 = scmp.eq.s32.totalorder %s13, 1
    %p108 = por %p106, %p107
    %p109 = scmp.ne.s32.totalorder %s101, %s104
    %p110 = scmp.eq.s32.totalorder %s13, 0
    %p111 = por %p109, %p110
    %p112 = scmp.ne.s32.totalorder %s101, %s104
    %p113 = scmp.eq.s32.totalorder %s18, 1
    %p114 = por %p112, %p113
    %p115 = scmp.ne.s32.totalorder %s104, %s105
    %p116 = scmp.eq.s32.totalorder %s18, 0
    %p117 = por %p115, %p116
    %p118 = scmp.ne.s32.totalorder %s104, %s105
    %p119 = scmp.eq.s32.totalorder %s19, 1
    %p120 = por %p118, %p119
    %p122 = scmp.ne.s32.totalorder %s105, %s121
    %p123 = scmp.eq.s32.totalorder %s19, 0
    %p124 = por %p122, %p123
    %s126 = sadd.s32 %s125, 1
    %p129 = scmp.eq.s32.totalorder %s13, 1
    %p130 = scmp.ne.s32.totalorder %s125, %s127
    %p131 = scmp.eq.s32.totalorder %s13, 0
    %p132 = por %p130, %p131
    %p133 = scmp.ne.s32.totalorder %s125, %s127
    %p134 = scmp.eq.s32.totalorder %s18, 1
    %p135 = por %p133, %p134
    %p136 = scmp.ne.s32.totalorder %s127, %s128
    %p137 = scmp.eq.s32.totalorder %s18, 0
    %p138 = por %p136, %p137
    %p139 = scmp.ne.s32.totalorder %s127, %s128
    %p140 = scmp.eq.s32.totalorder %s19, 1
    %p141 = por %p139, %p140
    %p143 = scmp.ne.s32.totalorder %s128, %s142
    %p144 = scmp.eq.s32.totalorder %s19, 0
    %p145 = por %p143, %p144
    %s147 = sadd.s32 %s146, 1
    %p150 = scmp.eq.s32.totalorder %s13, 1
    %p151 = scmp.ne.s32.totalorder %s146, %s148
    %p152 = scmp.eq.s32.totalorder %s13, 0
    %p153 = por %p151, %p152
    %p154 = scmp.ne.s32.totalorder %s146, %s148
    %p155 = scmp.eq.s32.totalorder %s18, 1
    %p156 = por %p154, %p155
    %p157 = scmp.ne.s32.totalorder %s148, %s149
    %p158 = scmp.eq.s32.totalorder %s18, 0
    %p159 = por %p157, %p158
    %p160 = scmp.ne.s32.totalorder %s148, %s149
    %p161 = scmp.eq.s32.totalorder %s19, 1
    %p162 = por %p160, %p161
    %p164 = scmp.ne.s32.totalorder %s149, %s163
    %p165 = scmp.eq.s32.totalorder %s19, 0
    %p166 = por %p164, %p165
    %s168 = sadd.s32 %s167, 1
    %p171 = scmp.eq.s32.totalorder %s13, 1
    %p172 = scmp.ne.s32.totalorder %s167, %s169
    %p173 = scmp.eq.s32.totalorder %s13, 0
    %p174 = por %p172, %p173
    %p175 = scmp.ne.s32.totalorder %s167, %s169
    %p176 = scmp.eq.s32.totalorder %s18, 1
    %p177 = por %p175, %p176
    %p178 = scmp.ne.s32.totalorder %s169, %s170
    %p179 = scmp.eq.s32.totalorder %s18, 0
    %p180 = por %p178, %p179
    %p181 = scmp.ne.s32.totalorder %s169, %s170
    %p182 = scmp.eq.s32.totalorder %s19, 1
    %p183 = por %p181, %p182
    %p185 = scmp.ne.s32.totalorder %s170, %s184
    %p186 = scmp.eq.s32.totalorder %s19, 0
    %p187 = por %p185, %p186
    %s188 = ssub.s32 %s13, %s20
    %p189 = scmp.eq.s32.totalorder %s188, 0
    %s191 = sadd.s32 %s190, 1
    %s192 = scalar_select %p189, %s190, %s191
    %p195 = pneg %p189
    %p196 = scmp.eq.s32.totalorder %s13, 1
    %p197 = por %p195, %p196
    %p198 = scmp.ne.s32.totalorder %s190, %s193
    %p199 = scmp.eq.s32.totalorder %s13, 0
    %p200 = por %p198, %p199
    %p201 = scmp.ne.s32.totalorder %s190, %s193
    %p202 = scmp.eq.s32.totalorder %s18, 1
    %p203 = por %p201, %p202
    %p204 = scmp.ne.s32.totalorder %s193, %s194
    %p205 = scmp.eq.s32.totalorder %s18, 0
    %p206 = por %p204, %p205
    %p207 = scmp.ne.s32.totalorder %s193, %s194
    %p208 = scmp.eq.s32.totalorder %s19, 1
    %p209 = por %p207, %p208
    %p211 = scmp.ne.s32.totalorder %s194, %s210
    %p212 = scmp.eq.s32.totalorder %s19, 0
    %p213 = por %p211, %p212
    %p214 = scmp.le.s32.totalorder 1, %s13
    %p215 = scmp.lt.s32.totalorder %s13, 3
    %p216 = pnand %p214, %p215
    %p217 = pneg %p216
    // Predicated region
    $region9: #{tokenpose_b_forward.4} parent=5 // pred_check
      _
    $region10: #{tokenpose_b_forward.4} parent=5 // pred_check_branch
      %219 = sbr.rel (%p216) target = $region12
    $region11: #{tokenpose_b_forward.4} parent=5 // pred_region
      %s220 = ssub.s32 %s13, 1
      // Predicated region
      $region13: #{tokenpose_b_forward.4} parent=11 // pred_check
        %p221 = pneg %p138
      $region14: #{tokenpose_b_forward.4} parent=11 // pred_check_branch
        %223 = sbr.rel (%p221) target = $region16
      $region15: #{tokenpose_b_forward.4} parent=11 // pred_region
        _
      $region16: #{tokenpose_b_forward.4} parent=11 // pred_fallthru
        _
      // Predicated region
      $region17: #{tokenpose_b_forward.4} parent=11 // pred_check
        %p224 = pneg %p159
      $region18: #{tokenpose_b_forward.4} parent=11 // pred_check_branch
        %226 = sbr.rel (%p224) target = $region20
      $region19: #{tokenpose_b_forward.4} parent=11 // pred_region
        _
      $region20: #{tokenpose_b_forward.4} parent=11 // pred_fallthru
        _
      // Predicated region
      $region21: #{tokenpose_b_forward.4} parent=11 // pred_check
        %p227 = pneg %p180
      $region22: #{tokenpose_b_forward.4} parent=11 // pred_check_branch
        %229 = sbr.rel (%p227) target = $region24
      $region23: #{tokenpose_b_forward.4} parent=11 // pred_region
        _
      $region24: #{tokenpose_b_forward.4} parent=11 // pred_fallthru
        _
    $region12: #{tokenpose_b_forward.4} parent=5 // pred_fallthru
      _
    %p230 = scmp.lt.s32.totalorder %s13, 2
    // Predicated region
    $region25: #{tokenpose_b_forward.4} parent=5 // pred_check
      %p231 = pneg %p230
    $region26: #{tokenpose_b_forward.4} parent=5 // pred_check_branch
      %233 = sbr.rel (%p231) target = $region28
    $region27: #{tokenpose_b_forward.4} parent=5 // pred_region
      // Predicated region
      $region29: #{tokenpose_b_forward.4} parent=27 // pred_check
        %p234 = pneg %p33
      $region30: #{tokenpose_b_forward.4} parent=27 // pred_check_branch
        %236 = sbr.rel (%p234) target = $region32
      $region31: #{tokenpose_b_forward.4} parent=27 // pred_region
        %p237 = scmp.lt.s32.totalorder %s13, 1
        %s238 = scalar_select %p237, %s13, 1
        %s239 = smul.addr %s238, 5
        %s240 = smul.addr %s239, 8
        %s241 = scalar_lea.vmem %s0, %s240
      $region32: #{tokenpose_b_forward.4} parent=27 // pred_fallthru
        _
      // Predicated region
      $region33: #{tokenpose_b_forward.4} parent=27 // pred_check
        %p242 = pneg %p59
      $region34: #{tokenpose_b_forward.4} parent=27 // pred_check_branch
        %244 = sbr.rel (%p242) target = $region36
      $region35: #{tokenpose_b_forward.4} parent=27 // pred_region
        %p245 = scmp.lt.s32.totalorder %s13, 1
        %s246 = scalar_select %p245, %s13, 1
        %s247 = smul.addr %s246, 5
        %s248 = smul.addr %s247, 8
        %s249 = scalar_lea.vmem %s1, %s248
      $region36: #{tokenpose_b_forward.4} parent=27 // pred_fallthru
        _
      // Predicated region
      $region37: #{tokenpose_b_forward.4} parent=27 // pred_check
        %p250 = pneg %p85
      $region38: #{tokenpose_b_forward.4} parent=27 // pred_check_branch
        %252 = sbr.rel (%p250) target = $region40
      $region39: #{tokenpose_b_forward.4} parent=27 // pred_region
        %p253 = scmp.lt.s32.totalorder %s13, 1
        %s254 = scalar_select %p253, %s13, 1
        %s255 = smul.addr %s254, 5
        %s256 = smul.addr %s255, 8
        %s257 = scalar_lea.vmem %s2, %s256
      $region40: #{tokenpose_b_forward.4} parent=27 // pred_fallthru
        _
      // Predicated region
      $region41: #{tokenpose_b_forward.4} parent=27 // pred_check
        %p258 = pneg %p111
      $region42: #{tokenpose_b_forward.4} parent=27 // pred_check_branch
        %260 = sbr.rel (%p258) target = $region44
      $region43: #{tokenpose_b_forward.4} parent=27 // pred_region
        %p261 = scmp.lt.s32.totalorder %s13, 1
        %s262 = scalar_select %p261, %s13, 1
        %s263 = smul.addr %s262, 5
        %s264 = smul.addr %s263, 8
        %s265 = scalar_lea.vmem %s3, %s264
      $region44: #{tokenpose_b_forward.4} parent=27 // pred_fallthru
        _
    $region28: #{tokenpose_b_forward.4} parent=5 // pred_fallthru
      _
    %p266 = scmp.le.s32.totalorder 1, %s13
    %p267 = scmp.lt.s32.totalorder %s13, 3
    %p268 = pnand %p266, %p267
    %p269 = pneg %p268
    // Predicated region
    $region45: #{tokenpose_b_forward.4} parent=5 // pred_check
      _
    $region46: #{tokenpose_b_forward.4} parent=5 // pred_check_branch
      %271 = sbr.rel (%p268) target = $region48
    $region47: #{tokenpose_b_forward.4} parent=5 // pred_region
      %s272 = ssub.s32 %s13, 1
      %p273 = scmp.lt.s32.totalorder %s18, 1
      %s274 = scalar_select %p273, %s18, 1
      %s275 = smul.addr %s274, 5
      %s276 = smul.addr %s275, 8
      %s277 = scalar_lea.vmem %s0, %s276
      %p278 = pneg %p39
      %p279 = pneg %p36
      %p280 = scmp.lt.s32.totalorder %s18, 1
      %s281 = scalar_select %p280, %s18, 1
      %s282 = smul.addr %s281, 5
      %s283 = smul.addr %s282, 8
      %s284 = scalar_lea.vmem %s1, %s283
      %p285 = pneg %p65
      %p286 = pneg %p62
      %p287 = scmp.lt.s32.totalorder %s18, 1
      %s288 = scalar_select %p287, %s18, 1
      %s289 = smul.addr %s288, 5
      %s290 = smul.addr %s289, 8
      %s291 = scalar_lea.vmem %s2, %s290
      %p292 = pneg %p91
      %p293 = pneg %p88
      %p294 = scmp.lt.s32.totalorder %s18, 1
      %s295 = scalar_select %p294, %s18, 1
      %s296 = smul.addr %s295, 5
      %s297 = smul.addr %s296, 8
      %s298 = scalar_lea.vmem %s3, %s297
      %p299 = pneg %p117
      %p300 = pneg %p114
      %p301 = pneg %p138
      %p302 = pneg %p135
      %p303 = pneg %p159
      %p304 = pneg %p156
      %p305 = pneg %p180
      %p306 = pneg %p177
      %p307 = pneg %p206
      %p308 = pneg %p203
      %p309 = scmp.lt.s32.totalorder %s18, 1
      %s310 = scalar_select %p309, %s18, 1
      %s311 = smul.addr %s310, 4
      %s312 = smul.addr %s311, 4
      %s313 = scalar_lea.vmem %s7, %s312
      %p314 = scmp.lt.s32.totalorder %s18, 1
      %s315 = scalar_select %p314, %s18, 1
      %s316 = smul.addr %s315, 5
      %s317 = smul.addr %s316, 8
      %s318 = scalar_lea.vmem %s0, %s317
      %p319 = scmp.lt.s32.totalorder %s18, 1
      %s320 = scalar_select %p319, %s18, 1
      %s321 = smul.addr %s320, 5
      %s322 = smul.addr %s321, 8
      %s323 = scalar_lea.vmem %s1, %s322
      %p324 = scmp.lt.s32.totalorder %s18, 1
      %s325 = scalar_select %p324, %s18, 1
      %s326 = smul.addr %s325, 5
      %s327 = smul.addr %s326, 8
      %s328 = scalar_lea.vmem %s2, %s327
      %p329 = scmp.lt.s32.totalorder %s18, 1
      %s330 = scalar_select %p329, %s18, 1
      %s331 = smul.addr %s330, 5
      %s332 = smul.addr %s331, 8
      %s333 = scalar_lea.vmem %s3, %s332
      %p334 = scmp.lt.s32.totalorder %s18, 1
      %s335 = scalar_select %p334, %s18, 1
      %s336 = smul.addr %s335, 4
      %s337 = smul.addr %s336, 4
      %s338 = scalar_lea.vmem %s7, %s337
      %v340 = vld [vmem:[%s318] sm:$0x1f]
      %v341 = vld [vmem:[%s318 + $0x8] sm:$0x1f]
      %v342 = vld [vmem:[%s318 + $0x10] sm:$0x1f]
      %v343 = vld [vmem:[%s318 + $0x18] sm:$0x1f]
      %v344 = vld [vmem:[%s318 + $0x20] sm:$0x1f]
      %v345 = vld [vmem:[%s323] sm:$0x1f]
      %v346 = vld [vmem:[%s323 + $0x8] sm:$0x1f]
      %v347 = vld [vmem:[%s323 + $0x10] sm:$0x1f]
      %v348 = vld [vmem:[%s323 + $0x18] sm:$0x1f]
      %v349 = vld [vmem:[%s323 + $0x20] sm:$0x1f]
      %v350 = vld [vmem:[%s328] sm:$0x1f]
      %v351 = vld [vmem:[%s328 + $0x8] sm:$0x1f]
      %v352 = vld [vmem:[%s328 + $0x10] sm:$0x1f]
      %v353 = vld [vmem:[%s328 + $0x18] sm:$0x1f]
      %v354 = vld [vmem:[%s333] sm:$0x1f]
      %v355 = vld [vmem:[%s333 + $0x8] sm:$0x1f]
      %v356 = vld [vmem:[%s333 + $0x10] sm:$0x1f]
      %v357 = vld [vmem:[%s333 + $0x18] sm:$0x1f]
      %362 = vrot.lane.b32.xlu0 %v345, 8
      %v363 = vpop.permute.xlu0 %362
      %364 = vrot.lane.b32.xlu0 %v346, 8
      %v365 = vpop.permute.xlu0 %364
      %366 = vrot.lane.b32.xlu0 %v347, 8
      %v367 = vpop.permute.xlu0 %366
      %368 = vrot.lane.b32.xlu0 %v348, 8
      %v369 = vpop.permute.xlu0 %368
      %v378 = vrot.slane %v340, 1
      %v379 = vrot.slane %v341, 1
      %v380 = vrot.slane %v342, 1
      %v381 = vrot.slane %v343, 1
      %382 = vrot.lane.b32.xlu0 %v378, 16
      %v383 = vpop.permute.xlu0 %382
      %384 = vrot.lane.b32.xlu0 %v379, 16
      %v385 = vpop.permute.xlu0 %384
      %386 = vrot.lane.b32.xlu0 %v380, 16
      %v387 = vpop.permute.xlu0 %386
      %388 = vrot.lane.b32.xlu0 %v381, 16
      %v389 = vpop.permute.xlu0 %388
      %398 = vrot.lane.b32.xlu0 %v350, 24
      %v399 = vpop.permute.xlu0 %398
      %400 = vrot.lane.b32.xlu0 %v351, 24
      %v401 = vpop.permute.xlu0 %400
      %402 = vrot.lane.b32.xlu0 %v352, 24
      %v403 = vpop.permute.xlu0 %402
      %404 = vrot.lane.b32.xlu0 %v353, 24
      %v405 = vpop.permute.xlu0 %404
      %414 = vrot.lane.b32.xlu0 %v354, 32
      %v415 = vpop.permute.xlu0 %414
      %416 = vrot.lane.b32.xlu0 %v355, 32
      %v417 = vpop.permute.xlu0 %416
      %418 = vrot.lane.b32.xlu0 %v356, 32
      %v419 = vpop.permute.xlu0 %418
      %420 = vrot.lane.b32.xlu0 %v357, 32
      %v421 = vpop.permute.xlu0 %420
      %v426 = vrot.slane %v350, 1
      %v427 = vrot.slane %v351, 1
      %v428 = vrot.slane %v352, 1
      %v429 = vrot.slane %v353, 1
      %430 = vrot.lane.b32.xlu0 %v426, 40
      %v431 = vpop.permute.xlu0 %430
      %432 = vrot.lane.b32.xlu0 %v427, 40
      %v433 = vpop.permute.xlu0 %432
      %434 = vrot.lane.b32.xlu0 %v428, 40
      %v435 = vpop.permute.xlu0 %434
      %436 = vrot.lane.b32.xlu0 %v429, 40
      %v437 = vpop.permute.xlu0 %436
      %443 = vrot.lane.b32.xlu0 %v341, 48
      %v444 = vpop.permute.xlu0 %443
      %445 = vrot.lane.b32.xlu0 %v342, 48
      %v446 = vpop.permute.xlu0 %445
      %447 = vrot.lane.b32.xlu0 %v343, 48
      %v448 = vpop.permute.xlu0 %447
      %449 = vrot.lane.b32.xlu0 %v344, 48
      %v450 = vpop.permute.xlu0 %449
      %456 = vrot.lane.b32.xlu0 %v346, 56
      %v457 = vpop.permute.xlu0 %456
      %458 = vrot.lane.b32.xlu0 %v347, 56
      %v459 = vpop.permute.xlu0 %458
      %460 = vrot.lane.b32.xlu0 %v348, 56
      %v461 = vpop.permute.xlu0 %460
      %462 = vrot.lane.b32.xlu0 %v349, 56
      %v463 = vpop.permute.xlu0 %462
      %v468 = vrot.slane %v344, 1
      %469 = vrot.lane.b32.xlu0 %v379, 64
      %v470 = vpop.permute.xlu0 %469
      %471 = vrot.lane.b32.xlu0 %v380, 64
      %v472 = vpop.permute.xlu0 %471
      %473 = vrot.lane.b32.xlu0 %v381, 64
      %v474 = vpop.permute.xlu0 %473
      %475 = vrot.lane.b32.xlu0 %v468, 64
      %v476 = vpop.permute.xlu0 %475
      %vm481 = vcmask 64512
      %v482 = vsel %vm481, %v340, %v363
      %v483 = vsel %vm481, %v341, %v365
      %v484 = vsel %vm481, %v342, %v367
      %v485 = vsel %vm481, %v343, %v369
      %vm486 = vcmask 130048
      %v487 = vsel %vm486, %v482, %v383
      %v488 = vsel %vm486, %v483, %v385
      %v489 = vsel %vm486, %v484, %v387
      %v490 = vsel %vm486, %v485, %v389
      %vm491 = vcmask 195584
      %v492 = vsel %vm491, %v487, %v399
      %v493 = vsel %vm491, %v488, %v401
      %v494 = vsel %vm491, %v489, %v403
      %v495 = vsel %vm491, %v490, %v405
      %vm496 = vcmask 261120
      %v497 = vsel %vm496, %v492, %v415
      %v498 = vsel %vm496, %v493, %v417
      %v499 = vsel %vm496, %v494, %v419
      %v500 = vsel %vm496, %v495, %v421
      %vm501 = vcmask 326656
      %v502 = vsel %vm501, %v497, %v431
      %v503 = vsel %vm501, %v498, %v433
      %v504 = vsel %vm501, %v499, %v435
      %v505 = vsel %vm501, %v500, %v437
      %vm506 = vcmask 392192
      %v507 = vsel %vm506, %v502, %v444
      %v508 = vsel %vm506, %v503, %v446
      %v509 = vsel %vm506, %v504, %v448
      %v510 = vsel %vm506, %v505, %v450
      %vm511 = vcmask 457728
      %v512 = vsel %vm511, %v507, %v457
      %v513 = vsel %vm511, %v508, %v459
      %v514 = vsel %vm511, %v509, %v461
      %v515 = vsel %vm511, %v510, %v463
      %vm516 = vcmask 523264
      %v517 = vsel %vm516, %v512, %v470
      %v518 = vsel %vm516, %v513, %v472
      %v519 = vsel %vm516, %v514, %v474
      %v520 = vsel %vm516, %v515, %v476
      %v525 = vcombine.low %v517, %v518
      %v526 = vcombine.low %v519, %v520
      %v529 = vpack.c.bf16 %v526, %v525
      %v530 = vld [vmem:[%s4] sm:$0xf]
      %v531 = vld [vmem:[%s4 + $0x4] sm:$0xf]
      %v532 = vld [vmem:[%s4 + $0x8] sm:$0xf]
      %v533 = vld [vmem:[%s4 + $0xc] sm:$0xf]
      %v534 = vld [vmem:[%s4 + $0x10] sm:$0xf]
      %v535 = vld [vmem:[%s4 + $0x14] sm:$0xf]
      %v536 = vld [vmem:[%s4 + $0x18] sm:$0xf]
      %v537 = vld [vmem:[%s4 + $0x1c] sm:$0xf]
      %v538 = vld [vmem:[%s4 + $0x20] sm:$0xf]
      %v548 = vunpack.c.l.b16 %v530
      %v549 = vunpack.c.l.b16 %v531
      %v550 = vunpack.c.l.b16 %v532
      %v551 = vunpack.c.l.b16 %v533
      %v552 = vunpack.c.l.b16 %v534
      %v553 = vunpack.c.l.b16 %v535
      %v554 = vunpack.c.l.b16 %v536
      %v555 = vunpack.c.l.b16 %v537
      %v556 = vunpack.c.l.b16 %v538
      %v557 = vpack.c.b16 %v549, %v548
      %v558 = vpack.c.b16 %v551, %v550
      %v559 = vpack.c.b16 %v553, %v552
      %v560 = vpack.c.b16 %v555, %v554
      %v561 = vpack.c.b16 %v556, %v556
      %vm566 = vcmask 588800
      %v568 = vsel %vm566, %v529, 0
      %vm570 = vcmask 1043456
      %v572 = vsel %vm570, %v561, 0
      %574 = vmatprep.subr.bf16.mxu0 0
      %575 = vmatpush1.bf16.msra.mxu0 %v557
      %576 = vmatprep.subr.bf16.mxu0 0
      %577 = vmatpush1.bf16.msra.mxu0 %v558
      %578 = vmatprep.subr.bf16.mxu0 0
      %579 = vmatpush1.bf16.msra.mxu0 %v559
      %580 = vmatprep.subr.bf16.mxu0 0
      %581 = vmatpush1.bf16.msra.mxu0 %v560
      %582 = vmatprep.subr.bf16.mxu0 0
      %583 = vmatpush1.bf16.msra.mxu0 %v572
      %584 = vmatprep.subr.bf16.mxu0 0
      %585 = vmatpush1.bf16.msra.mxu0 0
      %586 = vmatprep.subr.bf16.mxu0 0
      %587 = vmatpush1.bf16.msra.mxu0 0
      %588 = vmatprep.subr.bf16.mxu0 0
      %589 = vmatpush1.bf16.msra.mxu0 0
      %590 = vmatprep.subr.bf16.mxu0 0
      %591 = vmatpush1.bf16.msra.mxu0 0
      %592 = vmatprep.subr.bf16.mxu0 0
      %593 = vmatpush1.bf16.msra.mxu0 0
      %594 = vmatprep.subr.bf16.mxu0 0
      %595 = vmatpush1.bf16.msra.mxu0 0
      %596 = vmatprep.subr.bf16.mxu0 0
      %597 = vmatpush1.bf16.msra.mxu0 0
      %598 = vmatprep.subr.bf16.mxu0 0
      %599 = vmatpush1.bf16.msra.mxu0 0
      %600 = vmatprep.subr.bf16.mxu0 0
      %601 = vmatpush1.bf16.msra.mxu0 0
      %602 = vmatprep.subr.bf16.mxu0 0
      %603 = vmatpush1.bf16.msra.mxu0 0
      %604 = vmatprep.subr.bf16.mxu0 0
      %605 = vmatpush1.bf16.msra.mxu0 0
      %606 = vmatprep.mubr.bf16.mxu0 0
      %607 = vmatmul.mubr.bf16.gmra.mrb[0].mxu0 %v568
      %v608 = vpop.f32.mrb[0].mxu0
      %v609 = vadd.f32 0.0, %v608
      %v610 = vpop.f32.mrb[0].mxu0
      %v611 = vpop.f32.mrb[0].mxu0
      %v612 = vadd.f32 0.0, %v611
      %v613 = vpop.f32.mrb[0].mxu0
      %614 = vdwg.mxu0
      %v615 = vld [vmem:[%s5] sm:$0x1]
      %v617 = vlaneseq
      %v618 = vshrl.u32 %v617, 7
      %v619 = vsub.s32 0, %v618
      %v620 = vrot.slane %v615, %v619
      %v622 = vmul.f32 %v609, %v620
      %v623 = vmul.f32 %v612, %v620
      %v624 = vld [vmem:[%s6] sm:$0x1]
      %v626 = vlaneseq
      %v627 = vshrl.u32 %v626, 7
      %v628 = vsub.s32 0, %v627
      %v629 = vrot.slane %v624, %v628
      %v631 = vadd.f32 %v622, %v629
      %v632 = vadd.f32 %v623, %v629
      %v633 = vmax.f32 %v631, 0.0
      %v634 = vmax.f32 %v632, 0.0
      %v637 = vcombine.high %v633, %v633
      %v638 = vcombine.high %v634, %v634
      %vm641 = vcmask 60416
      %642 = vst.msk [vmem:[%s338] sm:$0xf] %vm641, %v633
      %643 = vst.msk [vmem:[%s338 + $0x4] sm:$0xf] %vm641, %v637
      %644 = vst.msk [vmem:[%s338 + $0x8] sm:$0xf] %vm641, %v634
      %645 = vst.msk [vmem:[%s338 + $0xc] sm:$0xf] %vm641, %v638
      %p646 = scmp.lt.s32.totalorder %s18, 1
      %s647 = scalar_select %p646, %s18, 1
      %s648 = smul.addr %s647, 4
      %s649 = smul.addr %s648, 4
      %s650 = scalar_lea.vmem %s7, %s649
      // Predicated region
      $region49: #{tokenpose_b_forward.4} parent=47 // pred_check
        %p651 = pneg %p203
      $region50: #{tokenpose_b_forward.4} parent=47 // pred_check_branch
        %653 = sbr.rel (%p651) target = $region52
      $region51: #{tokenpose_b_forward.4} parent=47 // pred_region
        _
      $region52: #{tokenpose_b_forward.4} parent=47 // pred_fallthru
        _
    $region48: #{tokenpose_b_forward.4} parent=5 // pred_fallthru
      _
    %p654 = scmp.le.s32.totalorder 2, %s13
    // Predicated region
    $region53: #{tokenpose_b_forward.4} parent=5 // pred_check
      %p655 = pneg %p654
    $region54: #{tokenpose_b_forward.4} parent=5 // pred_check_branch
      %657 = sbr.rel (%p655) target = $region56
    $region55: #{tokenpose_b_forward.4} parent=5 // pred_region
      %s658 = ssub.s32 %s13, 2
      // Predicated region
      $region57: #{tokenpose_b_forward.4} parent=55 // pred_check
        %p659 = pneg %p209
      $region58: #{tokenpose_b_forward.4} parent=55 // pred_check_branch
        %661 = sbr.rel (%p659) target = $region60
      $region59: #{tokenpose_b_forward.4} parent=55 // pred_region
        %p662 = scmp.lt.s32.totalorder %s19, 1
        %s663 = scalar_select %p662, %s19, 1
        %s664 = smul.addr %s663, 4
        %s665 = smul.addr %s664, 4
        %s666 = scalar_lea.vmem %s7, %s665
      $region60: #{tokenpose_b_forward.4} parent=55 // pred_fallthru
        _
    $region56: #{tokenpose_b_forward.4} parent=5 // pred_fallthru
      _
  $region6: #{tokenpose_b_forward.4} parent=0 // loop_footer
    %s17 = sadd.s32 1, %s13
  $region7: #{tokenpose_b_forward.4} parent=0 // loop_footer_branch
    %12 = sbr.rel target = $region3
  $region8: #{tokenpose_b_forward.4} parent=0 // loop_exit
    _

// kernel: tokenpose_b_forward.3
$region0: #{tokenpose_b_forward.3}
  #allocation0 [shape = 'u32[]', space=smem, size = 0x4, offset = 0x4, fixed_abs, tag = 'smem constant byte address 0x4 - core index']
  #allocation1 [shape = 'u32[144,128]{1,0:T(1,128)}', space=vmem, size = 0x12000, scoped, tag = 'internal scratch']
  %s0 = inlined_call_operand.vmem [shape: f32[2,9,9,3], index: 0, kind: input, shape index: {}]
  %s1 = inlined_call_operand.vmem [shape: f32[2,9,9,3], index: 1, kind: input, shape index: {}]
  %s2 = inlined_call_operand.vmem [shape: f32[2,9,9,3], index: 2, kind: input, shape index: {}]
  %s3 = inlined_call_operand.vmem [shape: f32[2,9,9,3], index: 3, kind: input, shape index: {}]
  %s4 = inlined_call_operand.vmem [shape: bf16[27,8], index: 4, kind: input, shape index: {}]
  %s5 = inlined_call_operand.vmem [shape: f32[1,8], index: 5, kind: input, shape index: {}]
  %s6 = inlined_call_operand.vmem [shape: f32[1,8], index: 6, kind: input, shape index: {}]
  %s7 = inlined_call_operand.vmem [shape: f32[2,8,8,8], index: 7, kind: output, shape index: {}]
  %s8 = sld [smem:[#allocation0]]
  $region61: #{tokenpose_b_forward.3} parent=0
    _
  %s10 = ssub.s32 1, %s8
  %s11 = scalar_select 0, %s10, %s8
  loop: start=0, step=1, limit=4
  $region2: #{tokenpose_b_forward.3} parent=0 // loop_pre_header
    _
  $region3: #{tokenpose_b_forward.3} parent=0 // loop_header
    %s13 = sphi 0, %s17
    %p14 = scmp.ge.s32.totalorder %s13, 4
    %s23 = sphi 0, %s25
    %s26 = sphi 0, %s23
    %s27 = sphi 0, %s26
    %s43 = sphi 0, %s27
    %s49 = sphi 0, %s51
    %s52 = sphi 0, %s49
    %s53 = sphi 0, %s52
    %s69 = sphi 0, %s53
    %s75 = sphi 0, %s77
    %s78 = sphi 0, %s75
    %s79 = sphi 0, %s78
    %s95 = sphi 0, %s79
    %s101 = sphi 0, %s103
    %s104 = sphi 0, %s101
    %s105 = sphi 0, %s104
    %s121 = sphi 0, %s105
    %s125 = sphi 0, %s125
    %s127 = sphi 0, %s125
    %s128 = sphi 0, %s127
    %s142 = sphi 0, %s128
    %s146 = sphi 0, %s146
    %s148 = sphi 0, %s146
    %s149 = sphi 0, %s148
    %s163 = sphi 0, %s149
    %s167 = sphi 0, %s167
    %s169 = sphi 0, %s167
    %s170 = sphi 0, %s169
    %s184 = sphi 0, %s170
    %s190 = sphi 0, %s192
    %s193 = sphi 0, %s190
    %s194 = sphi 0, %s193
    %s210 = sphi 0, %s194
  $region4: #{tokenpose_b_forward.3} parent=0 // loop_header_branch
    %16 = sbr.rel (%p14) target = $region8
  $region5: #{tokenpose_b_forward.3} parent=0 // loop_body
    %s18 = ssub.s32 %s13, 1
    %s19 = ssub.s32 %s13, 2
    %s20 = sadd.s32 %s13, 1
    %s21 = ssub.s32 %s13, %s20
    %p22 = scmp.eq.s32.totalorder %s21, 0
    %s24 = sadd.s32 %s23, 1
    %s25 = scalar_select %p22, %s23, %s24
    %p28 = pneg %p22
    %p29 = scmp.eq.s32.totalorder %s13, 1
    %p30 = por %p28, %p29
    %p31 = scmp.ne.s32.totalorder %s23, %s26
    %p32 = scmp.eq.s32.totalorder %s13, 0
    %p33 = por %p31, %p32
    %p34 = scmp.ne.s32.totalorder %s23, %s26
    %p35 = scmp.eq.s32.totalorder %s18, 1
    %p36 = por %p34, %p35
    %p37 = scmp.ne.s32.totalorder %s26, %s27
    %p38 = scmp.eq.s32.totalorder %s18, 0
    %p39 = por %p37, %p38
    %p40 = scmp.ne.s32.totalorder %s26, %s27
    %p41 = scmp.eq.s32.totalorder %s19, 1
    %p42 = por %p40, %p41
    %p44 = scmp.ne.s32.totalorder %s27, %s43
    %p45 = scmp.eq.s32.totalorder %s19, 0
    %p46 = por %p44, %p45
    %s47 = ssub.s32 %s13, %s20
    %p48 = scmp.eq.s32.totalorder %s47, 0
    %s50 = sadd.s32 %s49, 1
    %s51 = scalar_select %p48, %s49, %s50
    %p54 = pneg %p48
    %p55 = scmp.eq.s32.totalorder %s13, 1
    %p56 = por %p54, %p55
    %p57 = scmp.ne.s32.totalorder %s49, %s52
    %p58 = scmp.eq.s32.totalorder %s13, 0
    %p59 = por %p57, %p58
    %p60 = scmp.ne.s32.totalorder %s49, %s52
    %p61 = scmp.eq.s32.totalorder %s18, 1
    %p62 = por %p60, %p61
    %p63 = scmp.ne.s32.totalorder %s52, %s53
    %p64 = scmp.eq.s32.totalorder %s18, 0
    %p65 = por %p63, %p64
    %p66 = scmp.ne.s32.totalorder %s52, %s53
    %p67 = scmp.eq.s32.totalorder %s19, 1
    %p68 = por %p66, %p67
    %p70 = scmp.ne.s32.totalorder %s53, %s69
    %p71 = scmp.eq.s32.totalorder %s19, 0
    %p72 = por %p70, %p71
    %s73 = ssub.s32 %s13, %s20
    %p74 = scmp.eq.s32.totalorder %s73, 0
    %s76 = sadd.s32 %s75, 1
    %s77 = scalar_select %p74, %s75, %s76
    %p80 = pneg %p74
    %p81 = scmp.eq.s32.totalorder %s13, 1
    %p82 = por %p80, %p81
    %p83 = scmp.ne.s32.totalorder %s75, %s78
    %p84 = scmp.eq.s32.totalorder %s13, 0
    %p85 = por %p83, %p84
    %p86 = scmp.ne.s32.totalorder %s75, %s78
    %p87 = scmp.eq.s32.totalorder %s18, 1
    %p88 = por %p86, %p87
    %p89 = scmp.ne.s32.totalorder %s78, %s79
    %p90 = scmp.eq.s32.totalorder %s18, 0
    %p91 = por %p89, %p90
    %p92 = scmp.ne.s32.totalorder %s78, %s79
    %p93 = scmp.eq.s32.totalorder %s19, 1
    %p94 = por %p92, %p93
    %p96 = scmp.ne.s32.totalorder %s79, %s95
    %p97 = scmp.eq.s32.totalorder %s19, 0
    %p98 = por %p96, %p97
    %s99 = ssub.s32 %s13, %s20
    %p100 = scmp.eq.s32.totalorder %s99, 0
    %s102 = sadd.s32 %s101, 1
    %s103 = scalar_select %p100, %s101, %s102
    %p106 = pneg %p100
    %p107 = scmp.eq.s32.totalorder %s13, 1
    %p108 = por %p106, %p107
    %p109 = scmp.ne.s32.totalorder %s101, %s104
    %p110 = scmp.eq.s32.totalorder %s13, 0
    %p111 = por %p109, %p110
    %p112 = scmp.ne.s32.totalorder %s101, %s104
    %p113 = scmp.eq.s32.totalorder %s18, 1
    %p114 = por %p112, %p113
    %p115 = scmp.ne.s32.totalorder %s104, %s105
    %p116 = scmp.eq.s32.totalorder %s18, 0
    %p117 = por %p115, %p116
    %p118 = scmp.ne.s32.totalorder %s104, %s105
    %p119 = scmp.eq.s32.totalorder %s19, 1
    %p120 = por %p118, %p119
    %p122 = scmp.ne.s32.totalorder %s105, %s121
    %p123 = scmp.eq.s32.totalorder %s19, 0
    %p124 = por %p122, %p123
    %s126 = sadd.s32 %s125, 1
    %p129 = scmp.eq.s32.totalorder %s13, 1
    %p130 = scmp.ne.s32.totalorder %s125, %s127
    %p131 = scmp.eq.s32.totalorder %s13, 0
    %p132 = por %p130, %p131
    %p133 = scmp.ne.s32.totalorder %s125, %s127
    %p134 = scmp.eq.s32.totalorder %s18, 1
    %p135 = por %p133, %p134
    %p136 = scmp.ne.s32.totalorder %s127, %s128
    %p137 = scmp.eq.s32.totalorder %s18, 0
    %p138 = por %p136, %p137
    %p139 = scmp.ne.s32.totalorder %s127, %s128
    %p140 = scmp.eq.s32.totalorder %s19, 1
    %p141 = por %p139, %p140
    %p143 = scmp.ne.s32.totalorder %s128, %s142
    %p144 = scmp.eq.s32.totalorder %s19, 0
    %p145 = por %p143, %p144
    %s147 = sadd.s32 %s146, 1
    %p150 = scmp.eq.s32.totalorder %s13, 1
    %p151 = scmp.ne.s32.totalorder %s146, %s148
    %p152 = scmp.eq.s32.totalorder %s13, 0
    %p153 = por %p151, %p152
    %p154 = scmp.ne.s32.totalorder %s146, %s148
    %p155 = scmp.eq.s32.totalorder %s18, 1
    %p156 = por %p154, %p155
    %p157 = scmp.ne.s32.totalorder %s148, %s149
    %p158 = scmp.eq.s32.totalorder %s18, 0
    %p159 = por %p157, %p158
    %p160 = scmp.ne.s32.totalorder %s148, %s149
    %p161 = scmp.eq.s32.totalorder %s19, 1
    %p162 = por %p160, %p161
    %p164 = scmp.ne.s32.totalorder %s149, %s163
    %p165 = scmp.eq.s32.totalorder %s19, 0
    %p166 = por %p164, %p165
    %s168 = sadd.s32 %s167, 1
    %p171 = scmp.eq.s32.totalorder %s13, 1
    %p172 = scmp.ne.s32.totalorder %s167, %s169
    %p173 = scmp.eq.s32.totalorder %s13, 0
    %p174 = por %p172, %p173
    %p175 = scmp.ne.s32.totalorder %s167, %s169
    %p176 = scmp.eq.s32.totalorder %s18, 1
    %p177 = por %p175, %p176
    %p178 = scmp.ne.s32.totalorder %s169, %s170
    %p179 = scmp.eq.s32.totalorder %s18, 0
    %p180 = por %p178, %p179
    %p181 = scmp.ne.s32.totalorder %s169, %s170
    %p182 = scmp.eq.s32.totalorder %s19, 1
    %p183 = por %p181, %p182
    %p185 = scmp.ne.s32.totalorder %s170, %s184
    %p186 = scmp.eq.s32.totalorder %s19, 0
    %p187 = por %p185, %p186
    %s188 = ssub.s32 %s13, %s20
    %p189 = scmp.eq.s32.totalorder %s188, 0
    %s191 = sadd.s32 %s190, 1
    %s192 = scalar_select %p189, %s190, %s191
    %p195 = pneg %p189
    %p196 = scmp.eq.s32.totalorder %s13, 1
    %p197 = por %p195, %p196
    %p198 = scmp.ne.s32.totalorder %s190, %s193
    %p199 = scmp.eq.s32.totalorder %s13, 0
    %p200 = por %p198, %p199
    %p201 = scmp.ne.s32.totalorder %s190, %s193
    %p202 = scmp.eq.s32.totalorder %s18, 1
    %p203 = por %p201, %p202
    %p204 = scmp.ne.s32.totalorder %s193, %s194
    %p205 = scmp.eq.s32.totalorder %s18, 0
    %p206 = por %p204, %p205
    %p207 = scmp.ne.s32.totalorder %s193, %s194
    %p208 = scmp.eq.s32.totalorder %s19, 1
    %p209 = por %p207, %p208
    %p211 = scmp.ne.s32.totalorder %s194, %s210
    %p212 = scmp.eq.s32.totalorder %s19, 0
    %p213 = por %p211, %p212
    %p214 = scmp.le.s32.totalorder 1, %s13
    %p215 = scmp.lt.s32.totalorder %s13, 3
    %p216 = pnand %p214, %p215
    %p217 = pneg %p216
    // Predicated region
    $region9: #{tokenpose_b_forward.3} parent=5 // pred_check
      _
    $region10: #{tokenpose_b_forward.3} parent=5 // pred_check_branch
      %219 = sbr.rel (%p216) target = $region12
    $region11: #{tokenpose_b_forward.3} parent=5 // pred_region
      %s220 = ssub.s32 %s13, 1
      // Predicated region
      $region13: #{tokenpose_b_forward.3} parent=11 // pred_check
        %p221 = pneg %p138
      $region14: #{tokenpose_b_forward.3} parent=11 // pred_check_branch
        %223 = sbr.rel (%p221) target = $region16
      $region15: #{tokenpose_b_forward.3} parent=11 // pred_region
        _
      $region16: #{tokenpose_b_forward.3} parent=11 // pred_fallthru
        _
      // Predicated region
      $region17: #{tokenpose_b_forward.3} parent=11 // pred_check
        %p224 = pneg %p159
      $region18: #{tokenpose_b_forward.3} parent=11 // pred_check_branch
        %226 = sbr.rel (%p224) target = $region20
      $region19: #{tokenpose_b_forward.3} parent=11 // pred_region
        _
      $region20: #{tokenpose_b_forward.3} parent=11 // pred_fallthru
        _
      // Predicated region
      $region21: #{tokenpose_b_forward.3} parent=11 // pred_check
        %p227 = pneg %p180
      $region22: #{tokenpose_b_forward.3} parent=11 // pred_check_branch
        %229 = sbr.rel (%p227) target = $region24
      $region23: #{tokenpose_b_forward.3} parent=11 // pred_region
        _
      $region24: #{tokenpose_b_forward.3} parent=11 // pred_fallthru
        _
    $region12: #{tokenpose_b_forward.3} parent=5 // pred_fallthru
      _
    %p230 = scmp.lt.s32.totalorder %s13, 2
    // Predicated region
    $region25: #{tokenpose_b_forward.3} parent=5 // pred_check
      %p231 = pneg %p230
    $region26: #{tokenpose_b_forward.3} parent=5 // pred_check_branch
      %233 = sbr.rel (%p231) target = $region28
    $region27: #{tokenpose_b_forward.3} parent=5 // pred_region
      // Predicated region
      $region29: #{tokenpose_b_forward.3} parent=27 // pred_check
        %p234 = pneg %p33
      $region30: #{tokenpose_b_forward.3} parent=27 // pred_check_branch
        %236 = sbr.rel (%p234) target = $region32
      $region31: #{tokenpose_b_forward.3} parent=27 // pred_region
        %p237 = scmp.lt.s32.totalorder %s13, 1
        %s238 = scalar_select %p237, %s13, 1
        %s239 = smul.addr %s238, 18
        %s240 = smul.addr %s239, 8
        %s241 = scalar_lea.vmem %s0, %s240
      $region32: #{tokenpose_b_forward.3} parent=27 // pred_fallthru
        _
      // Predicated region
      $region33: #{tokenpose_b_forward.3} parent=27 // pred_check
        %p242 = pneg %p59
      $region34: #{tokenpose_b_forward.3} parent=27 // pred_check_branch
        %244 = sbr.rel (%p242) target = $region36
      $region35: #{tokenpose_b_forward.3} parent=27 // pred_region
        %p245 = scmp.lt.s32.totalorder %s13, 1
        %s246 = scalar_select %p245, %s13, 1
        %s247 = smul.addr %s246, 18
        %s248 = smul.addr %s247, 8
        %s249 = scalar_lea.vmem %s1, %s248
      $region36: #{tokenpose_b_forward.3} parent=27 // pred_fallthru
        _
      // Predicated region
      $region37: #{tokenpose_b_forward.3} parent=27 // pred_check
        %p250 = pneg %p85
      $region38: #{tokenpose_b_forward.3} parent=27 // pred_check_branch
        %252 = sbr.rel (%p250) target = $region40
      $region39: #{tokenpose_b_forward.3} parent=27 // pred_region
        %p253 = scmp.lt.s32.totalorder %s13, 1
        %s254 = scalar_select %p253, %s13, 1
        %s255 = smul.addr %s254, 18
        %s256 = smul.addr %s255, 8
        %s257 = scalar_lea.vmem %s2, %s256
      $region40: #{tokenpose_b_forward.3} parent=27 // pred_fallthru
        _
      // Predicated region
      $region41: #{tokenpose_b_forward.3} parent=27 // pred_check
        %p258 = pneg %p111
      $region42: #{tokenpose_b_forward.3} parent=27 // pred_check_branch
        %260 = sbr.rel (%p258) target = $region44
      $region43: #{tokenpose_b_forward.3} parent=27 // pred_region
        %p261 = scmp.lt.s32.totalorder %s13, 1
        %s262 = scalar_select %p261, %s13, 1
        %s263 = smul.addr %s262, 18
        %s264 = smul.addr %s263, 8
        %s265 = scalar_lea.vmem %s3, %s264
      $region44: #{tokenpose_b_forward.3} parent=27 // pred_fallthru
        _
    $region28: #{tokenpose_b_forward.3} parent=5 // pred_fallthru
      _
    %p266 = scmp.le.s32.totalorder 1, %s13
    %p267 = scmp.lt.s32.totalorder %s13, 3
    %p268 = pnand %p266, %p267
    %p269 = pneg %p268
    // Predicated region
    $region45: #{tokenpose_b_forward.3} parent=5 // pred_check
      _
    $region46: #{tokenpose_b_forward.3} parent=5 // pred_check_branch
      %271 = sbr.rel (%p268) target = $region48
    $region47: #{tokenpose_b_forward.3} parent=5 // pred_region
      %s272 = ssub.s32 %s13, 1
      %p273 = scmp.lt.s32.totalorder %s18, 1
      %s274 = scalar_select %p273, %s18, 1
      %s275 = smul.addr %s274, 18
      %s276 = smul.addr %s275, 8
      %s277 = scalar_lea.vmem %s0, %s276
      %p278 = pneg %p39
      %p279 = pneg %p36
      %p280 = scmp.lt.s32.totalorder %s18, 1
      %s281 = scalar_select %p280, %s18, 1
      %s282 = smul.addr %s281, 18
      %s283 = smul.addr %s282, 8
      %s284 = scalar_lea.vmem %s1, %s283
      %p285 = pneg %p65
      %p286 = pneg %p62
      %p287 = scmp.lt.s32.totalorder %s18, 1
      %s288 = scalar_select %p287, %s18, 1
      %s289 = smul.addr %s288, 18
      %s290 = smul.addr %s289, 8
      %s291 = scalar_lea.vmem %s2, %s290
      %p292 = pneg %p91
      %p293 = pneg %p88
      %p294 = scmp.lt.s32.totalorder %s18, 1
      %s295 = scalar_select %p294, %s18, 1
      %s296 = smul.addr %s295, 18
      %s297 = smul.addr %s296, 8
      %s298 = scalar_lea.vmem %s3, %s297
      %p299 = pneg %p117
      %p300 = pneg %p114
      %p301 = pneg %p138
      %p302 = pneg %p135
      %p303 = pneg %p159
      %p304 = pneg %p156
      %p305 = pneg %p180
      %p306 = pneg %p177
      %p307 = pneg %p206
      %p308 = pneg %p203
      %p309 = scmp.lt.s32.totalorder %s18, 1
      %s310 = scalar_select %p309, %s18, 1
      %s311 = smul.addr %s310, 8
      %s312 = smul.addr %s311, 8
      %s313 = scalar_lea.vmem %s7, %s312
      %p314 = scmp.lt.s32.totalorder %s18, 1
      %s315 = scalar_select %p314, %s18, 1
      %s316 = smul.addr %s315, 18
      %s317 = smul.addr %s316, 8
      %s318 = scalar_lea.vmem %s0, %s317
      %p319 = scmp.lt.s32.totalorder %s18, 1
      %s320 = scalar_select %p319, %s18, 1
      %s321 = smul.addr %s320, 18
      %s322 = smul.addr %s321, 8
      %s323 = scalar_lea.vmem %s1, %s322
      %p324 = scmp.lt.s32.totalorder %s18, 1
      %s325 = scalar_select %p324, %s18, 1
      %s326 = smul.addr %s325, 18
      %s327 = smul.addr %s326, 8
      %s328 = scalar_lea.vmem %s2, %s327
      %p329 = scmp.lt.s32.totalorder %s18, 1
      %s330 = scalar_select %p329, %s18, 1
      %s331 = smul.addr %s330, 18
      %s332 = smul.addr %s331, 8
      %s333 = scalar_lea.vmem %s3, %s332
      %p334 = scmp.lt.s32.totalorder %s18, 1
      %s335 = scalar_select %p334, %s18, 1
      %s336 = smul.addr %s335, 8
      %s337 = smul.addr %s336, 8
      %s338 = scalar_lea.vmem %s7, %s337
      %v340 = vld [vmem:[%s318] sm:$0xff]
      %v341 = vld [vmem:[%s318 + $0x8] sm:$0x1]
      %v342 = vld [vmem:[%s318 + $0x10] sm:$0xff]
      %v343 = vld [vmem:[%s318 + $0x18] sm:$0x1]
      %v344 = vld [vmem:[%s318 + $0x20] sm:$0xff]
      %v345 = vld [vmem:[%s318 + $0x28] sm:$0x1]
      %v346 = vld [vmem:[%s318 + $0x30] sm:$0xff]
      %v347 = vld [vmem:[%s318 + $0x38] sm:$0x1]
      %v348 = vld [vmem:[%s318 + $0x40] sm:$0xff]
      %v349 = vld [vmem:[%s318 + $0x48] sm:$0x1]
      %v350 = vld [vmem:[%s318 + $0x50] sm:$0xff]
      %v351 = vld [vmem:[%s318 + $0x58] sm:$0x1]
      %v352 = vld [vmem:[%s318 + $0x60] sm:$0xff]
      %v353 = vld [vmem:[%s318 + $0x68] sm:$0x1]
      %v354 = vld [vmem:[%s318 + $0x70] sm:$0xff]
      %v355 = vld [vmem:[%s318 + $0x78] sm:$0x1]
      %v356 = vld [vmem:[%s318 + $0x80] sm:$0xff]
      %v357 = vld [vmem:[%s318 + $0x88] sm:$0x1]
      %v358 = vld [vmem:[%s323] sm:$0xff]
      %v359 = vld [vmem:[%s323 + $0x10] sm:$0xff]
      %v360 = vld [vmem:[%s323 + $0x20] sm:$0xff]
      %v361 = vld [vmem:[%s323 + $0x30] sm:$0xff]
      %v362 = vld [vmem:[%s323 + $0x40] sm:$0xff]
      %v363 = vld [vmem:[%s323 + $0x50] sm:$0xff]
      %v364 = vld [vmem:[%s323 + $0x60] sm:$0xff]
      %v365 = vld [vmem:[%s323 + $0x70] sm:$0xff]
      %v366 = vld [vmem:[%s323 + $0x80] sm:$0xff]
      %v367 = vld [vmem:[%s328] sm:$0xff]
      %v368 = vld [vmem:[%s328 + $0x8] sm:$0x1]
      %v369 = vld [vmem:[%s328 + $0x10] sm:$0xff]
      %v370 = vld [vmem:[%s328 + $0x18] sm:$0x1]
      %v371 = vld [vmem:[%s328 + $0x20] sm:$0xff]
      %v372 = vld [vmem:[%s328 + $0x28] sm:$0x1]
      %v373 = vld [vmem:[%s328 + $0x30] sm:$0xff]
      %v374 = vld [vmem:[%s328 + $0x38] sm:$0x1]
      %v375 = vld [vmem:[%s328 + $0x40] sm:$0xff]
      %v376 = vld [vmem:[%s328 + $0x48] sm:$0x1]
      %v377 = vld [vmem:[%s328 + $0x50] sm:$0xff]
      %v378 = vld [vmem:[%s328 + $0x58] sm:$0x1]
      %v379 = vld [vmem:[%s328 + $0x60] sm:$0xff]
      %v380 = vld [vmem:[%s328 + $0x68] sm:$0x1]
      %v381 = vld [vmem:[%s328 + $0x70] sm:$0xff]
      %v382 = vld [vmem:[%s328 + $0x78] sm:$0x1]
      %v383 = vld [vmem:[%s333] sm:$0xff]
      %v384 = vld [vmem:[%s333 + $0x10] sm:$0xff]
      %v385 = vld [vmem:[%s333 + $0x20] sm:$0xff]
      %v386 = vld [vmem:[%s333 + $0x30] sm:$0xff]
      %v387 = vld [vmem:[%s333 + $0x40] sm:$0xff]
      %v388 = vld [vmem:[%s333 + $0x50] sm:$0xff]
      %v389 = vld [vmem:[%s333 + $0x60] sm:$0xff]
      %v390 = vld [vmem:[%s333 + $0x70] sm:$0xff]
      %399 = vrot.lane.b32.xlu0 %v358, 3
      %v400 = vpop.permute.xlu0 %399
      %401 = vrot.lane.b32.xlu0 %v359, 3
      %v402 = vpop.permute.xlu0 %401
      %403 = vrot.lane.b32.xlu0 %v360, 3
      %v404 = vpop.permute.xlu0 %403
      %405 = vrot.lane.b32.xlu0 %v361, 3
      %v406 = vpop.permute.xlu0 %405
      %407 = vrot.lane.b32.xlu0 %v362, 3
      %v408 = vpop.permute.xlu0 %407
      %409 = vrot.lane.b32.xlu0 %v363, 3
      %v410 = vpop.permute.xlu0 %409
      %411 = vrot.lane.b32.xlu0 %v364, 3
      %v412 = vpop.permute.xlu0 %411
      %413 = vrot.lane.b32.xlu0 %v365, 3
      %v414 = vpop.permute.xlu0 %413
      %vm439 = vcmask 1046528
      %v440 = vrot.slane %v340, 1
      %v441 = vrot.slane %v341, 1
      %v442 = vsel %vm439, %v440, %v441
      %v443 = vrot.slane %v342, 1
      %v444 = vrot.slane %v343, 1
      %v445 = vsel %vm439, %v443, %v444
      %v446 = vrot.slane %v344, 1
      %v447 = vrot.slane %v345, 1
      %v448 = vsel %vm439, %v446, %v447
      %v449 = vrot.slane %v346, 1
      %v450 = vrot.slane %v347, 1
      %v451 = vsel %vm439, %v449, %v450
      %v452 = vrot.slane %v348, 1
      %v453 = vrot.slane %v349, 1
      %v454 = vsel %vm439, %v452, %v453
      %v455 = vrot.slane %v350, 1
      %v456 = vrot.slane %v351, 1
      %v457 = vsel %vm439, %v455, %v456
      %v458 = vrot.slane %v352, 1
      %v459 = vrot.slane %v353, 1
      %v460 = vsel %vm439, %v458, %v459
      %v461 = vrot.slane %v354, 1
      %v462 = vrot.slane %v355, 1
      %v463 = vsel %vm439, %v461, %v462
      %464 = vrot.lane.b32.xlu0 %v442, 6
      %v465 = vpop.permute.xlu0 %464
      %466 = vrot.lane.b32.xlu0 %v445, 6
      %v467 = vpop.permute.xlu0 %466
      %468 = vrot.lane.b32.xlu0 %v448, 6
      %v469 = vpop.permute.xlu0 %468
      %470 = vrot.lane.b32.xlu0 %v451, 6
      %v471 = vpop.permute.xlu0 %470
      %472 = vrot.lane.b32.xlu0 %v454, 6
      %v473 = vpop.permute.xlu0 %472
      %474 = vrot.lane.b32.xlu0 %v457, 6
      %v475 = vpop.permute.xlu0 %474
      %476 = vrot.lane.b32.xlu0 %v460, 6
      %v477 = vpop.permute.xlu0 %476
      %478 = vrot.lane.b32.xlu0 %v463, 6
      %v479 = vpop.permute.xlu0 %478
      %496 = vrot.lane.b32.xlu0 %v367, 9
      %v497 = vpop.permute.xlu0 %496
      %498 = vrot.lane.b32.xlu0 %v369, 9
      %v499 = vpop.permute.xlu0 %498
      %500 = vrot.lane.b32.xlu0 %v371, 9
      %v501 = vpop.permute.xlu0 %500
      %502 = vrot.lane.b32.xlu0 %v373, 9
      %v503 = vpop.permute.xlu0 %502
      %504 = vrot.lane.b32.xlu0 %v375, 9
      %v505 = vpop.permute.xlu0 %504
      %506 = vrot.lane.b32.xlu0 %v377, 9
      %v507 = vpop.permute.xlu0 %506
      %508 = vrot.lane.b32.xlu0 %v379, 9
      %v509 = vpop.permute.xlu0 %508
      %510 = vrot.lane.b32.xlu0 %v381, 9
      %v511 = vpop.permute.xlu0 %510
      %528 = vrot.lane.b32.xlu0 %v383, 12
      %v529 = vpop.permute.xlu0 %528
      %530 = vrot.lane.b32.xlu0 %v384, 12
      %v531 = vpop.permute.xlu0 %530
      %532 = vrot.lane.b32.xlu0 %v385, 12
      %v533 = vpop.permute.xlu0 %532
      %534 = vrot.lane.b32.xlu0 %v386, 12
      %v535 = vpop.permute.xlu0 %534
      %536 = vrot.lane.b32.xlu0 %v387, 12
      %v537 = vpop.permute.xlu0 %536
      %538 = vrot.lane.b32.xlu0 %v388, 12
      %v539 = vpop.permute.xlu0 %538
      %540 = vrot.lane.b32.xlu0 %v389, 12
      %v541 = vpop.permute.xlu0 %540
      %542 = vrot.lane.b32.xlu0 %v390, 12
      %v543 = vpop.permute.xlu0 %542
      %v560 = vrot.slane %v367, 1
      %v561 = vrot.slane %v368, 1
      %v562 = vsel %vm439, %v560, %v561
      %v563 = vrot.slane %v369, 1
      %v564 = vrot.slane %v370, 1
      %v565 = vsel %vm439, %v563, %v564
      %v566 = vrot.slane %v371, 1
      %v567 = vrot.slane %v372, 1
      %v568 = vsel %vm439, %v566, %v567
      %v569 = vrot.slane %v373, 1
      %v570 = vrot.slane %v374, 1
      %v571 = vsel %vm439, %v569, %v570
      %v572 = vrot.slane %v375, 1
      %v573 = vrot.slane %v376, 1
      %v574 = vsel %vm439, %v572, %v573
      %v575 = vrot.slane %v377, 1
      %v576 = vrot.slane %v378, 1
      %v577 = vsel %vm439, %v575, %v576
      %v578 = vrot.slane %v379, 1
      %v579 = vrot.slane %v380, 1
      %v580 = vsel %vm439, %v578, %v579
      %v581 = vrot.slane %v381, 1
      %v582 = vrot.slane %v382, 1
      %v583 = vsel %vm439, %v581, %v582
      %584 = vrot.lane.b32.xlu0 %v562, 15
      %v585 = vpop.permute.xlu0 %584
      %586 = vrot.lane.b32.xlu0 %v565, 15
      %v587 = vpop.permute.xlu0 %586
      %588 = vrot.lane.b32.xlu0 %v568, 15
      %v589 = vpop.permute.xlu0 %588
      %590 = vrot.lane.b32.xlu0 %v571, 15
      %v591 = vpop.permute.xlu0 %590
      %592 = vrot.lane.b32.xlu0 %v574, 15
      %v593 = vpop.permute.xlu0 %592
      %594 = vrot.lane.b32.xlu0 %v577, 15
      %v595 = vpop.permute.xlu0 %594
      %596 = vrot.lane.b32.xlu0 %v580, 15
      %v597 = vpop.permute.xlu0 %596
      %598 = vrot.lane.b32.xlu0 %v583, 15
      %v599 = vpop.permute.xlu0 %598
      %609 = vrot.lane.b32.xlu0 %v342, 18
      %v610 = vpop.permute.xlu0 %609
      %611 = vrot.lane.b32.xlu0 %v344, 18
      %v612 = vpop.permute.xlu0 %611
      %613 = vrot.lane.b32.xlu0 %v346, 18
      %v614 = vpop.permute.xlu0 %613
      %615 = vrot.lane.b32.xlu0 %v348, 18
      %v616 = vpop.permute.xlu0 %615
      %617 = vrot.lane.b32.xlu0 %v350, 18
      %v618 = vpop.permute.xlu0 %617
      %619 = vrot.lane.b32.xlu0 %v352, 18
      %v620 = vpop.permute.xlu0 %619
      %621 = vrot.lane.b32.xlu0 %v354, 18
      %v622 = vpop.permute.xlu0 %621
      %623 = vrot.lane.b32.xlu0 %v356, 18
      %v624 = vpop.permute.xlu0 %623
      %634 = vrot.lane.b32.xlu0 %v359, 21
      %v635 = vpop.permute.xlu0 %634
      %636 = vrot.lane.b32.xlu0 %v360, 21
      %v637 = vpop.permute.xlu0 %636
      %638 = vrot.lane.b32.xlu0 %v361, 21
      %v639 = vpop.permute.xlu0 %638
      %640 = vrot.lane.b32.xlu0 %v362, 21
      %v641 = vpop.permute.xlu0 %640
      %642 = vrot.lane.b32.xlu0 %v363, 21
      %v643 = vpop.permute.xlu0 %642
      %644 = vrot.lane.b32.xlu0 %v364, 21
      %v645 = vpop.permute.xlu0 %644
      %646 = vrot.lane.b32.xlu0 %v365, 21
      %v647 = vpop.permute.xlu0 %646
      %648 = vrot.lane.b32.xlu0 %v366, 21
      %v649 = vpop.permute.xlu0 %648
      %v659 = vrot.slane %v356, 1
      %v660 = vrot.slane %v357, 1
      %v661 = vsel %vm439, %v659, %v660
      %662 = vrot.lane.b32.xlu0 %v445, 24
      %v663 = vpop.permute.xlu0 %662
      %664 = vrot.lane.b32.xlu0 %v448, 24
      %v665 = vpop.permute.xlu0 %664
      %666 = vrot.lane.b32.xlu0 %v451, 24
      %v667 = vpop.permute.xlu0 %666
      %668 = vrot.lane.b32.xlu0 %v454, 24
      %v669 = vpop.permute.xlu0 %668
      %670 = vrot.lane.b32.xlu0 %v457, 24
      %v671 = vpop.permute.xlu0 %670
      %672 = vrot.lane.b32.xlu0 %v460, 24
      %v673 = vpop.permute.xlu0 %672
      %674 = vrot.lane.b32.xlu0 %v463, 24
      %v675 = vpop.permute.xlu0 %674
      %676 = vrot.lane.b32.xlu0 %v661, 24
      %v677 = vpop.permute.xlu0 %676
      %vm686 = vcmask 23552
      %v687 = vsel %vm686, %v340, %v400
      %v688 = vsel %vm686, %v342, %v402
      %v689 = vsel %vm686, %v344, %v404
      %v690 = vsel %vm686, %v346, %v406
      %v691 = vsel %vm686, %v348, %v408
      %v692 = vsel %vm686, %v350, %v410
      %v693 = vsel %vm686, %v352, %v412
      %v694 = vsel %vm686, %v354, %v414
      %vm695 = vcmask 48128
      %v696 = vsel %vm695, %v687, %v465
      %v697 = vsel %vm695, %v688, %v467
      %v698 = vsel %vm695, %v689, %v469
      %v699 = vsel %vm695, %v690, %v471
      %v700 = vsel %vm695, %v691, %v473
      %v701 = vsel %vm695, %v692, %v475
      %v702 = vsel %vm695, %v693, %v477
      %v703 = vsel %vm695, %v694, %v479
      %vm704 = vcmask 72704
      %v705 = vsel %vm704, %v696, %v497
      %v706 = vsel %vm704, %v697, %v499
      %v707 = vsel %vm704, %v698, %v501
      %v708 = vsel %vm704, %v699, %v503
      %v709 = vsel %vm704, %v700, %v505
      %v710 = vsel %vm704, %v701, %v507
      %v711 = vsel %vm704, %v702, %v509
      %v712 = vsel %vm704, %v703, %v511
      %vm713 = vcmask 97280
      %v714 = vsel %vm713, %v705, %v529
      %v715 = vsel %vm713, %v706, %v531
      %v716 = vsel %vm713, %v707, %v533
      %v717 = vsel %vm713, %v708, %v535
      %v718 = vsel %vm713, %v709, %v537
      %v719 = vsel %vm713, %v710, %v539
      %v720 = vsel %vm713, %v711, %v541
      %v721 = vsel %vm713, %v712, %v543
      %vm722 = vcmask 121856
      %v723 = vsel %vm722, %v714, %v585
      %v724 = vsel %vm722, %v715, %v587
      %v725 = vsel %vm722, %v716, %v589
      %v726 = vsel %vm722, %v717, %v591
      %v727 = vsel %vm722, %v718, %v593
      %v728 = vsel %vm722, %v719, %v595
      %v729 = vsel %vm722, %v720, %v597
      %v730 = vsel %vm722, %v721, %v599
      %vm731 = vcmask 146432
      %v732 = vsel %vm731, %v723, %v610
      %v733 = vsel %vm731, %v724, %v612
      %v734 = vsel %vm731, %v725, %v614
      %v735 = vsel %vm731, %v726, %v616
      %v736 = vsel %vm731, %v727, %v618
      %v737 = vsel %vm731, %v728, %v620
      %v738 = vsel %vm731, %v729, %v622
      %v739 = vsel %vm731, %v730, %v624
      %vm740 = vcmask 171008
      %v741 = vsel %vm740, %v732, %v635
      %v742 = vsel %vm740, %v733, %v637
      %v743 = vsel %vm740, %v734, %v639
      %v744 = vsel %vm740, %v735, %v641
      %v745 = vsel %vm740, %v736, %v643
      %v746 = vsel %vm740, %v737, %v645
      %v747 = vsel %vm740, %v738, %v647
      %v748 = vsel %vm740, %v739, %v649
      %vm749 = vcmask 195584
      %v750 = vsel %vm749, %v741, %v663
      %v751 = vsel %vm749, %v742, %v665
      %v752 = vsel %vm749, %v743, %v667
      %v753 = vsel %vm749, %v744, %v669
      %v754 = vsel %vm749, %v745, %v671
      %v755 = vsel %vm749, %v746, %v673
      %v756 = vsel %vm749, %v747, %v675
      %v757 = vsel %vm749, %v748, %v677
      %v758 = vpack.c.bf16 %v751, %v750
      %v759 = vpack.c.bf16 %v753, %v752
      %v760 = vpack.c.bf16 %v755, %v754
      %v761 = vpack.c.bf16 %v757, %v756
      %v762 = vld [vmem:[%s4] sm:$0xf]
      %v763 = vld [vmem:[%s4 + $0x4] sm:$0xf]
      %v764 = vld [vmem:[%s4 + $0x8] sm:$0xf]
      %v765 = vld [vmem:[%s4 + $0xc] sm:$0x3]
      %v770 = vunpack.c.l.b16 %v762
      %v771 = vunpack.c.l.b16 %v763
      %v772 = vunpack.c.l.b16 %v764
      %v773 = vunpack.c.l.b16 %v765
      %v774 = vpack.c.b16 %v771, %v770
      %v775 = vpack.c.b16 %v773, %v772
      %vm777 = vcmask 220160
      %v779 = vsel %vm777, %v758, 0
      %v782 = vsel %vm777, %v759, 0
      %v785 = vsel %vm777, %v760, 0
      %v788 = vsel %vm777, %v761, 0
      %vm790 = vcmask 1044480
      %vm791 = vcmask 1045504
      %v792 = vsel %vm790, 4294967295, 65535
      %v793 = vsel %vm791, %v792, 0
      %v795 = vand.u32 %v775, %v793
      %797 = vmatprep.subr.bf16.mxu0 0
      %798 = vmatpush1.bf16.msra.mxu0 %v774
      %799 = vmatprep.subr.bf16.mxu0 0
      %800 = vmatpush1.bf16.msra.mxu0 %v795
      %801 = vmatprep.subr.bf16.mxu0 0
      %802 = vmatpush1.bf16.msra.mxu0 0
      %803 = vmatprep.subr.bf16.mxu0 0
      %804 = vmatpush1.bf16.msra.mxu0 0
      %805 = vmatprep.subr.bf16.mxu0 0
      %806 = vmatpush1.bf16.msra.mxu0 0
      %807 = vmatprep.subr.bf16.mxu0 0
      %808 = vmatpush1.bf16.msra.mxu0 0
      %809 = vmatprep.subr.bf16.mxu0 0
      %810 = vmatpush1.bf16.msra.mxu0 0
      %811 = vmatprep.subr.bf16.mxu0 0
      %812 = vmatpush1.bf16.msra.mxu0 0
      %813 = vmatprep.subr.bf16.mxu0 0
      %814 = vmatpush1.bf16.msra.mxu0 0
      %815 = vmatprep.subr.bf16.mxu0 0
      %816 = vmatpush1.bf16.msra.mxu0 0
      %817 = vmatprep.subr.bf16.mxu0 0
      %818 = vmatpush1.bf16.msra.mxu0 0
      %819 = vmatprep.subr.bf16.mxu0 0
      %820 = vmatpush1.bf16.msra.mxu0 0
      %821 = vmatprep.subr.bf16.mxu0 0
      %822 = vmatpush1.bf16.msra.mxu0 0
      %823 = vmatprep.subr.bf16.mxu0 0
      %824 = vmatpush1.bf16.msra.mxu0 0
      %825 = vmatprep.subr.bf16.mxu0 0
      %826 = vmatpush1.bf16.msra.mxu0 0
      %827 = vmatprep.subr.bf16.mxu0 0
      %828 = vmatpush1.bf16.msra.mxu0 0
      %829 = vmatprep.mubr.bf16.mxu0 0
      %830 = vmatmul.mubr.bf16.gmra.mrb[0].mxu0 %v779
      %v831 = vpop.f32.mrb[0].mxu0
      %v832 = vadd.f32 0.0, %v831
      %v833 = vpop.f32.mrb[0].mxu0
      %v834 = vpop.f32.mrb[0].mxu0
      %v835 = vadd.f32 0.0, %v834
      %v836 = vpop.f32.mrb[0].mxu0
      %837 = vmatprep.mubr.bf16.mxu0 0
      %838 = vmatmul.mubr.bf16.gmra.mrb[0].mxu0 %v782
      %v839 = vpop.f32.mrb[0].mxu0
      %v840 = vadd.f32 0.0, %v839
      %v841 = vpop.f32.mrb[0].mxu0
      %v842 = vpop.f32.mrb[0].mxu0
      %v843 = vadd.f32 0.0, %v842
      %v844 = vpop.f32.mrb[0].mxu0
      %845 = vmatprep.mubr.bf16.mxu0 0
      %846 = vmatmul.mubr.bf16.gmra.mrb[0].mxu0 %v785
      %v847 = vpop.f32.mrb[0].mxu0
      %v848 = vadd.f32 0.0, %v847
      %v849 = vpop.f32.mrb[0].mxu0
      %v850 = vpop.f32.mrb[0].mxu0
      %v851 = vadd.f32 0.0, %v850
      %v852 = vpop.f32.mrb[0].mxu0
      %853 = vmatprep.mubr.bf16.mxu0 0
      %854 = vmatmul.mubr.bf16.gmra.mrb[0].mxu0 %v788
      %v855 = vpop.f32.mrb[0].mxu0
      %v856 = vadd.f32 0.0, %v855
      %v857 = vpop.f32.mrb[0].mxu0
      %v858 = vpop.f32.mrb[0].mxu0
      %v859 = vadd.f32 0.0, %v858
      %v860 = vpop.f32.mrb[0].mxu0
      %861 = vdwg.mxu0
      %v862 = vld [vmem:[%s5] sm:$0x1]
      %v864 = vlaneseq
      %v865 = vshrl.u32 %v864, 7
      %v866 = vsub.s32 0, %v865
      %v867 = vrot.slane %v862, %v866
      %v869 = vmul.f32 %v832, %v867
      %v870 = vmul.f32 %v835, %v867
      %v871 = vmul.f32 %v840, %v867
      %v872 = vmul.f32 %v843, %v867
      %v873 = vmul.f32 %v848, %v867
      %v874 = vmul.f32 %v851, %v867
      %v875 = vmul.f32 %v856, %v867
      %v876 = vmul.f32 %v859, %v867
      %v877 = vld [vmem:[%s6] sm:$0x1]
      %v879 = vlaneseq
      %v880 = vshrl.u32 %v879, 7
      %v881 = vsub.s32 0, %v880
      %v882 = vrot.slane %v877, %v881
      %v884 = vadd.f32 %v869, %v882
      %v885 = vadd.f32 %v870, %v882
      %v886 = vadd.f32 %v871, %v882
      %v887 = vadd.f32 %v872, %v882
      %v888 = vadd.f32 %v873, %v882
      %v889 = vadd.f32 %v874, %v882
      %v890 = vadd.f32 %v875, %v882
      %v891 = vadd.f32 %v876, %v882
      %v892 = vmax.f32 %v884, 0.0
      %v893 = vmax.f32 %v885, 0.0
      %v894 = vmax.f32 %v886, 0.0
      %v895 = vmax.f32 %v887, 0.0
      %v896 = vmax.f32 %v888, 0.0
      %v897 = vmax.f32 %v889, 0.0
      %v898 = vmax.f32 %v890, 0.0
      %v899 = vmax.f32 %v891, 0.0
      %vm900 = vcmask 64512
      %901 = vst.msk [vmem:[%s338] sm:$0xff] %vm900, %v892
      %902 = vst.msk [vmem:[%s338 + $0x8] sm:$0xff] %vm900, %v893
      %903 = vst.msk [vmem:[%s338 + $0x10] sm:$0xff] %vm900, %v894
      %904 = vst.msk [vmem:[%s338 + $0x18] sm:$0xff] %vm900, %v895
      %905 = vst.msk [vmem:[%s338 + $0x20] sm:$0xff] %vm900, %v896
      %906 = vst.msk [vmem:[%s338 + $0x28] sm:$0xff] %vm900, %v897
      %907 = vst.msk [vmem:[%s338 + $0x30] sm:$0xff] %vm900, %v898
      %908 = vst.msk [vmem:[%s338 + $0x38] sm:$0xff] %vm900, %v899
      %p909 = scmp.lt.s32.totalorder %s18, 1
      %s910 = scalar_select %p909, %s18, 1
      %s911 = smul.addr %s910, 8
      %s912 = smul.addr %s911, 8
      %s913 = scalar_lea.vmem %s7, %s912
      // Predicated region
      $region49: #{tokenpose_b_forward.3} parent=47 // pred_check
        %p914 = pneg %p203
      $region50: #{tokenpose_b_forward.3} parent=47 // pred_check_branch
        %916 = sbr.rel (%p914) target = $region52
      $region51: #{tokenpose_b_forward.3} parent=47 // pred_region
        _
      $region52: #{tokenpose_b_forward.3} parent=47 // pred_fallthru
        _
    $region48: #{tokenpose_b_forward.3} parent=5 // pred_fallthru
      _
    %p917 = scmp.le.s32.totalorder 2, %s13
    // Predicated region
    $region53: #{tokenpose_b_forward.3} parent=5 // pred_check
      %p918 = pneg %p917
    $region54: #{tokenpose_b_forward.3} parent=5 // pred_check_branch
      %920 = sbr.rel (%p918) target = $region56
    $region55: #{tokenpose_b_forward.3} parent=5 // pred_region
      %s921 = ssub.s32 %s13, 2
      // Predicated region
      $region57: #{tokenpose_b_forward.3} parent=55 // pred_check
        %p922 = pneg %p209
      $region58: #{tokenpose_b_forward.3} parent=55 // pred_check_branch
        %924 = sbr.rel (%p922) target = $region60
      $region59: #{tokenpose_b_forward.3} parent=55 // pred_region
        %p925 = scmp.lt.s32.totalorder %s19, 1
        %s926 = scalar_select %p925, %s19, 1
        %s927 = smul.addr %s926, 8
        %s928 = smul.addr %s927, 8
        %s929 = scalar_lea.vmem %s7, %s928
      $region60: #{tokenpose_b_forward.3} parent=55 // pred_fallthru
        _
    $region56: #{tokenpose_b_forward.3} parent=5 // pred_fallthru
      _
  $region6: #{tokenpose_b_forward.3} parent=0 // loop_footer
    %s17 = sadd.s32 1, %s13
  $region7: #{tokenpose_b_forward.3} parent=0 // loop_footer_branch
    %12 = sbr.rel target = $region3
  $region8: #{tokenpose_b_forward.3} parent=0 // loop_exit
    _

// kernel: tokenpose_b_forward.5
$region0: #{tokenpose_b_forward.5}
  #allocation0 [shape = 'u32[]', space=smem, size = 0x4, offset = 0x4, fixed_abs, tag = 'smem constant byte address 0x4 - core index']
  #allocation1 [shape = 'u32[144,128]{1,0:T(1,128)}', space=vmem, size = 0x12000, scoped, tag = 'internal scratch']
  #allocation2 [shape = 'f32[8,128]{1,0:T(8,128)}', space=vmem, size = 0x1000, scoped, tag = 'scratch operand']
  %s0 = inlined_call_operand.vmem [shape: bf16[2,4,32], index: 0, kind: input, shape index: {}]
  %s1 = inlined_call_operand.vmem [shape: bf16[32,128], index: 1, kind: input, shape index: {}]
  %s2 = inlined_call_operand.vmem [shape: f32[1,128], index: 2, kind: input, shape index: {}]
  %s3 = inlined_call_operand.vmem [shape: f32[4,128], index: 3, kind: input, shape index: {}]
  %s4 = inlined_call_operand.vmem [shape: f32[8,128], index: 4, kind: input, shape index: {}]
  %s5 = inlined_call_operand.vmem [shape: f32[2,1,128], index: 5, kind: input, shape index: {}]
  %s6 = inlined_call_operand.vmem [shape: f32[2,1,128], index: 6, kind: input, shape index: {}]
  %s7 = inlined_call_operand.vmem [shape: bf16[2,2,128,64], index: 7, kind: input, shape index: {}]
  %s8 = inlined_call_operand.vmem [shape: bf16[2,2,128,64], index: 8, kind: input, shape index: {}]
  %s9 = inlined_call_operand.vmem [shape: bf16[2,2,128,64], index: 9, kind: input, shape index: {}]
  %s10 = inlined_call_operand.vmem [shape: bf16[2,2,64,128], index: 10, kind: input, shape index: {}]
  %s11 = inlined_call_operand.vmem [shape: f32[2,1,128], index: 11, kind: input, shape index: {}]
  %s12 = inlined_call_operand.vmem [shape: f32[2,1,128], index: 12, kind: input, shape index: {}]
  %s13 = inlined_call_operand.vmem [shape: f32[2,1,128], index: 13, kind: input, shape index: {}]
  %s14 = inlined_call_operand.vmem [shape: bf16[2,128,128], index: 14, kind: input, shape index: {}]
  %s15 = inlined_call_operand.vmem [shape: f32[2,1,128], index: 15, kind: input, shape index: {}]
  %s16 = inlined_call_operand.vmem [shape: bf16[2,128,128], index: 16, kind: input, shape index: {}]
  %s17 = inlined_call_operand.vmem [shape: f32[2,1,128], index: 17, kind: input, shape index: {}]
  %s18 = inlined_call_operand.vmem [shape: f32[1,128], index: 18, kind: input, shape index: {}]
  %s19 = inlined_call_operand.vmem [shape: f32[1,128], index: 19, kind: input, shape index: {}]
  %s20 = inlined_call_operand.vmem [shape: bf16[128,64], index: 20, kind: input, shape index: {}]
  %s21 = inlined_call_operand.vmem [shape: f32[1,64], index: 21, kind: input, shape index: {}]
  %s22 = inlined_call_operand.vmem [shape: f32[2,4,64], index: 22, kind: output, shape index: {}]
  %s23 = sld [smem:[#allocation0]]
  $region129: #{tokenpose_b_forward.5} parent=0
    _
  %s25 = ssub.s32 1, %s23
  %s26 = scalar_select 0, %s25, %s23
  loop: start=0, step=1, limit=6
  $region2: #{tokenpose_b_forward.5} parent=0 // loop_pre_header
    _
  $region3: #{tokenpose_b_forward.5} parent=0 // loop_header
    %s28 = sphi 0, %s32
    %p29 = scmp.ge.s32.totalorder %s28, 6
    %s35 = sphi 0, %s47
    %s36 = sphi 0, %s43
    %s37 = sphi 0, %s35
    %s38 = sphi 0, %s36
    %s39 = sphi 0, %s37
    %s40 = sphi 0, %s38
    %s50 = sphi 0, %s52
    %s53 = sphi 0, %s50
    %s54 = sphi 0, %s53
    %s70 = sphi 0, %s54
    %s74 = sphi 0, %s74
    %s76 = sphi 0, %s74
    %s77 = sphi 0, %s76
    %s91 = sphi 0, %s77
    %s95 = sphi 0, %s95
    %s97 = sphi 0, %s95
    %s98 = sphi 0, %s97
    %s112 = sphi 0, %s98
    %s116 = sphi 0, %s116
    %s118 = sphi 0, %s116
    %s119 = sphi 0, %s118
    %s133 = sphi 0, %s119
    %s137 = sphi 0, %s137
    %s139 = sphi 0, %s137
    %s140 = sphi 0, %s139
    %s154 = sphi 0, %s140
    %s160 = sphi 0, %s162
    %s163 = sphi 0, %s160
    %s164 = sphi 0, %s163
    %s180 = sphi 0, %s164
    %s186 = sphi 0, %s188
    %s189 = sphi 0, %s186
    %s190 = sphi 0, %s189
    %s206 = sphi 0, %s190
    %s212 = sphi 0, %s214
    %s215 = sphi 0, %s212
    %s216 = sphi 0, %s215
    %s232 = sphi 0, %s216
    %s238 = sphi 0, %s240
    %s241 = sphi 0, %s238
    %s242 = sphi 0, %s241
    %s258 = sphi 0, %s242
    %s264 = sphi 0, %s266
    %s267 = sphi 0, %s264
    %s268 = sphi 0, %s267
    %s284 = sphi 0, %s268
    %s290 = sphi 0, %s292
    %s293 = sphi 0, %s290
    %s294 = sphi 0, %s293
    %s310 = sphi 0, %s294
    %s316 = sphi 0, %s318
    %s319 = sphi 0, %s316
    %s320 = sphi 0, %s319
    %s336 = sphi 0, %s320
    %s342 = sphi 0, %s344
    %s345 = sphi 0, %s342
    %s346 = sphi 0, %s345
    %s362 = sphi 0, %s346
    %s368 = sphi 0, %s370
    %s371 = sphi 0, %s368
    %s372 = sphi 0, %s371
    %s388 = sphi 0, %s372
    %s394 = sphi 0, %s396
    %s397 = sphi 0, %s394
    %s398 = sphi 0, %s397
    %s414 = sphi 0, %s398
    %s420 = sphi 0, %s422
    %s423 = sphi 0, %s420
    %s424 = sphi 0, %s423
    %s440 = sphi 0, %s424
    %s446 = sphi 0, %s448
    %s449 = sphi 0, %s446
    %s450 = sphi 0, %s449
    %s466 = sphi 0, %s450
    %s472 = sphi 0, %s474
    %s475 = sphi 0, %s472
    %s476 = sphi 0, %s475
    %s492 = sphi 0, %s476
    %s496 = sphi 0, %s496
    %s498 = sphi 0, %s496
    %s499 = sphi 0, %s498
    %s513 = sphi 0, %s499
    %s517 = sphi 0, %s517
    %s519 = sphi 0, %s517
    %s520 = sphi 0, %s519
    %s534 = sphi 0, %s520
    %s538 = sphi 0, %s538
    %s540 = sphi 0, %s538
    %s541 = sphi 0, %s540
    %s555 = sphi 0, %s541
    %s559 = sphi 0, %s559
    %s561 = sphi 0, %s559
    %s562 = sphi 0, %s561
    %s576 = sphi 0, %s562
    %s582 = sphi 0, %s584
    %s585 = sphi 0, %s582
    %s586 = sphi 0, %s585
    %s602 = sphi 0, %s586
  $region4: #{tokenpose_b_forward.5} parent=0 // loop_header_branch
    %31 = sbr.rel (%p29) target = $region8
  $region5: #{tokenpose_b_forward.5} parent=0 // loop_body
    %s33 = ssub.s32 %s28, 1
    %s34 = ssub.s32 %s28, 2
    %s41 = sadd.s32 1, %s36
    %p42 = scmp.ge.s32.totalorder %s41, 2
    %s43 = scalar_select %p42, 0, %s41
    %s44 = sadd.s32 1, %s35
    %s45 = scalar_select %p42, %s44, %s35
    %p46 = scmp.ge.s32.totalorder %s45, 2
    %s47 = scalar_select %p46, 0, %s45
    %s48 = ssub.s32 %s35, %s47
    %p49 = scmp.eq.s32.totalorder %s48, 0
    %s51 = sadd.s32 %s50, 1
    %s52 = scalar_select %p49, %s50, %s51
    %p55 = pneg %p49
    %p56 = scmp.eq.s32.totalorder %s28, 3
    %p57 = por %p55, %p56
    %p58 = scmp.ne.s32.totalorder %s50, %s53
    %p59 = scmp.eq.s32.totalorder %s28, 0
    %p60 = por %p58, %p59
    %p61 = scmp.ne.s32.totalorder %s50, %s53
    %p62 = scmp.eq.s32.totalorder %s33, 3
    %p63 = por %p61, %p62
    %p64 = scmp.ne.s32.totalorder %s53, %s54
    %p65 = scmp.eq.s32.totalorder %s33, 0
    %p66 = por %p64, %p65
    %p67 = scmp.ne.s32.totalorder %s53, %s54
    %p68 = scmp.eq.s32.totalorder %s34, 3
    %p69 = por %p67, %p68
    %p71 = scmp.ne.s32.totalorder %s54, %s70
    %p72 = scmp.eq.s32.totalorder %s34, 0
    %p73 = por %p71, %p72
    %s75 = sadd.s32 %s74, 1
    %p78 = scmp.eq.s32.totalorder %s28, 3
    %p79 = scmp.ne.s32.totalorder %s74, %s76
    %p80 = scmp.eq.s32.totalorder %s28, 0
    %p81 = por %p79, %p80
    %p82 = scmp.ne.s32.totalorder %s74, %s76
    %p83 = scmp.eq.s32.totalorder %s33, 3
    %p84 = por %p82, %p83
    %p85 = scmp.ne.s32.totalorder %s76, %s77
    %p86 = scmp.eq.s32.totalorder %s33, 0
    %p87 = por %p85, %p86
    %p88 = scmp.ne.s32.totalorder %s76, %s77
    %p89 = scmp.eq.s32.totalorder %s34, 3
    %p90 = por %p88, %p89
    %p92 = scmp.ne.s32.totalorder %s77, %s91
    %p93 = scmp.eq.s32.totalorder %s34, 0
    %p94 = por %p92, %p93
    %s96 = sadd.s32 %s95, 1
    %p99 = scmp.eq.s32.totalorder %s28, 3
    %p100 = scmp.ne.s32.totalorder %s95, %s97
    %p101 = scmp.eq.s32.totalorder %s28, 0
    %p102 = por %p100, %p101
    %p103 = scmp.ne.s32.totalorder %s95, %s97
    %p104 = scmp.eq.s32.totalorder %s33, 3
    %p105 = por %p103, %p104
    %p106 = scmp.ne.s32.totalorder %s97, %s98
    %p107 = scmp.eq.s32.totalorder %s33, 0
    %p108 = por %p106, %p107
    %p109 = scmp.ne.s32.totalorder %s97, %s98
    %p110 = scmp.eq.s32.totalorder %s34, 3
    %p111 = por %p109, %p110
    %p113 = scmp.ne.s32.totalorder %s98, %s112
    %p114 = scmp.eq.s32.totalorder %s34, 0
    %p115 = por %p113, %p114
    %s117 = sadd.s32 %s116, 1
    %p120 = scmp.eq.s32.totalorder %s28, 3
    %p121 = scmp.ne.s32.totalorder %s116, %s118
    %p122 = scmp.eq.s32.totalorder %s28, 0
    %p123 = por %p121, %p122
    %p124 = scmp.ne.s32.totalorder %s116, %s118
    %p125 = scmp.eq.s32.totalorder %s33, 3
    %p126 = por %p124, %p125
    %p127 = scmp.ne.s32.totalorder %s118, %s119
    %p128 = scmp.eq.s32.totalorder %s33, 0
    %p129 = por %p127, %p128
    %p130 = scmp.ne.s32.totalorder %s118, %s119
    %p131 = scmp.eq.s32.totalorder %s34, 3
    %p132 = por %p130, %p131
    %p134 = scmp.ne.s32.totalorder %s119, %s133
    %p135 = scmp.eq.s32.totalorder %s34, 0
    %p136 = por %p134, %p135
    %s138 = sadd.s32 %s137, 1
    %p141 = scmp.eq.s32.totalorder %s28, 3
    %p142 = scmp.ne.s32.totalorder %s137, %s139
    %p143 = scmp.eq.s32.totalorder %s28, 0
    %p144 = por %p142, %p143
    %p145 = scmp.ne.s32.totalorder %s137, %s139
    %p146 = scmp.eq.s32.totalorder %s33, 3
    %p147 = por %p145, %p146
    %p148 = scmp.ne.s32.totalorder %s139, %s140
    %p149 = scmp.eq.s32.totalorder %s33, 0
    %p150 = por %p148, %p149
    %p151 = scmp.ne.s32.totalorder %s139, %s140
    %p152 = scmp.eq.s32.totalorder %s34, 3
    %p153 = por %p151, %p152
    %p155 = scmp.ne.s32.totalorder %s140, %s154
    %p156 = scmp.eq.s32.totalorder %s34, 0
    %p157 = por %p155, %p156
    %s158 = ssub.s32 %s36, %s43
    %p159 = scmp.eq.s32.totalorder %s158, 0
    %s161 = sadd.s32 %s160, 1
    %s162 = scalar_select %p159, %s160, %s161
    %p165 = pneg %p159
    %p166 = scmp.eq.s32.totalorder %s28, 3
    %p167 = por %p165, %p166
    %p168 = scmp.ne.s32.totalorder %s160, %s163
    %p169 = scmp.eq.s32.totalorder %s28, 0
    %p170 = por %p168, %p169
    %p171 = scmp.ne.s32.totalorder %s160, %s163
    %p172 = scmp.eq.s32.totalorder %s33, 3
    %p173 = por %p171, %p172
    %p174 = scmp.ne.s32.totalorder %s163, %s164
    %p175 = scmp.eq.s32.totalorder %s33, 0
    %p176 = por %p174, %p175
    %p177 = scmp.ne.s32.totalorder %s163, %s164
    %p178 = scmp.eq.s32.totalorder %s34, 3
    %p179 = por %p177, %p178
    %p181 = scmp.ne.s32.totalorder %s164, %s180
    %p182 = scmp.eq.s32.totalorder %s34, 0
    %p183 = por %p181, %p182
    %s184 = ssub.s32 %s36, %s43
    %p185 = scmp.eq.s32.totalorder %s184, 0
    %s187 = sadd.s32 %s186, 1
    %s188 = scalar_select %p185, %s186, %s187
    %p191 = pneg %p185
    %p192 = scmp.eq.s32.totalorder %s28, 3
    %p193 = por %p191, %p192
    %p194 = scmp.ne.s32.totalorder %s186, %s189
    %p195 = scmp.eq.s32.totalorder %s28, 0
    %p196 = por %p194, %p195
    %p197 = scmp.ne.s32.totalorder %s186, %s189
    %p198 = scmp.eq.s32.totalorder %s33, 3
    %p199 = por %p197, %p198
    %p200 = scmp.ne.s32.totalorder %s189, %s190
    %p201 = scmp.eq.s32.totalorder %s33, 0
    %p202 = por %p200, %p201
    %p203 = scmp.ne.s32.totalorder %s189, %s190
    %p204 = scmp.eq.s32.totalorder %s34, 3
    %p205 = por %p203, %p204
    %p207 = scmp.ne.s32.totalorder %s190, %s206
    %p208 = scmp.eq.s32.totalorder %s34, 0
    %p209 = por %p207, %p208
    %s210 = ssub.s32 %s36, %s43
    %p211 = scmp.eq.s32.totalorder %s210, 0
    %s213 = sadd.s32 %s212, 1
    %s214 = scalar_select %p211, %s212, %s213
    %p217 = pneg %p211
    %p218 = scmp.eq.s32.totalorder %s28, 3
    %p219 = por %p217, %p218
    %p220 = scmp.ne.s32.totalorder %s212, %s215
    %p221 = scmp.eq.s32.totalorder %s28, 0
    %p222 = por %p220, %p221
    %p223 = scmp.ne.s32.totalorder %s212, %s215
    %p224 = scmp.eq.s32.totalorder %s33, 3
    %p225 = por %p223, %p224
    %p226 = scmp.ne.s32.totalorder %s215, %s216
    %p227 = scmp.eq.s32.totalorder %s33, 0
    %p228 = por %p226, %p227
    %p229 = scmp.ne.s32.totalorder %s215, %s216
    %p230 = scmp.eq.s32.totalorder %s34, 3
    %p231 = por %p229, %p230
    %p233 = scmp.ne.s32.totalorder %s216, %s232
    %p234 = scmp.eq.s32.totalorder %s34, 0
    %p235 = por %p233, %p234
    %s236 = ssub.s32 %s36, %s43
    %p237 = scmp.eq.s32.totalorder %s236, 0
    %s239 = sadd.s32 %s238, 1
    %s240 = scalar_select %p237, %s238, %s239
    %p243 = pneg %p237
    %p244 = scmp.eq.s32.totalorder %s28, 3
    %p245 = por %p243, %p244
    %p246 = scmp.ne.s32.totalorder %s238, %s241
    %p247 = scmp.eq.s32.totalorder %s28, 0
    %p248 = por %p246, %p247
    %p249 = scmp.ne.s32.totalorder %s238, %s241
    %p250 = scmp.eq.s32.totalorder %s33, 3
    %p251 = por %p249, %p250
    %p252 = scmp.ne.s32.totalorder %s241, %s242
    %p253 = scmp.eq.s32.totalorder %s33, 0
    %p254 = por %p252, %p253
    %p255 = scmp.ne.s32.totalorder %s241, %s242
    %p256 = scmp.eq.s32.totalorder %s34, 3
    %p257 = por %p255, %p256
    %p259 = scmp.ne.s32.totalorder %s242, %s258
    %p260 = scmp.eq.s32.totalorder %s34, 0
    %p261 = por %p259, %p260
    %s262 = ssub.s32 %s36, %s43
    %p263 = scmp.eq.s32.totalorder %s262, 0
    %s265 = sadd.s32 %s264, 1
    %s266 = scalar_select %p263, %s264, %s265
    %p269 = pneg %p263
    %p270 = scmp.eq.s32.totalorder %s28, 3
    %p271 = por %p269, %p270
    %p272 = scmp.ne.s32.totalorder %s264, %s267
    %p273 = scmp.eq.s32.totalorder %s28, 0
    %p274 = por %p272, %p273
    %p275 = scmp.ne.s32.totalorder %s264, %s267
    %p276 = scmp.eq.s32.totalorder %s33, 3
    %p277 = por %p275, %p276
    %p278 = scmp.ne.s32.totalorder %s267, %s268
    %p279 = scmp.eq.s32.totalorder %s33, 0
    %p280 = por %p278, %p279
    %p281 = scmp.ne.s32.totalorder %s267, %s268
    %p282 = scmp.eq.s32.totalorder %s34, 3
    %p283 = por %p281, %p282
    %p285 = scmp.ne.s32.totalorder %s268, %s284
    %p286 = scmp.eq.s32.totalorder %s34, 0
    %p287 = por %p285, %p286
    %s288 = ssub.s32 %s36, %s43
    %p289 = scmp.eq.s32.totalorder %s288, 0
    %s291 = sadd.s32 %s290, 1
    %s292 = scalar_select %p289, %s290, %s291
    %p295 = pneg %p289
    %p296 = scmp.eq.s32.totalorder %s28, 3
    %p297 = por %p295, %p296
    %p298 = scmp.ne.s32.totalorder %s290, %s293
    %p299 = scmp.eq.s32.totalorder %s28, 0
    %p300 = por %p298, %p299
    %p301 = scmp.ne.s32.totalorder %s290, %s293
    %p302 = scmp.eq.s32.totalorder %s33, 3
    %p303 = por %p301, %p302
    %p304 = scmp.ne.s32.totalorder %s293, %s294
    %p305 = scmp.eq.s32.totalorder %s33, 0
    %p306 = por %p304, %p305
    %p307 = scmp.ne.s32.totalorder %s293, %s294
    %p308 = scmp.eq.s32.totalorder %s34, 3
    %p309 = por %p307, %p308
    %p311 = scmp.ne.s32.totalorder %s294, %s310
    %p312 = scmp.eq.s32.totalorder %s34, 0
    %p313 = por %p311, %p312
    %s314 = ssub.s32 %s36, %s43
    %p315 = scmp.eq.s32.totalorder %s314, 0
    %s317 = sadd.s32 %s316, 1
    %s318 = scalar_select %p315, %s316, %s317
    %p321 = pneg %p315
    %p322 = scmp.eq.s32.totalorder %s28, 3
    %p323 = por %p321, %p322
    %p324 = scmp.ne.s32.totalorder %s316, %s319
    %p325 = scmp.eq.s32.totalorder %s28, 0
    %p326 = por %p324, %p325
    %p327 = scmp.ne.s32.totalorder %s316, %s319
    %p328 = scmp.eq.s32.totalorder %s33, 3
    %p329 = por %p327, %p328
    %p330 = scmp.ne.s32.totalorder %s319, %s320
    %p331 = scmp.eq.s32.totalorder %s33, 0
    %p332 = por %p330, %p331
    %p333 = scmp.ne.s32.totalorder %s319, %s320
    %p334 = scmp.eq.s32.totalorder %s34, 3
    %p335 = por %p333, %p334
    %p337 = scmp.ne.s32.totalorder %s320, %s336
    %p338 = scmp.eq.s32.totalorder %s34, 0
    %p339 = por %p337, %p338
    %s340 = ssub.s32 %s36, %s43
    %p341 = scmp.eq.s32.totalorder %s340, 0
    %s343 = sadd.s32 %s342, 1
    %s344 = scalar_select %p341, %s342, %s343
    %p347 = pneg %p341
    %p348 = scmp.eq.s32.totalorder %s28, 3
    %p349 = por %p347, %p348
    %p350 = scmp.ne.s32.totalorder %s342, %s345
    %p351 = scmp.eq.s32.totalorder %s28, 0
    %p352 = por %p350, %p351
    %p353 = scmp.ne.s32.totalorder %s342, %s345
    %p354 = scmp.eq.s32.totalorder %s33, 3
    %p355 = por %p353, %p354
    %p356 = scmp.ne.s32.totalorder %s345, %s346
    %p357 = scmp.eq.s32.totalorder %s33, 0
    %p358 = por %p356, %p357
    %p359 = scmp.ne.s32.totalorder %s345, %s346
    %p360 = scmp.eq.s32.totalorder %s34, 3
    %p361 = por %p359, %p360
    %p363 = scmp.ne.s32.totalorder %s346, %s362
    %p364 = scmp.eq.s32.totalorder %s34, 0
    %p365 = por %p363, %p364
    %s366 = ssub.s32 %s36, %s43
    %p367 = scmp.eq.s32.totalorder %s366, 0
    %s369 = sadd.s32 %s368, 1
    %s370 = scalar_select %p367, %s368, %s369
    %p373 = pneg %p367
    %p374 = scmp.eq.s32.totalorder %s28, 3
    %p375 = por %p373, %p374
    %p376 = scmp.ne.s32.totalorder %s368, %s371
    %p377 = scmp.eq.s32.totalorder %s28, 0
    %p378 = por %p376, %p377
    %p379 = scmp.ne.s32.totalorder %s368, %s371
    %p380 = scmp.eq.s32.totalorder %s33, 3
    %p381 = por %p379, %p380
    %p382 = scmp.ne.s32.totalorder %s371, %s372
    %p383 = scmp.eq.s32.totalorder %s33, 0
    %p384 = por %p382, %p383
    %p385 = scmp.ne.s32.totalorder %s371, %s372
    %p386 = scmp.eq.s32.totalorder %s34, 3
    %p387 = por %p385, %p386
    %p389 = scmp.ne.s32.totalorder %s372, %s388
    %p390 = scmp.eq.s32.totalorder %s34, 0
    %p391 = por %p389, %p390
    %s392 = ssub.s32 %s36, %s43
    %p393 = scmp.eq.s32.totalorder %s392, 0
    %s395 = sadd.s32 %s394, 1
    %s396 = scalar_select %p393, %s394, %s395
    %p399 = pneg %p393
    %p400 = scmp.eq.s32.totalorder %s28, 3
    %p401 = por %p399, %p400
    %p402 = scmp.ne.s32.totalorder %s394, %s397
    %p403 = scmp.eq.s32.totalorder %s28, 0
    %p404 = por %p402, %p403
    %p405 = scmp.ne.s32.totalorder %s394, %s397
    %p406 = scmp.eq.s32.totalorder %s33, 3
    %p407 = por %p405, %p406
    %p408 = scmp.ne.s32.totalorder %s397, %s398
    %p409 = scmp.eq.s32.totalorder %s33, 0
    %p410 = por %p408, %p409
    %p411 = scmp.ne.s32.totalorder %s397, %s398
    %p412 = scmp.eq.s32.totalorder %s34, 3
    %p413 = por %p411, %p412
    %p415 = scmp.ne.s32.totalorder %s398, %s414
    %p416 = scmp.eq.s32.totalorder %s34, 0
    %p417 = por %p415, %p416
    %s418 = ssub.s32 %s36, %s43
    %p419 = scmp.eq.s32.totalorder %s418, 0
    %s421 = sadd.s32 %s420, 1
    %s422 = scalar_select %p419, %s420, %s421
    %p425 = pneg %p419
    %p426 = scmp.eq.s32.totalorder %s28, 3
    %p427 = por %p425, %p426
    %p428 = scmp.ne.s32.totalorder %s420, %s423
    %p429 = scmp.eq.s32.totalorder %s28, 0
    %p430 = por %p428, %p429
    %p431 = scmp.ne.s32.totalorder %s420, %s423
    %p432 = scmp.eq.s32.totalorder %s33, 3
    %p433 = por %p431, %p432
    %p434 = scmp.ne.s32.totalorder %s423, %s424
    %p435 = scmp.eq.s32.totalorder %s33, 0
    %p436 = por %p434, %p435
    %p437 = scmp.ne.s32.totalorder %s423, %s424
    %p438 = scmp.eq.s32.totalorder %s34, 3
    %p439 = por %p437, %p438
    %p441 = scmp.ne.s32.totalorder %s424, %s440
    %p442 = scmp.eq.s32.totalorder %s34, 0
    %p443 = por %p441, %p442
    %s444 = ssub.s32 %s36, %s43
    %p445 = scmp.eq.s32.totalorder %s444, 0
    %s447 = sadd.s32 %s446, 1
    %s448 = scalar_select %p445, %s446, %s447
    %p451 = pneg %p445
    %p452 = scmp.eq.s32.totalorder %s28, 3
    %p453 = por %p451, %p452
    %p454 = scmp.ne.s32.totalorder %s446, %s449
    %p455 = scmp.eq.s32.totalorder %s28, 0
    %p456 = por %p454, %p455
    %p457 = scmp.ne.s32.totalorder %s446, %s449
    %p458 = scmp.eq.s32.totalorder %s33, 3
    %p459 = por %p457, %p458
    %p460 = scmp.ne.s32.totalorder %s449, %s450
    %p461 = scmp.eq.s32.totalorder %s33, 0
    %p462 = por %p460, %p461
    %p463 = scmp.ne.s32.totalorder %s449, %s450
    %p464 = scmp.eq.s32.totalorder %s34, 3
    %p465 = por %p463, %p464
    %p467 = scmp.ne.s32.totalorder %s450, %s466
    %p468 = scmp.eq.s32.totalorder %s34, 0
    %p469 = por %p467, %p468
    %s470 = ssub.s32 %s36, %s43
    %p471 = scmp.eq.s32.totalorder %s470, 0
    %s473 = sadd.s32 %s472, 1
    %s474 = scalar_select %p471, %s472, %s473
    %p477 = pneg %p471
    %p478 = scmp.eq.s32.totalorder %s28, 3
    %p479 = por %p477, %p478
    %p480 = scmp.ne.s32.totalorder %s472, %s475
    %p481 = scmp.eq.s32.totalorder %s28, 0
    %p482 = por %p480, %p481
    %p483 = scmp.ne.s32.totalorder %s472, %s475
    %p484 = scmp.eq.s32.totalorder %s33, 3
    %p485 = por %p483, %p484
    %p486 = scmp.ne.s32.totalorder %s475, %s476
    %p487 = scmp.eq.s32.totalorder %s33, 0
    %p488 = por %p486, %p487
    %p489 = scmp.ne.s32.totalorder %s475, %s476
    %p490 = scmp.eq.s32.totalorder %s34, 3
    %p491 = por %p489, %p490
    %p493 = scmp.ne.s32.totalorder %s476, %s492
    %p494 = scmp.eq.s32.totalorder %s34, 0
    %p495 = por %p493, %p494
    %s497 = sadd.s32 %s496, 1
    %p500 = scmp.eq.s32.totalorder %s28, 3
    %p501 = scmp.ne.s32.totalorder %s496, %s498
    %p502 = scmp.eq.s32.totalorder %s28, 0
    %p503 = por %p501, %p502
    %p504 = scmp.ne.s32.totalorder %s496, %s498
    %p505 = scmp.eq.s32.totalorder %s33, 3
    %p506 = por %p504, %p505
    %p507 = scmp.ne.s32.totalorder %s498, %s499
    %p508 = scmp.eq.s32.totalorder %s33, 0
    %p509 = por %p507, %p508
    %p510 = scmp.ne.s32.totalorder %s498, %s499
    %p511 = scmp.eq.s32.totalorder %s34, 3
    %p512 = por %p510, %p511
    %p514 = scmp.ne.s32.totalorder %s499, %s513
    %p515 = scmp.eq.s32.totalorder %s34, 0
    %p516 = por %p514, %p515
    %s518 = sadd.s32 %s517, 1
    %p521 = scmp.eq.s32.totalorder %s28, 3
    %p522 = scmp.ne.s32.totalorder %s517, %s519
    %p523 = scmp.eq.s32.totalorder %s28, 0
    %p524 = por %p522, %p523
    %p525 = scmp.ne.s32.totalorder %s517, %s519
    %p526 = scmp.eq.s32.totalorder %s33, 3
    %p527 = por %p525, %p526
    %p528 = scmp.ne.s32.totalorder %s519, %s520
    %p529 = scmp.eq.s32.totalorder %s33, 0
    %p530 = por %p528, %p529
    %p531 = scmp.ne.s32.totalorder %s519, %s520
    %p532 = scmp.eq.s32.totalorder %s34, 3
    %p533 = por %p531, %p532
    %p535 = scmp.ne.s32.totalorder %s520, %s534
    %p536 = scmp.eq.s32.totalorder %s34, 0
    %p537 = por %p535, %p536
    %s539 = sadd.s32 %s538, 1
    %p542 = scmp.eq.s32.totalorder %s28, 3
    %p543 = scmp.ne.s32.totalorder %s538, %s540
    %p544 = scmp.eq.s32.totalorder %s28, 0
    %p545 = por %p543, %p544
    %p546 = scmp.ne.s32.totalorder %s538, %s540
    %p547 = scmp.eq.s32.totalorder %s33, 3
    %p548 = por %p546, %p547
    %p549 = scmp.ne.s32.totalorder %s540, %s541
    %p550 = scmp.eq.s32.totalorder %s33, 0
    %p551 = por %p549, %p550
    %p552 = scmp.ne.s32.totalorder %s540, %s541
    %p553 = scmp.eq.s32.totalorder %s34, 3
    %p554 = por %p552, %p553
    %p556 = scmp.ne.s32.totalorder %s541, %s555
    %p557 = scmp.eq.s32.totalorder %s34, 0
    %p558 = por %p556, %p557
    %s560 = sadd.s32 %s559, 1
    %p563 = scmp.eq.s32.totalorder %s28, 3
    %p564 = scmp.ne.s32.totalorder %s559, %s561
    %p565 = scmp.eq.s32.totalorder %s28, 0
    %p566 = por %p564, %p565
    %p567 = scmp.ne.s32.totalorder %s559, %s561
    %p568 = scmp.eq.s32.totalorder %s33, 3
    %p569 = por %p567, %p568
    %p570 = scmp.ne.s32.totalorder %s561, %s562
    %p571 = scmp.eq.s32.totalorder %s33, 0
    %p572 = por %p570, %p571
    %p573 = scmp.ne.s32.totalorder %s561, %s562
    %p574 = scmp.eq.s32.totalorder %s34, 3
    %p575 = por %p573, %p574
    %p577 = scmp.ne.s32.totalorder %s562, %s576
    %p578 = scmp.eq.s32.totalorder %s34, 0
    %p579 = por %p577, %p578
    %s580 = ssub.s32 %s35, %s47
    %p581 = scmp.eq.s32.totalorder %s580, 0
    %s583 = sadd.s32 %s582, 1
    %s584 = scalar_select %p581, %s582, %s583
    %p587 = pneg %p581
    %p588 = scmp.eq.s32.totalorder %s28, 3
    %p589 = por %p587, %p588
    %p590 = scmp.ne.s32.totalorder %s582, %s585
    %p591 = scmp.eq.s32.totalorder %s28, 0
    %p592 = por %p590, %p591
    %p593 = scmp.ne.s32.totalorder %s582, %s585
    %p594 = scmp.eq.s32.totalorder %s33, 3
    %p595 = por %p593, %p594
    %p596 = scmp.ne.s32.totalorder %s585, %s586
    %p597 = scmp.eq.s32.totalorder %s33, 0
    %p598 = por %p596, %p597
    %p599 = scmp.ne.s32.totalorder %s585, %s586
    %p600 = scmp.eq.s32.totalorder %s34, 3
    %p601 = por %p599, %p600
    %p603 = scmp.ne.s32.totalorder %s586, %s602
    %p604 = scmp.eq.s32.totalorder %s34, 0
    %p605 = por %p603, %p604
    %p606 = scmp.le.s32.totalorder 1, %s28
    %p607 = scmp.lt.s32.totalorder %s28, 5
    %p608 = pnand %p606, %p607
    %p609 = pneg %p608
    // Predicated region
    $region9: #{tokenpose_b_forward.5} parent=5 // pred_check
      _
    $region10: #{tokenpose_b_forward.5} parent=5 // pred_check_branch
      %611 = sbr.rel (%p608) target = $region12
    $region11: #{tokenpose_b_forward.5} parent=5 // pred_region
      %s612 = ssub.s32 %s28, 1
      // Predicated region
      $region13: #{tokenpose_b_forward.5} parent=11 // pred_check
        %p613 = pneg %p87
      $region14: #{tokenpose_b_forward.5} parent=11 // pred_check_branch
        %615 = sbr.rel (%p613) target = $region16
      $region15: #{tokenpose_b_forward.5} parent=11 // pred_region
        _
      $region16: #{tokenpose_b_forward.5} parent=11 // pred_fallthru
        _
      // Predicated region
      $region17: #{tokenpose_b_forward.5} parent=11 // pred_check
        %p616 = pneg %p108
      $region18: #{tokenpose_b_forward.5} parent=11 // pred_check_branch
        %618 = sbr.rel (%p616) target = $region20
      $region19: #{tokenpose_b_forward.5} parent=11 // pred_region
        _
      $region20: #{tokenpose_b_forward.5} parent=11 // pred_fallthru
        _
      // Predicated region
      $region21: #{tokenpose_b_forward.5} parent=11 // pred_check
        %p619 = pneg %p129
      $region22: #{tokenpose_b_forward.5} parent=11 // pred_check_branch
        %621 = sbr.rel (%p619) target = $region24
      $region23: #{tokenpose_b_forward.5} parent=11 // pred_region
        _
      $region24: #{tokenpose_b_forward.5} parent=11 // pred_fallthru
        _
      // Predicated region
      $region25: #{tokenpose_b_forward.5} parent=11 // pred_check
        %p622 = pneg %p150
      $region26: #{tokenpose_b_forward.5} parent=11 // pred_check_branch
        %624 = sbr.rel (%p622) target = $region28
      $region27: #{tokenpose_b_forward.5} parent=11 // pred_region
        _
      $region28: #{tokenpose_b_forward.5} parent=11 // pred_fallthru
        _
      // Predicated region
      $region29: #{tokenpose_b_forward.5} parent=11 // pred_check
        %p625 = pneg %p509
      $region30: #{tokenpose_b_forward.5} parent=11 // pred_check_branch
        %627 = sbr.rel (%p625) target = $region32
      $region31: #{tokenpose_b_forward.5} parent=11 // pred_region
        _
      $region32: #{tokenpose_b_forward.5} parent=11 // pred_fallthru
        _
      // Predicated region
      $region33: #{tokenpose_b_forward.5} parent=11 // pred_check
        %p628 = pneg %p530
      $region34: #{tokenpose_b_forward.5} parent=11 // pred_check_branch
        %630 = sbr.rel (%p628) target = $region36
      $region35: #{tokenpose_b_forward.5} parent=11 // pred_region
        _
      $region36: #{tokenpose_b_forward.5} parent=11 // pred_fallthru
        _
      // Predicated region
      $region37: #{tokenpose_b_forward.5} parent=11 // pred_check
        %p631 = pneg %p551
      $region38: #{tokenpose_b_forward.5} parent=11 // pred_check_branch
        %633 = sbr.rel (%p631) target = $region40
      $region39: #{tokenpose_b_forward.5} parent=11 // pred_region
        _
      $region40: #{tokenpose_b_forward.5} parent=11 // pred_fallthru
        _
      // Predicated region
      $region41: #{tokenpose_b_forward.5} parent=11 // pred_check
        %p634 = pneg %p572
      $region42: #{tokenpose_b_forward.5} parent=11 // pred_check_branch
        %636 = sbr.rel (%p634) target = $region44
      $region43: #{tokenpose_b_forward.5} parent=11 // pred_region
        _
      $region44: #{tokenpose_b_forward.5} parent=11 // pred_fallthru
        _
    $region12: #{tokenpose_b_forward.5} parent=5 // pred_fallthru
      _
    %p637 = scmp.lt.s32.totalorder %s28, 4
    // Predicated region
    $region45: #{tokenpose_b_forward.5} parent=5 // pred_check
      %p638 = pneg %p637
    $region46: #{tokenpose_b_forward.5} parent=5 // pred_check_branch
      %640 = sbr.rel (%p638) target = $region48
    $region47: #{tokenpose_b_forward.5} parent=5 // pred_region
      // Predicated region
      $region49: #{tokenpose_b_forward.5} parent=47 // pred_check
        %p641 = pneg %p60
      $region50: #{tokenpose_b_forward.5} parent=47 // pred_check_branch
        %643 = sbr.rel (%p641) target = $region52
      $region51: #{tokenpose_b_forward.5} parent=47 // pred_region
        %p644 = scmp.lt.s32.totalorder %s35, 1
        %s645 = scalar_select %p644, %s35, 1
        %s646 = smul.addr %s645, 2
        %s647 = scalar_lea.vmem %s0, %s646
      $region52: #{tokenpose_b_forward.5} parent=47 // pred_fallthru
        _
      // Predicated region
      $region53: #{tokenpose_b_forward.5} parent=47 // pred_check
        %p648 = pneg %p170
      $region54: #{tokenpose_b_forward.5} parent=47 // pred_check_branch
        %650 = sbr.rel (%p648) target = $region56
      $region55: #{tokenpose_b_forward.5} parent=47 // pred_region
        %p651 = scmp.lt.s32.totalorder %s36, 1
        %s652 = scalar_select %p651, %s36, 1
        %s653 = scalar_lea.vmem %s5, %s652
      $region56: #{tokenpose_b_forward.5} parent=47 // pred_fallthru
        _
      // Predicated region
      $region57: #{tokenpose_b_forward.5} parent=47 // pred_check
        %p654 = pneg %p196
      $region58: #{tokenpose_b_forward.5} parent=47 // pred_check_branch
        %656 = sbr.rel (%p654) target = $region60
      $region59: #{tokenpose_b_forward.5} parent=47 // pred_region
        %p657 = scmp.lt.s32.totalorder %s36, 1
        %s658 = scalar_select %p657, %s36, 1
        %s659 = scalar_lea.vmem %s6, %s658
      $region60: #{tokenpose_b_forward.5} parent=47 // pred_fallthru
        _
      // Predicated region
      $region61: #{tokenpose_b_forward.5} parent=47 // pred_check
        %p660 = pneg %p222
      $region62: #{tokenpose_b_forward.5} parent=47 // pred_check_branch
        %662 = sbr.rel (%p660) target = $region64
      $region63: #{tokenpose_b_forward.5} parent=47 // pred_region
        %p663 = scmp.lt.s32.totalorder %s36, 1
        %s664 = scalar_select %p663, %s36, 1
        %s665 = smul.addr %s664, 32
        %s666 = smul.addr %s665, 4
        %s667 = scalar_lea.vmem %s7, %s666
      $region64: #{tokenpose_b_forward.5} parent=47 // pred_fallthru
        _
      // Predicated region
      $region65: #{tokenpose_b_forward.5} parent=47 // pred_check
        %p668 = pneg %p248
      $region66: #{tokenpose_b_forward.5} parent=47 // pred_check_branch
        %670 = sbr.rel (%p668) target = $region68
      $region67: #{tokenpose_b_forward.5} parent=47 // pred_region
        %p671 = scmp.lt.s32.totalorder %s36, 1
        %s672 = scalar_select %p671, %s36, 1
        %s673 = smul.addr %s672, 32
        %s674 = smul.addr %s673, 4
        %s675 = scalar_lea.vmem %s8, %s674
      $region68: #{tokenpose_b_forward.5} parent=47 // pred_fallthru
        _
      // Predicated region
      $region69: #{tokenpose_b_forward.5} parent=47 // pred_check
        %p676 = pneg %p274
      $region70: #{tokenpose_b_forward.5} parent=47 // pred_check_branch
        %678 = sbr.rel (%p676) target = $region72
      $region71: #{tokenpose_b_forward.5} parent=47 // pred_region
        %p679 = scmp.lt.s32.totalorder %s36, 1
        %s680 = scalar_select %p679, %s36, 1
        %s681 = smul.addr %s680, 32
        %s682 = smul.addr %s681, 4
        %s683 = scalar_lea.vmem %s9, %s682
      $region72: #{tokenpose_b_forward.5} parent=47 // pred_fallthru
        _
      // Predicated region
      $region73: #{tokenpose_b_forward.5} parent=47 // pred_check
        %p684 = pneg %p300
      $region74: #{tokenpose_b_forward.5} parent=47 // pred_check_branch
        %686 = sbr.rel (%p684) target = $region76
      $region75: #{tokenpose_b_forward.5} parent=47 // pred_region
        %p687 = scmp.lt.s32.totalorder %s36, 1
        %s688 = scalar_select %p687, %s36, 1
        %s689 = smul.addr %s688, 16
        %s690 = smul.addr %s689, 4
        %s691 = scalar_lea.vmem %s10, %s690
      $region76: #{tokenpose_b_forward.5} parent=47 // pred_fallthru
        _
      // Predicated region
      $region77: #{tokenpose_b_forward.5} parent=47 // pred_check
        %p692 = pneg %p326
      $region78: #{tokenpose_b_forward.5} parent=47 // pred_check_branch
        %694 = sbr.rel (%p692) target = $region80
      $region79: #{tokenpose_b_forward.5} parent=47 // pred_region
        %p695 = scmp.lt.s32.totalorder %s36, 1
        %s696 = scalar_select %p695, %s36, 1
        %s697 = scalar_lea.vmem %s11, %s696
      $region80: #{tokenpose_b_forward.5} parent=47 // pred_fallthru
        _
      // Predicated region
      $region81: #{tokenpose_b_forward.5} parent=47 // pred_check
        %p698 = pneg %p352
      $region82: #{tokenpose_b_forward.5} parent=47 // pred_check_branch
        %700 = sbr.rel (%p698) target = $region84
      $region83: #{tokenpose_b_forward.5} parent=47 // pred_region
        %p701 = scmp.lt.s32.totalorder %s36, 1
        %s702 = scalar_select %p701, %s36, 1
        %s703 = scalar_lea.vmem %s12, %s702
      $region84: #{tokenpose_b_forward.5} parent=47 // pred_fallthru
        _
      // Predicated region
      $region85: #{tokenpose_b_forward.5} parent=47 // pred_check
        %p704 = pneg %p378
      $region86: #{tokenpose_b_forward.5} parent=47 // pred_check_branch
        %706 = sbr.rel (%p704) target = $region88
      $region87: #{tokenpose_b_forward.5} parent=47 // pred_region
        %p707 = scmp.lt.s32.totalorder %s36, 1
        %s708 = scalar_select %p707, %s36, 1
        %s709 = scalar_lea.vmem %s13, %s708
      $region88: #{tokenpose_b_forward.5} parent=47 // pred_fallthru
        _
      // Predicated region
      $region89: #{tokenpose_b_forward.5} parent=47 // pred_check
        %p710 = pneg %p404
      $region90: #{tokenpose_b_forward.5} parent=47 // pred_check_branch
        %712 = sbr.rel (%p710) target = $region92
      $region91: #{tokenpose_b_forward.5} parent=47 // pred_region
        %p713 = scmp.lt.s32.totalorder %s36, 1
        %s714 = scalar_select %p713, %s36, 1
        %s715 = smul.addr %s714, 16
        %s716 = smul.addr %s715, 4
        %s717 = scalar_lea.vmem %s14, %s716
      $region92: #{tokenpose_b_forward.5} parent=47 // pred_fallthru
        _
      // Predicated region
      $region93: #{tokenpose_b_forward.5} parent=47 // pred_check
        %p718 = pneg %p430
      $region94: #{tokenpose_b_forward.5} parent=47 // pred_check_branch
        %720 = sbr.rel (%p718) target = $region96
      $region95: #{tokenpose_b_forward.5} parent=47 // pred_region
        %p721 = scmp.lt.s32.totalorder %s36, 1
        %s722 = scalar_select %p721, %s36, 1
        %s723 = scalar_lea.vmem %s15, %s722
      $region96: #{tokenpose_b_forward.5} parent=47 // pred_fallthru
        _
      // Predicated region
      $region97: #{tokenpose_b_forward.5} parent=47 // pred_check
        %p724 = pneg %p456
      $region98: #{tokenpose_b_forward.5} parent=47 // pred_check_branch
        %726 = sbr.rel (%p724) target = $region100
      $region99: #{tokenpose_b_forward.5} parent=47 // pred_region
        %p727 = scmp.lt.s32.totalorder %s36, 1
        %s728 = scalar_select %p727, %s36, 1
        %s729 = smul.addr %s728, 16
        %s730 = smul.addr %s729, 4
        %s731 = scalar_lea.vmem %s16, %s730
      $region100: #{tokenpose_b_forward.5} parent=47 // pred_fallthru
        _
      // Predicated region
      $region101: #{tokenpose_b_forward.5} parent=47 // pred_check
        %p732 = pneg %p482
      $region102: #{tokenpose_b_forward.5} parent=47 // pred_check_branch
        %734 = sbr.rel (%p732) target = $region104
      $region103: #{tokenpose_b_forward.5} parent=47 // pred_region
        %p735 = scmp.lt.s32.totalorder %s36, 1
        %s736 = scalar_select %p735, %s36, 1
        %s737 = scalar_lea.vmem %s17, %s736
      $region104: #{tokenpose_b_forward.5} parent=47 // pred_fallthru
        _
    $region48: #{tokenpose_b_forward.5} parent=5 // pred_fallthru
      _
    %p738 = scmp.le.s32.totalorder 1, %s28
    %p739 = scmp.lt.s32.totalorder %s28, 5
    %p740 = pnand %p738, %p739
    %p741 = pneg %p740
    // Predicated region
    $region105: #{tokenpose_b_forward.5} parent=5 // pred_check
      _
    $region106: #{tokenpose_b_forward.5} parent=5 // pred_check_branch
      %743 = sbr.rel (%p740) target = $region108
    $region107: #{tokenpose_b_forward.5} parent=5 // pred_region
      %s744 = ssub.s32 %s28, 1
      %p745 = scmp.lt.s32.totalorder %s37, 1
      %s746 = scalar_select %p745, %s37, 1
      %s747 = smul.addr %s746, 2
      %s748 = scalar_lea.vmem %s0, %s747
      %p749 = pneg %p66
      %p750 = pneg %p63
      %p751 = pneg %p87
      %p752 = pneg %p84
      %p753 = pneg %p108
      %p754 = pneg %p105
      %p755 = pneg %p129
      %p756 = pneg %p126
      %p757 = pneg %p150
      %p758 = pneg %p147
      %p759 = scmp.lt.s32.totalorder %s38, 1
      %s760 = scalar_select %p759, %s38, 1
      %s761 = scalar_lea.vmem %s5, %s760
      %p762 = pneg %p176
      %p763 = pneg %p173
      %p764 = scmp.lt.s32.totalorder %s38, 1
      %s765 = scalar_select %p764, %s38, 1
      %s766 = scalar_lea.vmem %s6, %s765
      %p767 = pneg %p202
      %p768 = pneg %p199
      %p769 = scmp.lt.s32.totalorder %s38, 1
      %s770 = scalar_select %p769, %s38, 1
      %s771 = smul.addr %s770, 32
      %s772 = smul.addr %s771, 4
      %s773 = scalar_lea.vmem %s7, %s772
      %p774 = pneg %p228
      %p775 = pneg %p225
      %p776 = scmp.lt.s32.totalorder %s38, 1
      %s777 = scalar_select %p776, %s38, 1
      %s778 = smul.addr %s777, 32
      %s779 = smul.addr %s778, 4
      %s780 = scalar_lea.vmem %s8, %s779
      %p781 = pneg %p254
      %p782 = pneg %p251
      %p783 = scmp.lt.s32.totalorder %s38, 1
      %s784 = scalar_select %p783, %s38, 1
      %s785 = smul.addr %s784, 32
      %s786 = smul.addr %s785, 4
      %s787 = scalar_lea.vmem %s9, %s786
      %p788 = pneg %p280
      %p789 = pneg %p277
      %p790 = scmp.lt.s32.totalorder %s38, 1
      %s791 = scalar_select %p790, %s38, 1
      %s792 = smul.addr %s791, 16
      %s793 = smul.addr %s792, 4
      %s794 = scalar_lea.vmem %s10, %s793
      %p795 = pneg %p306
      %p796 = pneg %p303
      %p797 = scmp.lt.s32.totalorder %s38, 1
      %s798 = scalar_select %p797, %s38, 1
      %s799 = scalar_lea.vmem %s11, %s798
      %p800 = pneg %p332
      %p801 = pneg %p329
      %p802 = scmp.lt.s32.totalorder %s38, 1
      %s803 = scalar_select %p802, %s38, 1
      %s804 = scalar_lea.vmem %s12, %s803
      %p805 = pneg %p358
      %p806 = pneg %p355
      %p807 = scmp.lt.s32.totalorder %s38, 1
      %s808 = scalar_select %p807, %s38, 1
      %s809 = scalar_lea.vmem %s13, %s808
      %p810 = pneg %p384
      %p811 = pneg %p381
      %p812 = scmp.lt.s32.totalorder %s38, 1
      %s813 = scalar_select %p812, %s38, 1
      %s814 = smul.addr %s813, 16
      %s815 = smul.addr %s814, 4
      %s816 = scalar_lea.vmem %s14, %s815
      %p817 = pneg %p410
      %p818 = pneg %p407
      %p819 = scmp.lt.s32.totalorder %s38, 1
      %s820 = scalar_select %p819, %s38, 1
      %s821 = scalar_lea.vmem %s15, %s820
      %p822 = pneg %p436
      %p823 = pneg %p433
      %p824 = scmp.lt.s32.totalorder %s38, 1
      %s825 = scalar_select %p824, %s38, 1
      %s826 = smul.addr %s825, 16
      %s827 = smul.addr %s826, 4
      %s828 = scalar_lea.vmem %s16, %s827
      %p829 = pneg %p462
      %p830 = pneg %p459
      %p831 = scmp.lt.s32.totalorder %s38, 1
      %s832 = scalar_select %p831, %s38, 1
      %s833 = scalar_lea.vmem %s17, %s832
      %p834 = pneg %p488
      %p835 = pneg %p485
      %p836 = pneg %p509
      %p837 = pneg %p506
      %p838 = pneg %p530
      %p839 = pneg %p527
      %p840 = pneg %p551
      %p841 = pneg %p548
      %p842 = pneg %p572
      %p843 = pneg %p569
      %p844 = pneg %p598
      %p845 = pneg %p595
      %p846 = scmp.lt.s32.totalorder %s37, 1
      %s847 = scalar_select %p846, %s37, 1
      %s848 = smul.addr %s847, 4
      %s849 = scalar_lea.vmem %s22, %s848
      %p850 = scmp.lt.s32.totalorder %s37, 1
      %s851 = scalar_select %p850, %s37, 1
      %s852 = smul.addr %s851, 2
      %s853 = scalar_lea.vmem %s0, %s852
      %p854 = scmp.lt.s32.totalorder %s38, 1
      %s855 = scalar_select %p854, %s38, 1
      %s856 = scalar_lea.vmem %s5, %s855
      %p857 = scmp.lt.s32.totalorder %s38, 1
      %s858 = scalar_select %p857, %s38, 1
      %s859 = scalar_lea.vmem %s6, %s858
      %p860 = scmp.lt.s32.totalorder %s38, 1
      %s861 = scalar_select %p860, %s38, 1
      %s862 = smul.addr %s861, 32
      %s863 = smul.addr %s862, 4
      %s864 = scalar_lea.vmem %s7, %s863
      %p865 = scmp.lt.s32.totalorder %s38, 1
      %s866 = scalar_select %p865, %s38, 1
      %s867 = smul.addr %s866, 32
      %s868 = smul.addr %s867, 4
      %s869 = scalar_lea.vmem %s8, %s868
      %p870 = scmp.lt.s32.totalorder %s38, 1
      %s871 = scalar_select %p870, %s38, 1
      %s872 = smul.addr %s871, 32
      %s873 = smul.addr %s872, 4
      %s874 = scalar_lea.vmem %s9, %s873
      %p875 = scmp.lt.s32.totalorder %s38, 1
      %s876 = scalar_select %p875, %s38, 1
      %s877 = smul.addr %s876, 16
      %s878 = smul.addr %s877, 4
      %s879 = scalar_lea.vmem %s10, %s878
      %p880 = scmp.lt.s32.totalorder %s38, 1
      %s881 = scalar_select %p880, %s38, 1
      %s882 = scalar_lea.vmem %s11, %s881
      %p883 = scmp.lt.s32.totalorder %s38, 1
      %s884 = scalar_select %p883, %s38, 1
      %s885 = scalar_lea.vmem %s12, %s884
      %p886 = scmp.lt.s32.totalorder %s38, 1
      %s887 = scalar_select %p886, %s38, 1
      %s888 = scalar_lea.vmem %s13, %s887
      %p889 = scmp.lt.s32.totalorder %s38, 1
      %s890 = scalar_select %p889, %s38, 1
      %s891 = smul.addr %s890, 16
      %s892 = smul.addr %s891, 4
      %s893 = scalar_lea.vmem %s14, %s892
      %p894 = scmp.lt.s32.totalorder %s38, 1
      %s895 = scalar_select %p894, %s38, 1
      %s896 = scalar_lea.vmem %s15, %s895
      %p897 = scmp.lt.s32.totalorder %s38, 1
      %s898 = scalar_select %p897, %s38, 1
      %s899 = smul.addr %s898, 16
      %s900 = smul.addr %s899, 4
      %s901 = scalar_lea.vmem %s16, %s900
      %p902 = scmp.lt.s32.totalorder %s38, 1
      %s903 = scalar_select %p902, %s38, 1
      %s904 = scalar_lea.vmem %s17, %s903
      %p905 = scmp.lt.s32.totalorder %s37, 1
      %s906 = scalar_select %p905, %s37, 1
      %s907 = smul.addr %s906, 4
      %s908 = scalar_lea.vmem %s22, %s907
      %p910 = scmp.eq.s32.totalorder %s38, 0
      // Predicated region
      $region109: #{tokenpose_b_forward.5} parent=107 // pred_check
        %p911 = pneg %p910
      $region110: #{tokenpose_b_forward.5} parent=107 // pred_check_branch
        %913 = sbr.rel (%p911) target = $region112
      $region111: #{tokenpose_b_forward.5} parent=107 // pred_region
        %v914 = vld [vmem:[%s853] sm:$0x3]
        %v915 = vld [vmem:[%s1] sm:$0xf]
        %v916 = vld [vmem:[%s1 + $0x4] sm:$0xf]
        %v917 = vld [vmem:[%s1 + $0x8] sm:$0xf]
        %v918 = vld [vmem:[%s1 + $0xc] sm:$0xf]
        %v919 = vld [vmem:[%s2] sm:$0x1]
        %v921 = vlaneseq
        %v922 = vshrl.u32 %v921, 7
        %v923 = vsub.s32 0, %v922
        %v924 = vrot.slane %v919, %v923
        %v930 = vunpack.c.l.b16 %v915
        %v931 = vunpack.c.l.b16 %v916
        %v932 = vunpack.c.l.b16 %v917
        %v933 = vunpack.c.l.b16 %v918
        %v934 = vpack.c.b16 %v931, %v930
        %v935 = vpack.c.b16 %v933, %v932
        %vm938 = vcmask 261120
        %v940 = vsel %vm938, %v914, 0
        %942 = vmatprep.subr.bf16.mxu0 0
        %943 = vmatpush1.bf16.msra.mxu0 %v934
        %944 = vmatprep.subr.bf16.mxu0 0
        %945 = vmatpush1.bf16.msra.mxu0 %v935
        %946 = vmatprep.subr.bf16.mxu0 0
        %947 = vmatpush1.bf16.msra.mxu0 0
        %948 = vmatprep.subr.bf16.mxu0 0
        %949 = vmatpush1.bf16.msra.mxu0 0
        %950 = vmatprep.subr.bf16.mxu0 0
        %951 = vmatpush1.bf16.msra.mxu0 0
        %952 = vmatprep.subr.bf16.mxu0 0
        %953 = vmatpush1.bf16.msra.mxu0 0
        %954 = vmatprep.subr.bf16.mxu0 0
        %955 = vmatpush1.bf16.msra.mxu0 0
        %956 = vmatprep.subr.bf16.mxu0 0
        %957 = vmatpush1.bf16.msra.mxu0 0
        %958 = vmatprep.subr.bf16.mxu0 0
        %959 = vmatpush1.bf16.msra.mxu0 0
        %960 = vmatprep.subr.bf16.mxu0 0
        %961 = vmatpush1.bf16.msra.mxu0 0
        %962 = vmatprep.subr.bf16.mxu0 0
        %963 = vmatpush1.bf16.msra.mxu0 0
        %964 = vmatprep.subr.bf16.mxu0 0
        %965 = vmatpush1.bf16.msra.mxu0 0
        %966 = vmatprep.subr.bf16.mxu0 0
        %967 = vmatpush1.bf16.msra.mxu0 0
        %968 = vmatprep.subr.bf16.mxu0 0
        %969 = vmatpush1.bf16.msra.mxu0 0
        %970 = vmatprep.subr.bf16.mxu0 0
        %971 = vmatpush1.bf16.msra.mxu0 0
        %972 = vmatprep.subr.bf16.mxu0 0
        %973 = vmatpush1.bf16.msra.mxu0 0
        %974 = vmatprep.mubr.bf16.mxu0 0
        %975 = vmatmul.mubr.bf16.gmra.mrb[0].mxu0 %v940
        %v976 = vpop.f32.mrb[0].mxu0
        %v977 = vadd.f32 %v924, %v976
        %v978 = vpop.f32.mrb[0].mxu0
        %v979 = vpop.f32.mrb[0].mxu0
        %v980 = vpop.f32.mrb[0].mxu0
        %981 = vdwg.mxu0
        %v982 = vld [vmem:[%s3] sm:$0xf]
        %983 = vst [vmem:[#allocation2] sm:$0xf] %v982
        %984 = vst [vmem:[#allocation2 + $0x4] sm:$0xf] %v977
        %v985 = vld [vmem:[#allocation2] sm:$0xff]
        %v986 = vld [vmem:[%s4] sm:$0xff]
        %v987 = vadd.f32 %v985, %v986
        %988 = vst [vmem:[#allocation2] sm:$0xff] %v987
      $region112: #{tokenpose_b_forward.5} parent=107 // pred_fallthru
        _
      %v989 = vld [vmem:[#allocation2] sm:$0xff]
      %v990 = vld [vmem:[%s856] sm:$0x1]
      %v991 = vld [vmem:[%s859] sm:$0x1]
      %992 = vadd.xlane.f32.xlu0 %v989
      %v993 = vpop.xlane.xlu0 %992
      %v994 = vmul.f32 %v993, 0.03125
      %v995 = vmul.f32 %v989, %v989
      %996 = vadd.xlane.f32.xlu0 %v995
      %v997 = vpop.xlane.xlu0 %996
      %v998 = vmul.f32 %v997, 0.03125
      %v999 = vmul.f32 %v994, %v994
      %v1000 = vsub.f32 %v998, %v999
      %v1001 = vsub.f32 %v989, %v994
      %v1002 = vadd.f32 %v1000, 1e-05
      %v1003 = vrsqrt.pop %v1002
      %v1004 = vmul.f32 %v1001, %v1003
      %v1006 = vlaneseq
      %v1007 = vshrl.u32 %v1006, 7
      %v1008 = vsub.s32 0, %v1007
      %v1009 = vrot.slane %v990, %v1008
      %v1011 = vmul.f32 %v1004, %v1009
      %v1013 = vlaneseq
      %v1014 = vshrl.u32 %v1013, 7
      %v1015 = vsub.s32 0, %v1014
      %v1016 = vrot.slane %v991, %v1015
      %v1018 = vadd.f32 %v1011, %v1016
      %v1019 = vpack.c.bf16 %v1018, %v1018
      %v1020 = vld [vmem:[%s864] sm:$0xf]
      %v1021 = vld [vmem:[%s864 + $0x4] sm:$0xf]
      %v1022 = vld [vmem:[%s864 + $0x8] sm:$0xf]
      %v1023 = vld [vmem:[%s864 + $0xc] sm:$0xf]
      %v1024 = vld [vmem:[%s864 + $0x10] sm:$0xf]
      %v1025 = vld [vmem:[%s864 + $0x14] sm:$0xf]
      %v1026 = vld [vmem:[%s864 + $0x18] sm:$0xf]
      %v1027 = vld [vmem:[%s864 + $0x1c] sm:$0xf]
      %v1028 = vld [vmem:[%s864 + $0x20] sm:$0xf]
      %v1029 = vld [vmem:[%s864 + $0x24] sm:$0xf]
      %v1030 = vld [vmem:[%s864 + $0x28] sm:$0xf]
      %v1031 = vld [vmem:[%s864 + $0x2c] sm:$0xf]
      %v1032 = vld [vmem:[%s864 + $0x30] sm:$0xf]
      %v1033 = vld [vmem:[%s864 + $0x34] sm:$0xf]
      %v1034 = vld [vmem:[%s864 + $0x38] sm:$0xf]
      %v1035 = vld [vmem:[%s864 + $0x3c] sm:$0xf]
      %v1036 = vld [vmem:[%s864 + $0x40] sm:$0xf]
      %v1037 = vld [vmem:[%s864 + $0x44] sm:$0xf]
      %v1038 = vld [vmem:[%s864 + $0x48] sm:$0xf]
      %v1039 = vld [vmem:[%s864 + $0x4c] sm:$0xf]
      %v1040 = vld [vmem:[%s864 + $0x50] sm:$0xf]
      %v1041 = vld [vmem:[%s864 + $0x54] sm:$0xf]
      %v1042 = vld [vmem:[%s864 + $0x58] sm:$0xf]
      %v1043 = vld [vmem:[%s864 + $0x5c] sm:$0xf]
      %v1044 = vld [vmem:[%s864 + $0x60] sm:$0xf]
      %v1045 = vld [vmem:[%s864 + $0x64] sm:$0xf]
      %v1046 = vld [vmem:[%s864 + $0x68] sm:$0xf]
      %v1047 = vld [vmem:[%s864 + $0x6c] sm:$0xf]
      %v1048 = vld [vmem:[%s864 + $0x70] sm:$0xf]
      %v1049 = vld [vmem:[%s864 + $0x74] sm:$0xf]
      %v1050 = vld [vmem:[%s864 + $0x78] sm:$0xf]
      %v1051 = vld [vmem:[%s864 + $0x7c] sm:$0xf]
      %v1068 = vunpack.c.l.b16 %v1020
      %v1069 = vunpack.c.l.b16 %v1021
      %v1070 = vunpack.c.l.b16 %v1022
      %v1071 = vunpack.c.l.b16 %v1023
      %v1072 = vunpack.c.l.b16 %v1024
      %v1073 = vunpack.c.l.b16 %v1025
      %v1074 = vunpack.c.l.b16 %v1026
      %v1075 = vunpack.c.l.b16 %v1027
      %v1076 = vunpack.c.l.b16 %v1028
      %v1077 = vunpack.c.l.b16 %v1029
      %v1078 = vunpack.c.l.b16 %v1030
      %v1079 = vunpack.c.l.b16 %v1031
      %v1080 = vunpack.c.l.b16 %v1032
      %v1081 = vunpack.c.l.b16 %v1033
      %v1082 = vunpack.c.l.b16 %v1034
      %v1083 = vunpack.c.l.b16 %v1035
      %v1084 = vpack.c.b16 %v1069, %v1068
      %v1085 = vpack.c.b16 %v1071, %v1070
      %v1086 = vpack.c.b16 %v1073, %v1072
      %v1087 = vpack.c.b16 %v1075, %v1074
      %v1088 = vpack.c.b16 %v1077, %v1076
      %v1089 = vpack.c.b16 %v1079, %v1078
      %v1090 = vpack.c.b16 %v1081, %v1080
      %v1091 = vpack.c.b16 %v1083, %v1082
      %1100 = vmatprep.subr.bf16.mxu0 0
      %1101 = vmatpush1.bf16.msra.mxu0 %v1084
      %1102 = vmatprep.subr.bf16.mxu0 0
      %1103 = vmatpush1.bf16.msra.mxu0 %v1085
      %1104 = vmatprep.subr.bf16.mxu0 0
      %1105 = vmatpush1.bf16.msra.mxu0 %v1086
      %1106 = vmatprep.subr.bf16.mxu0 0
      %1107 = vmatpush1.bf16.msra.mxu0 %v1087
      %1108 = vmatprep.subr.bf16.mxu0 0
      %1109 = vmatpush1.bf16.msra.mxu0 %v1088
      %1110 = vmatprep.subr.bf16.mxu0 0
      %1111 = vmatpush1.bf16.msra.mxu0 %v1089
      %1112 = vmatprep.subr.bf16.mxu0 0
      %1113 = vmatpush1.bf16.msra.mxu0 %v1090
      %1114 = vmatprep.subr.bf16.mxu0 0
      %1115 = vmatpush1.bf16.msra.mxu0 %v1091
      %1116 = vmatprep.subr.bf16.mxu0 0
      %1117 = vmatpush1.bf16.msra.mxu0 0
      %1118 = vmatprep.subr.bf16.mxu0 0
      %1119 = vmatpush1.bf16.msra.mxu0 0
      %1120 = vmatprep.subr.bf16.mxu0 0
      %1121 = vmatpush1.bf16.msra.mxu0 0
      %1122 = vmatprep.subr.bf16.mxu0 0
      %1123 = vmatpush1.bf16.msra.mxu0 0
      %1124 = vmatprep.subr.bf16.mxu0 0
      %1125 = vmatpush1.bf16.msra.mxu0 0
      %1126 = vmatprep.subr.bf16.mxu0 0
      %1127 = vmatpush1.bf16.msra.mxu0 0
      %1128 = vmatprep.subr.bf16.mxu0 0
      %1129 = vmatpush1.bf16.msra.mxu0 0
      %1130 = vmatprep.subr.bf16.mxu0 0
      %1131 = vmatpush1.bf16.msra.mxu0 0
      %1132 = vmatprep.mubr.bf16.mxu0 0
      %1133 = vmatmul.mubr.bf16.gmra.mrb[0].mxu0 %v1019
      %v1134 = vpop.f32.mrb[0].mxu0
      %v1135 = vadd.f32 0.0, %v1134
      %v1136 = vpop.f32.mrb[0].mxu0
      %v1137 = vpop.f32.mrb[0].mxu0
      %v1138 = vpop.f32.mrb[0].mxu0
      %1139 = vdwg.mxu0
      %v1156 = vunpack.c.l.b16 %v1036
      %v1157 = vunpack.c.l.b16 %v1037
      %v1158 = vunpack.c.l.b16 %v1038
      %v1159 = vunpack.c.l.b16 %v1039
      %v1160 = vunpack.c.l.b16 %v1040
      %v1161 = vunpack.c.l.b16 %v1041
      %v1162 = vunpack.c.l.b16 %v1042
      %v1163 = vunpack.c.l.b16 %v1043
      %v1164 = vunpack.c.l.b16 %v1044
      %v1165 = vunpack.c.l.b16 %v1045
      %v1166 = vunpack.c.l.b16 %v1046
      %v1167 = vunpack.c.l.b16 %v1047
      %v1168 = vunpack.c.l.b16 %v1048
      %v1169 = vunpack.c.l.b16 %v1049
      %v1170 = vunpack.c.l.b16 %v1050
      %v1171 = vunpack.c.l.b16 %v1051
      %v1172 = vpack.c.b16 %v1157, %v1156
      %v1173 = vpack.c.b16 %v1159, %v1158
      %v1174 = vpack.c.b16 %v1161, %v1160
      %v1175 = vpack.c.b16 %v1163, %v1162
      %v1176 = vpack.c.b16 %v1165, %v1164
      %v1177 = vpack.c.b16 %v1167, %v1166
      %v1178 = vpack.c.b16 %v1169, %v1168
      %v1179 = vpack.c.b16 %v1171, %v1170
      %1188 = vmatprep.subr.bf16.mxu0 0
      %1189 = vmatpush1.bf16.msra.mxu0 %v1172
      %1190 = vmatprep.subr.bf16.mxu0 0
      %1191 = vmatpush1.bf16.msra.mxu0 %v1173
      %1192 = vmatprep.subr.bf16.mxu0 0
      %1193 = vmatpush1.bf16.msra.mxu0 %v1174
      %1194 = vmatprep.subr.bf16.mxu0 0
      %1195 = vmatpush1.bf16.msra.mxu0 %v1175
      %1196 = vmatprep.subr.bf16.mxu0 0
      %1197 = vmatpush1.bf16.msra.mxu0 %v1176
      %1198 = vmatprep.subr.bf16.mxu0 0
      %1199 = vmatpush1.bf16.msra.mxu0 %v1177
      %1200 = vmatprep.subr.bf16.mxu0 0
      %1201 = vmatpush1.bf16.msra.mxu0 %v1178
      %1202 = vmatprep.subr.bf16.mxu0 0
      %1203 = vmatpush1.bf16.msra.mxu0 %v1179
      %1204 = vmatprep.subr.bf16.mxu0 0
      %1205 = vmatpush1.bf16.msra.mxu0 0
      %1206 = vmatprep.subr.bf16.mxu0 0
      %1207 = vmatpush1.bf16.msra.mxu0 0
      %1208 = vmatprep.subr.bf16.mxu0 0
      %1209 = vmatpush1.bf16.msra.mxu0 0
      %1210 = vmatprep.subr.bf16.mxu0 0
      %1211 = vmatpush1.bf16.msra.mxu0 0
      %1212 = vmatprep.subr.bf16.mxu0 0
      %1213 = vmatpush1.bf16.msra.mxu0 0
      %1214 = vmatprep.subr.bf16.mxu0 0
      %1215 = vmatpush1.bf16.msra.mxu0 0
      %1216 = vmatprep.subr.bf16.mxu0 0
      %1217 = vmatpush1.bf16.msra.mxu0 0
      %1218 = vmatprep.subr.bf16.mxu0 0
      %1219 = vmatpush1.bf16.msra.mxu0 0
      %1220 = vmatprep.mubr.bf16.mxu0 0
      %1221 = vmatmul.mubr.bf16.gmra.mrb[0].mxu0 %v1019
      %v1222 = vpop.f32.mrb[0].mxu0
      %v1223 = vadd.f32 0.0, %v1222
      %v1224 = vpop.f32.mrb[0].mxu0
      %v1225 = vpop.f32.mrb[0].mxu0
      %v1226 = vpop.f32.mrb[0].mxu0
      %1227 = vdwg.mxu0
      %v1228 = vld [vmem:[%s869] sm:$0xf]
      %v1229 = vld [vmem:[%s869 + $0x4] sm:$0xf]
      %v1230 = vld [vmem:[%s869 + $0x8] sm:$0xf]
      %v1231 = vld [vmem:[%s869 + $0xc] sm:$0xf]
      %v1232 = vld [vmem:[%s869 + $0x10] sm:$0xf]
      %v1233 = vld [vmem:[%s869 + $0x14] sm:$0xf]
      %v1234 = vld [vmem:[%s869 + $0x18] sm:$0xf]
      %v1235 = vld [vmem:[%s869 + $0x1c] sm:$0xf]
      %v1236 = vld [vmem:[%s869 + $0x20] sm:$0xf]
      %v1237 = vld [vmem:[%s869 + $0x24] sm:$0xf]
      %v1238 = vld [vmem:[%s869 + $0x28] sm:$0xf]
      %v1239 = vld [vmem:[%s869 + $0x2c] sm:$0xf]
      %v1240 = vld [vmem:[%s869 + $0x30] sm:$0xf]
      %v1241 = vld [vmem:[%s869 + $0x34] sm:$0xf]
      %v1242 = vld [vmem:[%s869 + $0x38] sm:$0xf]
      %v1243 = vld [vmem:[%s869 + $0x3c] sm:$0xf]
      %v1244 = vld [vmem:[%s869 + $0x40] sm:$0xf]
      %v1245 = vld [vmem:[%s869 + $0x44] sm:$0xf]
      %v1246 = vld [vmem:[%s869 + $0x48] sm:$0xf]
      %v1247 = vld [vmem:[%s869 + $0x4c] sm:$0xf]
      %v1248 = vld [vmem:[%s869 + $0x50] sm:$0xf]
      %v1249 = vld [vmem:[%s869 + $0x54] sm:$0xf]
      %v1250 = vld [vmem:[%s869 + $0x58] sm:$0xf]
      %v1251 = vld [vmem:[%s869 + $0x5c] sm:$0xf]
      %v1252 = vld [vmem:[%s869 + $0x60] sm:$0xf]
      %v1253 = vld [vmem:[%s869 + $0x64] sm:$0xf]
      %v1254 = vld [vmem:[%s869 + $0x68] sm:$0xf]
      %v1255 = vld [vmem:[%s869 + $0x6c] sm:$0xf]
      %v1256 = vld [vmem:[%s869 + $0x70] sm:$0xf]
      %v1257 = vld [vmem:[%s869 + $0x74] sm:$0xf]
      %v1258 = vld [vmem:[%s869 + $0x78] sm:$0xf]
      %v1259 = vld [vmem:[%s869 + $0x7c] sm:$0xf]
      %v1276 = vunpack.c.l.b16 %v1228
      %v1277 = vunpack.c.l.b16 %v1229
      %v1278 = vunpack.c.l.b16 %v1230
      %v1279 = vunpack.c.l.b16 %v1231
      %v1280 = vunpack.c.l.b16 %v1232
      %v1281 = vunpack.c.l.b16 %v1233
      %v1282 = vunpack.c.l.b16 %v1234
      %v1283 = vunpack.c.l.b16 %v1235
      %v1284 = vunpack.c.l.b16 %v1236
      %v1285 = vunpack.c.l.b16 %v1237
      %v1286 = vunpack.c.l.b16 %v1238
      %v1287 = vunpack.c.l.b16 %v1239
      %v1288 = vunpack.c.l.b16 %v1240
      %v1289 = vunpack.c.l.b16 %v1241
      %v1290 = vunpack.c.l.b16 %v1242
      %v1291 = vunpack.c.l.b16 %v1243
      %v1292 = vpack.c.b16 %v1277, %v1276
      %v1293 = vpack.c.b16 %v1279, %v1278
      %v1294 = vpack.c.b16 %v1281, %v1280
      %v1295 = vpack.c.b16 %v1283, %v1282
      %v1296 = vpack.c.b16 %v1285, %v1284
      %v1297 = vpack.c.b16 %v1287, %v1286
      %v1298 = vpack.c.b16 %v1289, %v1288
      %v1299 = vpack.c.b16 %v1291, %v1290
      %1308 = vmatprep.subr.bf16.mxu0 0
      %1309 = vmatpush1.bf16.msra.mxu0 %v1292
      %1310 = vmatprep.subr.bf16.mxu0 0
      %1311 = vmatpush1.bf16.msra.mxu0 %v1293
      %1312 = vmatprep.subr.bf16.mxu0 0
      %1313 = vmatpush1.bf16.msra.mxu0 %v1294
      %1314 = vmatprep.subr.bf16.mxu0 0
      %1315 = vmatpush1.bf16.msra.mxu0 %v1295
      %1316 = vmatprep.subr.bf16.mxu0 0
      %1317 = vmatpush1.bf16.msra.mxu0 %v1296
      %1318 = vmatprep.subr.bf16.mxu0 0
      %1319 = vmatpush1.bf16.msra.mxu0 %v1297
      %1320 = vmatprep.subr.bf16.mxu0 0
      %1321 = vmatpush1.bf16.msra.mxu0 %v1298
      %1322 = vmatprep.subr.bf16.mxu0 0
      %1323 = vmatpush1.bf16.msra.mxu0 %v1299
      %1324 = vmatprep.subr.bf16.mxu0 0
      %1325 = vmatpush1.bf16.msra.mxu0 0
      %1326 = vmatprep.subr.bf16.mxu0 0
      %1327 = vmatpush1.bf16.msra.mxu0 0
      %1328 = vmatprep.subr.bf16.mxu0 0
      %1329 = vmatpush1.bf16.msra.mxu0 0
      %1330 = vmatprep.subr.bf16.mxu0 0
      %1331 = vmatpush1.bf16.msra.mxu0 0
      %1332 = vmatprep.subr.bf16.mxu0 0
      %1333 = vmatpush1.bf16.msra.mxu0 0
      %1334 = vmatprep.subr.bf16.mxu0 0
      %1335 = vmatpush1.bf16.msra.mxu0 0
      %1336 = vmatprep.subr.bf16.mxu0 0
      %1337 = vmatpush1.bf16.msra.mxu0 0
      %1338 = vmatprep.subr.bf16.mxu0 0
      %1339 = vmatpush1.bf16.msra.mxu0 0
      %1340 = vmatprep.mubr.bf16.mxu0 0
      %1341 = vmatmul.mubr.bf16.gmra.mrb[0].mxu0 %v1019
      %v1342 = vpop.f32.mrb[0].mxu0
      %v1343 = vadd.f32 0.0, %v1342
      %v1344 = vpop.f32.mrb[0].mxu0
      %v1345 = vpop.f32.mrb[0].mxu0
      %v1346 = vpop.f32.mrb[0].mxu0
      %1347 = vdwg.mxu0
      %v1364 = vunpack.c.l.b16 %v1244
      %v1365 = vunpack.c.l.b16 %v1245
      %v1366 = vunpack.c.l.b16 %v1246
      %v1367 = vunpack.c.l.b16 %v1247
      %v1368 = vunpack.c.l.b16 %v1248
      %v1369 = vunpack.c.l.b16 %v1249
      %v1370 = vunpack.c.l.b16 %v1250
      %v1371 = vunpack.c.l.b16 %v1251
      %v1372 = vunpack.c.l.b16 %v1252
      %v1373 = vunpack.c.l.b16 %v1253
      %v1374 = vunpack.c.l.b16 %v1254
      %v1375 = vunpack.c.l.b16 %v1255
      %v1376 = vunpack.c.l.b16 %v1256
      %v1377 = vunpack.c.l.b16 %v1257
      %v1378 = vunpack.c.l.b16 %v1258
      %v1379 = vunpack.c.l.b16 %v1259
      %v1380 = vpack.c.b16 %v1365, %v1364
      %v1381 = vpack.c.b16 %v1367, %v1366
      %v1382 = vpack.c.b16 %v1369, %v1368
      %v1383 = vpack.c.b16 %v1371, %v1370
      %v1384 = vpack.c.b16 %v1373, %v1372
      %v1385 = vpack.c.b16 %v1375, %v1374
      %v1386 = vpack.c.b16 %v1377, %v1376
      %v1387 = vpack.c.b16 %v1379, %v1378
      %1396 = vmatprep.subr.bf16.mxu0 0
      %1397 = vmatpush1.bf16.msra.mxu0 %v1380
      %1398 = vmatprep.subr.bf16.mxu0 0
      %1399 = vmatpush1.bf16.msra.mxu0 %v1381
      %1400 = vmatprep.subr.bf16.mxu0 0
      %1401 = vmatpush1.bf16.msra.mxu0 %v1382
      %1402 = vmatprep.subr.bf16.mxu0 0
      %1403 = vmatpush1.bf16.msra.mxu0 %v1383
      %1404 = vmatprep.subr.bf16.mxu0 0
      %1405 = vmatpush1.bf16.msra.mxu0 %v1384
      %1406 = vmatprep.subr.bf16.mxu0 0
      %1407 = vmatpush1.bf16.msra.mxu0 %v1385
      %1408 = vmatprep.subr.bf16.mxu0 0
      %1409 = vmatpush1.bf16.msra.mxu0 %v1386
      %1410 = vmatprep.subr.bf16.mxu0 0
      %1411 = vmatpush1.bf16.msra.mxu0 %v1387
      %1412 = vmatprep.subr.bf16.mxu0 0
      %1413 = vmatpush1.bf16.msra.mxu0 0
      %1414 = vmatprep.subr.bf16.mxu0 0
      %1415 = vmatpush1.bf16.msra.mxu0 0
      %1416 = vmatprep.subr.bf16.mxu0 0
      %1417 = vmatpush1.bf16.msra.mxu0 0
      %1418 = vmatprep.subr.bf16.mxu0 0
      %1419 = vmatpush1.bf16.msra.mxu0 0
      %1420 = vmatprep.subr.bf16.mxu0 0
      %1421 = vmatpush1.bf16.msra.mxu0 0
      %1422 = vmatprep.subr.bf16.mxu0 0
      %1423 = vmatpush1.bf16.msra.mxu0 0
      %1424 = vmatprep.subr.bf16.mxu0 0
      %1425 = vmatpush1.bf16.msra.mxu0 0
      %1426 = vmatprep.subr.bf16.mxu0 0
      %1427 = vmatpush1.bf16.msra.mxu0 0
      %1428 = vmatprep.mubr.bf16.mxu0 0
      %1429 = vmatmul.mubr.bf16.gmra.mrb[0].mxu0 %v1019
      %v1430 = vpop.f32.mrb[0].mxu0
      %v1431 = vadd.f32 0.0, %v1430
      %v1432 = vpop.f32.mrb[0].mxu0
      %v1433 = vpop.f32.mrb[0].mxu0
      %v1434 = vpop.f32.mrb[0].mxu0
      %1435 = vdwg.mxu0
      %v1436 = vld [vmem:[%s874] sm:$0xf]
      %v1437 = vld [vmem:[%s874 + $0x4] sm:$0xf]
      %v1438 = vld [vmem:[%s874 + $0x8] sm:$0xf]
      %v1439 = vld [vmem:[%s874 + $0xc] sm:$0xf]
      %v1440 = vld [vmem:[%s874 + $0x10] sm:$0xf]
      %v1441 = vld [vmem:[%s874 + $0x14] sm:$0xf]
      %v1442 = vld [vmem:[%s874 + $0x18] sm:$0xf]
      %v1443 = vld [vmem:[%s874 + $0x1c] sm:$0xf]
      %v1444 = vld [vmem:[%s874 + $0x20] sm:$0xf]
      %v1445 = vld [vmem:[%s874 + $0x24] sm:$0xf]
      %v1446 = vld [vmem:[%s874 + $0x28] sm:$0xf]
      %v1447 = vld [vmem:[%s874 + $0x2c] sm:$0xf]
      %v1448 = vld [vmem:[%s874 + $0x30] sm:$0xf]
      %v1449 = vld [vmem:[%s874 + $0x34] sm:$0xf]
      %v1450 = vld [vmem:[%s874 + $0x38] sm:$0xf]
      %v1451 = vld [vmem:[%s874 + $0x3c] sm:$0xf]
      %v1452 = vld [vmem:[%s874 + $0x40] sm:$0xf]
      %v1453 = vld [vmem:[%s874 + $0x44] sm:$0xf]
      %v1454 = vld [vmem:[%s874 + $0x48] sm:$0xf]
      %v1455 = vld [vmem:[%s874 + $0x4c] sm:$0xf]
      %v1456 = vld [vmem:[%s874 + $0x50] sm:$0xf]
      %v1457 = vld [vmem:[%s874 + $0x54] sm:$0xf]
      %v1458 = vld [vmem:[%s874 + $0x58] sm:$0xf]
      %v1459 = vld [vmem:[%s874 + $0x5c] sm:$0xf]
      %v1460 = vld [vmem:[%s874 + $0x60] sm:$0xf]
      %v1461 = vld [vmem:[%s874 + $0x64] sm:$0xf]
      %v1462 = vld [vmem:[%s874 + $0x68] sm:$0xf]
      %v1463 = vld [vmem:[%s874 + $0x6c] sm:$0xf]
      %v1464 = vld [vmem:[%s874 + $0x70] sm:$0xf]
      %v1465 = vld [vmem:[%s874 + $0x74] sm:$0xf]
      %v1466 = vld [vmem:[%s874 + $0x78] sm:$0xf]
      %v1467 = vld [vmem:[%s874 + $0x7c] sm:$0xf]
      %v1484 = vunpack.c.l.b16 %v1436
      %v1485 = vunpack.c.l.b16 %v1437
      %v1486 = vunpack.c.l.b16 %v1438
      %v1487 = vunpack.c.l.b16 %v1439
      %v1488 = vunpack.c.l.b16 %v1440
      %v1489 = vunpack.c.l.b16 %v1441
      %v1490 = vunpack.c.l.b16 %v1442
      %v1491 = vunpack.c.l.b16 %v1443
      %v1492 = vunpack.c.l.b16 %v1444
      %v1493 = vunpack.c.l.b16 %v1445
      %v1494 = vunpack.c.l.b16 %v1446
      %v1495 = vunpack.c.l.b16 %v1447
      %v1496 = vunpack.c.l.b16 %v1448
      %v1497 = vunpack.c.l.b16 %v1449
      %v1498 = vunpack.c.l.b16 %v1450
      %v1499 = vunpack.c.l.b16 %v1451
      %v1500 = vpack.c.b16 %v1485, %v1484
      %v1501 = vpack.c.b16 %v1487, %v1486
      %v1502 = vpack.c.b16 %v1489, %v1488
      %v1503 = vpack.c.b16 %v1491, %v1490
      %v1504 = vpack.c.b16 %v1493, %v1492
      %v1505 = vpack.c.b16 %v1495, %v1494
      %v1506 = vpack.c.b16 %v1497, %v1496
      %v1507 = vpack.c.b16 %v1499, %v1498
      %1516 = vmatprep.subr.bf16.mxu0 0
      %1517 = vmatpush1.bf16.msra.mxu0 %v1500
      %1518 = vmatprep.subr.bf16.mxu0 0
      %1519 = vmatpush1.bf16.msra.mxu0 %v1501
      %1520 = vmatprep.subr.bf16.mxu0 0
      %1521 = vmatpush1.bf16.msra.mxu0 %v1502
      %1522 = vmatprep.subr.bf16.mxu0 0
      %1523 = vmatpush1.bf16.msra.mxu0 %v1503
      %1524 = vmatprep.subr.bf16.mxu0 0
      %1525 = vmatpush1.bf16.msra.mxu0 %v1504
      %1526 = vmatprep.subr.bf16.mxu0 0
      %1527 = vmatpush1.bf16.msra.mxu0 %v1505
      %1528 = vmatprep.subr.bf16.mxu0 0
      %1529 = vmatpush1.bf16.msra.mxu0 %v1506
      %1530 = vmatprep.subr.bf16.mxu0 0
      %1531 = vmatpush1.bf16.msra.mxu0 %v1507
      %1532 = vmatprep.subr.bf16.mxu0 0
      %1533 = vmatpush1.bf16.msra.mxu0 0
      %1534 = vmatprep.subr.bf16.mxu0 0
      %1535 = vmatpush1.bf16.msra.mxu0 0
      %1536 = vmatprep.subr.bf16.mxu0 0
      %1537 = vmatpush1.bf16.msra.mxu0 0
      %1538 = vmatprep.subr.bf16.mxu0 0
      %1539 = vmatpush1.bf16.msra.mxu0 0
      %1540 = vmatprep.subr.bf16.mxu0 0
      %1541 = vmatpush1.bf16.msra.mxu0 0
      %1542 = vmatprep.subr.bf16.mxu0 0
      %1543 = vmatpush1.bf16.msra.mxu0 0
      %1544 = vmatprep.subr.bf16.mxu0 0
      %1545 = vmatpush1.bf16.msra.mxu0 0
      %1546 = vmatprep.subr.bf16.mxu0 0
      %1547 = vmatpush1.bf16.msra.mxu0 0
      %1548 = vmatprep.mubr.bf16.mxu0 0
      %1549 = vmatmul.mubr.bf16.gmra.mrb[0].mxu0 %v1019
      %v1550 = vpop.f32.mrb[0].mxu0
      %v1551 = vadd.f32 0.0, %v1550
      %v1552 = vpop.f32.mrb[0].mxu0
      %v1553 = vpop.f32.mrb[0].mxu0
      %v1554 = vpop.f32.mrb[0].mxu0
      %1555 = vdwg.mxu0
      %v1572 = vunpack.c.l.b16 %v1452
      %v1573 = vunpack.c.l.b16 %v1453
      %v1574 = vunpack.c.l.b16 %v1454
      %v1575 = vunpack.c.l.b16 %v1455
      %v1576 = vunpack.c.l.b16 %v1456
      %v1577 = vunpack.c.l.b16 %v1457
      %v1578 = vunpack.c.l.b16 %v1458
      %v1579 = vunpack.c.l.b16 %v1459
      %v1580 = vunpack.c.l.b16 %v1460
      %v1581 = vunpack.c.l.b16 %v1461
      %v1582 = vunpack.c.l.b16 %v1462
      %v1583 = vunpack.c.l.b16 %v1463
      %v1584 = vunpack.c.l.b16 %v1464
      %v1585 = vunpack.c.l.b16 %v1465
      %v1586 = vunpack.c.l.b16 %v1466
      %v1587 = vunpack.c.l.b16 %v1467
      %v1588 = vpack.c.b16 %v1573, %v1572
      %v1589 = vpack.c.b16 %v1575, %v1574
      %v1590 = vpack.c.b16 %v1577, %v1576
      %v1591 = vpack.c.b16 %v1579, %v1578
      %v1592 = vpack.c.b16 %v1581, %v1580
      %v1593 = vpack.c.b16 %v1583, %v1582
      %v1594 = vpack.c.b16 %v1585, %v1584
      %v1595 = vpack.c.b16 %v1587, %v1586
      %1604 = vmatprep.subr.bf16.mxu0 0
      %1605 = vmatpush1.bf16.msra.mxu0 %v1588
      %1606 = vmatprep.subr.bf16.mxu0 0
      %1607 = vmatpush1.bf16.msra.mxu0 %v1589
      %1608 = vmatprep.subr.bf16.mxu0 0
      %1609 = vmatpush1.bf16.msra.mxu0 %v1590
      %1610 = vmatprep.subr.bf16.mxu0 0
      %1611 = vmatpush1.bf16.msra.mxu0 %v1591
      %1612 = vmatprep.subr.bf16.mxu0 0
      %1613 = vmatpush1.bf16.msra.mxu0 %v1592
      %1614 = vmatprep.subr.bf16.mxu0 0
      %1615 = vmatpush1.bf16.msra.mxu0 %v1593
      %1616 = vmatprep.subr.bf16.mxu0 0
      %1617 = vmatpush1.bf16.msra.mxu0 %v1594
      %1618 = vmatprep.subr.bf16.mxu0 0
      %1619 = vmatpush1.bf16.msra.mxu0 %v1595
      %1620 = vmatprep.subr.bf16.mxu0 0
      %1621 = vmatpush1.bf16.msra.mxu0 0
      %1622 = vmatprep.subr.bf16.mxu0 0
      %1623 = vmatpush1.bf16.msra.mxu0 0
      %1624 = vmatprep.subr.bf16.mxu0 0
      %1625 = vmatpush1.bf16.msra.mxu0 0
      %1626 = vmatprep.subr.bf16.mxu0 0
      %1627 = vmatpush1.bf16.msra.mxu0 0
      %1628 = vmatprep.subr.bf16.mxu0 0
      %1629 = vmatpush1.bf16.msra.mxu0 0
      %1630 = vmatprep.subr.bf16.mxu0 0
      %1631 = vmatpush1.bf16.msra.mxu0 0
      %1632 = vmatprep.subr.bf16.mxu0 0
      %1633 = vmatpush1.bf16.msra.mxu0 0
      %1634 = vmatprep.subr.bf16.mxu0 0
      %1635 = vmatpush1.bf16.msra.mxu0 0
      %1636 = vmatprep.mubr.bf16.mxu0 0
      %1637 = vmatmul.mubr.bf16.gmra.mrb[0].mxu0 %v1019
      %v1638 = vpop.f32.mrb[0].mxu0
      %v1639 = vadd.f32 0.0, %v1638
      %v1640 = vpop.f32.mrb[0].mxu0
      %v1641 = vpop.f32.mrb[0].mxu0
      %v1642 = vpop.f32.mrb[0].mxu0
      %1643 = vdwg.mxu0
      %v1644 = vpack.c.bf16 %v1135, %v1135
      %v1645 = vpack.c.bf16 %v1223, %v1223
      %v1646 = vpack.c.bf16 %v1343, %v1343
      %v1647 = vpack.c.bf16 %v1431, %v1431
      %vm1648 = vcmask 523264
      %v1650 = vsel %vm1648, %v1644, 0
      %v1653 = vsel %vm1648, %v1646, 0
      %1655 = vmatprep.subr.bf16.mxu0 0
      %1656 = vmatpush1.bf16.xpose.msra.mxu0 %v1653
      %1657 = vmatprep.subr.bf16.mxu0 0
      %1658 = vmatpush1.bf16.xpose.msra.mxu0 0
      %1659 = vmatprep.subr.bf16.mxu0 0
      %1660 = vmatpush1.bf16.xpose.msra.mxu0 0
      %1661 = vmatprep.subr.bf16.mxu0 0
      %1662 = vmatpush1.bf16.xpose.msra.mxu0 0
      %1663 = vmatprep.subr.bf16.mxu0 0
      %1664 = vmatpush1.bf16.xpose.msra.mxu0 0
      %1665 = vmatprep.subr.bf16.mxu0 0
      %1666 = vmatpush1.bf16.xpose.msra.mxu0 0
      %1667 = vmatprep.subr.bf16.mxu0 0
      %1668 = vmatpush1.bf16.xpose.msra.mxu0 0
      %1669 = vmatprep.subr.bf16.mxu0 0
      %1670 = vmatpush1.bf16.xpose.msra.mxu0 0
      %1671 = vmatprep.subr.bf16.mxu0 0
      %1672 = vmatpush1.bf16.xpose.msra.mxu0 0
      %1673 = vmatprep.subr.bf16.mxu0 0
      %1674 = vmatpush1.bf16.xpose.msra.mxu0 0
      %1675 = vmatprep.subr.bf16.mxu0 0
      %1676 = vmatpush1.bf16.xpose.msra.mxu0 0
      %1677 = vmatprep.subr.bf16.mxu0 0
      %1678 = vmatpush1.bf16.xpose.msra.mxu0 0
      %1679 = vmatprep.subr.bf16.mxu0 0
      %1680 = vmatpush1.bf16.xpose.msra.mxu0 0
      %1681 = vmatprep.subr.bf16.mxu0 0
      %1682 = vmatpush1.bf16.xpose.msra.mxu0 0
      %1683 = vmatprep.subr.bf16.mxu0 0
      %1684 = vmatpush1.bf16.xpose.msra.mxu0 0
      %1685 = vmatprep.subr.bf16.mxu0 0
      %1686 = vmatpush1.bf16.xpose.msra.mxu0 0
      %1687 = vmatprep.mubr.bf16.mxu0 0
      %1688 = vmatmul.mubr.bf16.gmra.mrb[0].mxu0 %v1650
      %v1689 = vpop.f32.mrb[0].mxu0
      %v1690 = vadd.f32 0.0, %v1689
      %v1691 = vpop.f32.mrb[0].mxu0
      %v1692 = vpop.f32.mrb[0].mxu0
      %v1693 = vpop.f32.mrb[0].mxu0
      %1694 = vdwg.mxu0
      %v1696 = vsel %vm1648, %v1645, 0
      %v1699 = vsel %vm1648, %v1647, 0
      %1701 = vmatprep.subr.bf16.mxu0 0
      %1702 = vmatpush1.bf16.xpose.msra.mxu0 %v1699
      %1703 = vmatprep.subr.bf16.mxu0 0
      %1704 = vmatpush1.bf16.xpose.msra.mxu0 0
      %1705 = vmatprep.subr.bf16.mxu0 0
      %1706 = vmatpush1.bf16.xpose.msra.mxu0 0
      %1707 = vmatprep.subr.bf16.mxu0 0
      %1708 = vmatpush1.bf16.xpose.msra.mxu0 0
      %1709 = vmatprep.subr.bf16.mxu0 0
      %1710 = vmatpush1.bf16.xpose.msra.mxu0 0
      %1711 = vmatprep.subr.bf16.mxu0 0
      %1712 = vmatpush1.bf16.xpose.msra.mxu0 0
      %1713 = vmatprep.subr.bf16.mxu0 0
      %1714 = vmatpush1.bf16.xpose.msra.mxu0 0
      %1715 = vmatprep.subr.bf16.mxu0 0
      %1716 = vmatpush1.bf16.xpose.msra.mxu0 0
      %1717 = vmatprep.subr.bf16.mxu0 0
      %1718 = vmatpush1.bf16.xpose.msra.mxu0 0
      %1719 = vmatprep.subr.bf16.mxu0 0
      %1720 = vmatpush1.bf16.xpose.msra.mxu0 0
      %1721 = vmatprep.subr.bf16.mxu0 0
      %1722 = vmatpush1.bf16.xpose.msra.mxu0 0
      %1723 = vmatprep.subr.bf16.mxu0 0
      %1724 = vmatpush1.bf16.xpose.msra.mxu0 0
      %1725 = vmatprep.subr.bf16.mxu0 0
      %1726 = vmatpush1.bf16.xpose.msra.mxu0 0
      %1727 = vmatprep.subr.bf16.mxu0 0
      %1728 = vmatpush1.bf16.xpose.msra.mxu0 0
      %1729 = vmatprep.subr.bf16.mxu0 0
      %1730 = vmatpush1.bf16.xpose.msra.mxu0 0
      %1731 = vmatprep.subr.bf16.mxu0 0
      %1732 = vmatpush1.bf16.xpose.msra.mxu0 0
      %1733 = vmatprep.mubr.bf16.mxu0 0
      %1734 = vmatmul.mubr.bf16.gmra.mrb[0].mxu0 %v1696
      %v1735 = vpop.f32.mrb[0].mxu0
      %v1736 = vadd.f32 0.0, %v1735
      %v1737 = vpop.f32.mrb[0].mxu0
      %v1738 = vpop.f32.mrb[0].mxu0
      %v1739 = vpop.f32.mrb[0].mxu0
      %1740 = vdwg.mxu0
      %vm1741 = vcmask 64512
      %v1742 = vsel %vm1741, %v1690, -inf
      %1743 = vmax.xlane.f32.xlu0 %v1742
      %v1744 = vpop.xlane.xlu0 %1743
      %v1745 = vsel %vm1741, %v1736, -inf
      %1746 = vmax.xlane.f32.xlu0 %v1745
      %v1747 = vpop.xlane.xlu0 %1746
      %v1748 = vsub.f32 %v1690, %v1744
      %v1749 = vsub.f32 %v1736, %v1747
      %v1750 = vmul.f32 %v1748, 1.442695
      %v1751 = vpow.pop %v1750
      %v1752 = vmul.f32 %v1749, 1.442695
      %v1753 = vpow.pop %v1752
      %v1754 = vsel %vm1741, %v1751, 0.0
      %1755 = vadd.xlane.f32.xlu0 %v1754
      %v1756 = vpop.xlane.xlu0 %1755
      %v1757 = vsel %vm1741, %v1753, 0.0
      %1758 = vadd.xlane.f32.xlu0 %v1757
      %v1759 = vpop.xlane.xlu0 %1758
      %v1760 = vrcp.pop %v1756
      %v1761 = vrcp.pop %v1759
      %v1762 = vmul.f32 %v1751, %v1760
      %v1763 = vmul.f32 %v1753, %v1761
      %v1764 = vpack.c.bf16 %v1762, %v1762
      %v1765 = vpack.c.bf16 %v1763, %v1763
      %v1766 = vpack.c.bf16 %v1551, %v1551
      %v1767 = vpack.c.bf16 %v1639, %v1639
      %v1769 = vsel %vm1741, %v1764, 0
      %vm1771 = vcmask 1043456
      %v1773 = vsel %vm1771, %v1766, 0
      %1775 = vmatprep.subr.bf16.mxu0 0
      %1776 = vmatpush1.bf16.msra.mxu0 %v1773
      %1777 = vmatprep.subr.bf16.mxu0 0
      %1778 = vmatpush1.bf16.msra.mxu0 0
      %1779 = vmatprep.subr.bf16.mxu0 0
      %1780 = vmatpush1.bf16.msra.mxu0 0
      %1781 = vmatprep.subr.bf16.mxu0 0
      %1782 = vmatpush1.bf16.msra.mxu0 0
      %1783 = vmatprep.subr.bf16.mxu0 0
      %1784 = vmatpush1.bf16.msra.mxu0 0
      %1785 = vmatprep.subr.bf16.mxu0 0
      %1786 = vmatpush1.bf16.msra.mxu0 0
      %1787 = vmatprep.subr.bf16.mxu0 0
      %1788 = vmatpush1.bf16.msra.mxu0 0
      %1789 = vmatprep.subr.bf16.mxu0 0
      %1790 = vmatpush1.bf16.msra.mxu0 0
      %1791 = vmatprep.subr.bf16.mxu0 0
      %1792 = vmatpush1.bf16.msra.mxu0 0
      %1793 = vmatprep.subr.bf16.mxu0 0
      %1794 = vmatpush1.bf16.msra.mxu0 0
      %1795 = vmatprep.subr.bf16.mxu0 0
      %1796 = vmatpush1.bf16.msra.mxu0 0
      %1797 = vmatprep.subr.bf16.mxu0 0
      %1798 = vmatpush1.bf16.msra.mxu0 0
      %1799 = vmatprep.subr.bf16.mxu0 0
      %1800 = vmatpush1.bf16.msra.mxu0 0
      %1801 = vmatprep.subr.bf16.mxu0 0
      %1802 = vmatpush1.bf16.msra.mxu0 0
      %1803 = vmatprep.subr.bf16.mxu0 0
      %1804 = vmatpush1.bf16.msra.mxu0 0
      %1805 = vmatprep.subr.bf16.mxu0 0
      %1806 = vmatpush1.bf16.msra.mxu0 0
      %1807 = vmatprep.mubr.bf16.mxu0 0
      %1808 = vmatmul.mubr.bf16.gmra.mrb[0].mxu0 %v1769
      %v1809 = vpop.f32.mrb[0].mxu0
      %v1810 = vadd.f32 0.0, %v1809
      %v1811 = vpop.f32.mrb[0].mxu0
      %v1812 = vpop.f32.mrb[0].mxu0
      %v1813 = vpop.f32.mrb[0].mxu0
      %1814 = vdwg.mxu0
      %v1816 = vsel %vm1741, %v1765, 0
      %v1819 = vsel %vm1771, %v1767, 0
      %1821 = vmatprep.subr.bf16.mxu0 0
      %1822 = vmatpush1.bf16.msra.mxu0 %v1819
      %1823 = vmatprep.subr.bf16.mxu0 0
      %1824 = vmatpush1.bf16.msra.mxu0 0
      %1825 = vmatprep.subr.bf16.mxu0 0
      %1826 = vmatpush1.bf16.msra.mxu0 0
      %1827 = vmatprep.subr.bf16.mxu0 0
      %1828 = vmatpush1.bf16.msra.mxu0 0
      %1829 = vmatprep.subr.bf16.mxu0 0
      %1830 = vmatpush1.bf16.msra.mxu0 0
      %1831 = vmatprep.subr.bf16.mxu0 0
      %1832 = vmatpush1.bf16.msra.mxu0 0
      %1833 = vmatprep.subr.bf16.mxu0 0
      %1834 = vmatpush1.bf16.msra.mxu0 0
      %1835 = vmatprep.subr.bf16.mxu0 0
      %1836 = vmatpush1.bf16.msra.mxu0 0
      %1837 = vmatprep.subr.bf16.mxu0 0
      %1838 = vmatpush1.bf16.msra.mxu0 0
      %1839 = vmatprep.subr.bf16.mxu0 0
      %1840 = vmatpush1.bf16.msra.mxu0 0
      %1841 = vmatprep.subr.bf16.mxu0 0
      %1842 = vmatpush1.bf16.msra.mxu0 0
      %1843 = vmatprep.subr.bf16.mxu0 0
      %1844 = vmatpush1.bf16.msra.mxu0 0
      %1845 = vmatprep.subr.bf16.mxu0 0
      %1846 = vmatpush1.bf16.msra.mxu0 0
      %1847 = vmatprep.subr.bf16.mxu0 0
      %1848 = vmatpush1.bf16.msra.mxu0 0
      %1849 = vmatprep.subr.bf16.mxu0 0
      %1850 = vmatpush1.bf16.msra.mxu0 0
      %1851 = vmatprep.subr.bf16.mxu0 0
      %1852 = vmatpush1.bf16.msra.mxu0 0
      %1853 = vmatprep.mubr.bf16.mxu0 0
      %1854 = vmatmul.mubr.bf16.gmra.mrb[0].mxu0 %v1816
      %v1855 = vpop.f32.mrb[0].mxu0
      %v1856 = vadd.f32 0.0, %v1855
      %v1857 = vpop.f32.mrb[0].mxu0
      %v1858 = vpop.f32.mrb[0].mxu0
      %v1859 = vpop.f32.mrb[0].mxu0
      %1860 = vdwg.mxu0
      %v1861 = vpack.c.bf16 %v1810, %v1810
      %v1862 = vpack.c.bf16 %v1856, %v1856
      %v1863 = vld [vmem:[%s879] sm:$0xf]
      %v1864 = vld [vmem:[%s879 + $0x4] sm:$0xf]
      %v1865 = vld [vmem:[%s879 + $0x8] sm:$0xf]
      %v1866 = vld [vmem:[%s879 + $0xc] sm:$0xf]
      %v1867 = vld [vmem:[%s879 + $0x10] sm:$0xf]
      %v1868 = vld [vmem:[%s879 + $0x14] sm:$0xf]
      %v1869 = vld [vmem:[%s879 + $0x18] sm:$0xf]
      %v1870 = vld [vmem:[%s879 + $0x1c] sm:$0xf]
      %v1871 = vld [vmem:[%s879 + $0x20] sm:$0xf]
      %v1872 = vld [vmem:[%s879 + $0x24] sm:$0xf]
      %v1873 = vld [vmem:[%s879 + $0x28] sm:$0xf]
      %v1874 = vld [vmem:[%s879 + $0x2c] sm:$0xf]
      %v1875 = vld [vmem:[%s879 + $0x30] sm:$0xf]
      %v1876 = vld [vmem:[%s879 + $0x34] sm:$0xf]
      %v1877 = vld [vmem:[%s879 + $0x38] sm:$0xf]
      %v1878 = vld [vmem:[%s879 + $0x3c] sm:$0xf]
      %v1887 = vunpack.c.l.b16 %v1863
      %v1888 = vunpack.c.l.b16 %v1864
      %v1889 = vunpack.c.l.b16 %v1865
      %v1890 = vunpack.c.l.b16 %v1866
      %v1891 = vunpack.c.l.b16 %v1867
      %v1892 = vunpack.c.l.b16 %v1868
      %v1893 = vunpack.c.l.b16 %v1869
      %v1894 = vunpack.c.l.b16 %v1870
      %v1895 = vpack.c.b16 %v1888, %v1887
      %v1896 = vpack.c.b16 %v1890, %v1889
      %v1897 = vpack.c.b16 %v1892, %v1891
      %v1898 = vpack.c.b16 %v1894, %v1893
      %v1904 = vsel %vm1648, %v1861, 0
      %1906 = vmatprep.subr.bf16.mxu0 0
      %1907 = vmatpush1.bf16.msra.mxu0 %v1895
      %1908 = vmatprep.subr.bf16.mxu0 0
      %1909 = vmatpush1.bf16.msra.mxu0 %v1896
      %1910 = vmatprep.subr.bf16.mxu0 0
      %1911 = vmatpush1.bf16.msra.mxu0 %v1897
      %1912 = vmatprep.subr.bf16.mxu0 0
      %1913 = vmatpush1.bf16.msra.mxu0 %v1898
      %1914 = vmatprep.subr.bf16.mxu0 0
      %1915 = vmatpush1.bf16.msra.mxu0 0
      %1916 = vmatprep.subr.bf16.mxu0 0
      %1917 = vmatpush1.bf16.msra.mxu0 0
      %1918 = vmatprep.subr.bf16.mxu0 0
      %1919 = vmatpush1.bf16.msra.mxu0 0
      %1920 = vmatprep.subr.bf16.mxu0 0
      %1921 = vmatpush1.bf16.msra.mxu0 0
      %1922 = vmatprep.subr.bf16.mxu0 0
      %1923 = vmatpush1.bf16.msra.mxu0 0
      %1924 = vmatprep.subr.bf16.mxu0 0
      %1925 = vmatpush1.bf16.msra.mxu0 0
      %1926 = vmatprep.subr.bf16.mxu0 0
      %1927 = vmatpush1.bf16.msra.mxu0 0
      %1928 = vmatprep.subr.bf16.mxu0 0
      %1929 = vmatpush1.bf16.msra.mxu0 0
      %1930 = vmatprep.subr.bf16.mxu0 0
      %1931 = vmatpush1.bf16.msra.mxu0 0
      %1932 = vmatprep.subr.bf16.mxu0 0
      %1933 = vmatpush1.bf16.msra.mxu0 0
      %1934 = vmatprep.subr.bf16.mxu0 0
      %1935 = vmatpush1.bf16.msra.mxu0 0
      %1936 = vmatprep.subr.bf16.mxu0 0
      %1937 = vmatpush1.bf16.msra.mxu0 0
      %1938 = vmatprep.mubr.bf16.mxu0 0
      %1939 = vmatmul.mubr.bf16.gmra.mrb[0].mxu0 %v1904
      %v1940 = vpop.f32.mrb[0].mxu0
      %v1941 = vadd.f32 0.0, %v1940
      %v1942 = vpop.f32.mrb[0].mxu0
      %v1943 = vpop.f32.mrb[0].mxu0
      %v1944 = vpop.f32.mrb[0].mxu0
      %1945 = vdwg.mxu0
      %v1954 = vunpack.c.l.b16 %v1871
      %v1955 = vunpack.c.l.b16 %v1872
      %v1956 = vunpack.c.l.b16 %v1873
      %v1957 = vunpack.c.l.b16 %v1874
      %v1958 = vunpack.c.l.b16 %v1875
      %v1959 = vunpack.c.l.b16 %v1876
      %v1960 = vunpack.c.l.b16 %v1877
      %v1961 = vunpack.c.l.b16 %v1878
      %v1962 = vpack.c.b16 %v1955, %v1954
      %v1963 = vpack.c.b16 %v1957, %v1956
      %v1964 = vpack.c.b16 %v1959, %v1958
      %v1965 = vpack.c.b16 %v1961, %v1960
      %v1971 = vsel %vm1648, %v1862, 0
      %1973 = vmatprep.subr.bf16.mxu0 0
      %1974 = vmatpush1.bf16.msra.mxu0 %v1962
      %1975 = vmatprep.subr.bf16.mxu0 0
      %1976 = vmatpush1.bf16.msra.mxu0 %v1963
      %1977 = vmatprep.subr.bf16.mxu0 0
      %1978 = vmatpush1.bf16.msra.mxu0 %v1964
      %1979 = vmatprep.subr.bf16.mxu0 0
      %1980 = vmatpush1.bf16.msra.mxu0 %v1965
      %1981 = vmatprep.subr.bf16.mxu0 0
      %1982 = vmatpush1.bf16.msra.mxu0 0
      %1983 = vmatprep.subr.bf16.mxu0 0
      %1984 = vmatpush1.bf16.msra.mxu0 0
      %1985 = vmatprep.subr.bf16.mxu0 0
      %1986 = vmatpush1.bf16.msra.mxu0 0
      %1987 = vmatprep.subr.bf16.mxu0 0
      %1988 = vmatpush1.bf16.msra.mxu0 0
      %1989 = vmatprep.subr.bf16.mxu0 0
      %1990 = vmatpush1.bf16.msra.mxu0 0
      %1991 = vmatprep.subr.bf16.mxu0 0
      %1992 = vmatpush1.bf16.msra.mxu0 0
      %1993 = vmatprep.subr.bf16.mxu0 0
      %1994 = vmatpush1.bf16.msra.mxu0 0
      %1995 = vmatprep.subr.bf16.mxu0 0
      %1996 = vmatpush1.bf16.msra.mxu0 0
      %1997 = vmatprep.subr.bf16.mxu0 0
      %1998 = vmatpush1.bf16.msra.mxu0 0
      %1999 = vmatprep.subr.bf16.mxu0 0
      %2000 = vmatpush1.bf16.msra.mxu0 0
      %2001 = vmatprep.subr.bf16.mxu0 0
      %2002 = vmatpush1.bf16.msra.mxu0 0
      %2003 = vmatprep.subr.bf16.mxu0 0
      %2004 = vmatpush1.bf16.msra.mxu0 0
      %2005 = vmatprep.mubr.bf16.mxu0 0
      %2006 = vmatmul.mubr.bf16.gmra.mrb[0].mxu0 %v1971
      %v2007 = vpop.f32.mrb[0].mxu0
      %v2008 = vadd.f32 0.0, %v2007
      %v2009 = vpop.f32.mrb[0].mxu0
      %v2010 = vpop.f32.mrb[0].mxu0
      %v2011 = vpop.f32.mrb[0].mxu0
      %2012 = vdwg.mxu0
      %v2013 = vadd.f32 %v1941, %v2008
      %v2014 = vadd.f32 %v989, %v2013
      %v2015 = vld [vmem:[%s882] sm:$0x1]
      %v2017 = vlaneseq
      %v2018 = vshrl.u32 %v2017, 7
      %v2019 = vsub.s32 0, %v2018
      %v2020 = vrot.slane %v2015, %v2019
      %v2022 = vadd.f32 %v2014, %v2020
      %v2023 = vld [vmem:[%s885] sm:$0x1]
      %v2024 = vld [vmem:[%s888] sm:$0x1]
      %2025 = vadd.xlane.f32.xlu0 %v2022
      %v2026 = vpop.xlane.xlu0 %2025
      %v2027 = vmul.f32 %v2026, 0.03125
      %v2028 = vmul.f32 %v2022, %v2022
      %2029 = vadd.xlane.f32.xlu0 %v2028
      %v2030 = vpop.xlane.xlu0 %2029
      %v2031 = vmul.f32 %v2030, 0.03125
      %v2032 = vmul.f32 %v2027, %v2027
      %v2033 = vsub.f32 %v2031, %v2032
      %v2034 = vsub.f32 %v2022, %v2027
      %v2035 = vadd.f32 %v2033, 1e-05
      %v2036 = vrsqrt.pop %v2035
      %v2037 = vmul.f32 %v2034, %v2036
      %v2039 = vlaneseq
      %v2040 = vshrl.u32 %v2039, 7
      %v2041 = vsub.s32 0, %v2040
      %v2042 = vrot.slane %v2023, %v2041
      %v2044 = vmul.f32 %v2037, %v2042
      %v2046 = vlaneseq
      %v2047 = vshrl.u32 %v2046, 7
      %v2048 = vsub.s32 0, %v2047
      %v2049 = vrot.slane %v2024, %v2048
      %v2051 = vadd.f32 %v2044, %v2049
      %v2052 = vpack.c.bf16 %v2051, %v2051
      %v2053 = vld [vmem:[%s893] sm:$0xf]
      %v2054 = vld [vmem:[%s893 + $0x4] sm:$0xf]
      %v2055 = vld [vmem:[%s893 + $0x8] sm:$0xf]
      %v2056 = vld [vmem:[%s893 + $0xc] sm:$0xf]
      %v2057 = vld [vmem:[%s893 + $0x10] sm:$0xf]
      %v2058 = vld [vmem:[%s893 + $0x14] sm:$0xf]
      %v2059 = vld [vmem:[%s893 + $0x18] sm:$0xf]
      %v2060 = vld [vmem:[%s893 + $0x1c] sm:$0xf]
      %v2061 = vld [vmem:[%s893 + $0x20] sm:$0xf]
      %v2062 = vld [vmem:[%s893 + $0x24] sm:$0xf]
      %v2063 = vld [vmem:[%s893 + $0x28] sm:$0xf]
      %v2064 = vld [vmem:[%s893 + $0x2c] sm:$0xf]
      %v2065 = vld [vmem:[%s893 + $0x30] sm:$0xf]
      %v2066 = vld [vmem:[%s893 + $0x34] sm:$0xf]
      %v2067 = vld [vmem:[%s893 + $0x38] sm:$0xf]
      %v2068 = vld [vmem:[%s893 + $0x3c] sm:$0xf]
      %v2069 = vld [vmem:[%s896] sm:$0x1]
      %v2071 = vlaneseq
      %v2072 = vshrl.u32 %v2071, 7
      %v2073 = vsub.s32 0, %v2072
      %v2074 = vrot.slane %v2069, %v2073
      %v2092 = vunpack.c.l.b16 %v2053
      %v2093 = vunpack.c.l.b16 %v2054
      %v2094 = vunpack.c.l.b16 %v2055
      %v2095 = vunpack.c.l.b16 %v2056
      %v2096 = vunpack.c.l.b16 %v2057
      %v2097 = vunpack.c.l.b16 %v2058
      %v2098 = vunpack.c.l.b16 %v2059
      %v2099 = vunpack.c.l.b16 %v2060
      %v2100 = vunpack.c.l.b16 %v2061
      %v2101 = vunpack.c.l.b16 %v2062
      %v2102 = vunpack.c.l.b16 %v2063
      %v2103 = vunpack.c.l.b16 %v2064
      %v2104 = vunpack.c.l.b16 %v2065
      %v2105 = vunpack.c.l.b16 %v2066
      %v2106 = vunpack.c.l.b16 %v2067
      %v2107 = vunpack.c.l.b16 %v2068
      %v2108 = vpack.c.b16 %v2093, %v2092
      %v2109 = vpack.c.b16 %v2095, %v2094
      %v2110 = vpack.c.b16 %v2097, %v2096
      %v2111 = vpack.c.b16 %v2099, %v2098
      %v2112 = vpack.c.b16 %v2101, %v2100
      %v2113 = vpack.c.b16 %v2103, %v2102
      %v2114 = vpack.c.b16 %v2105, %v2104
      %v2115 = vpack.c.b16 %v2107, %v2106
      %2124 = vmatprep.subr.bf16.mxu0 0
      %2125 = vmatpush1.bf16.msra.mxu0 %v2108
      %2126 = vmatprep.subr.bf16.mxu0 0
      %2127 = vmatpush1.bf16.msra.mxu0 %v2109
      %2128 = vmatprep.subr.bf16.mxu0 0
      %2129 = vmatpush1.bf16.msra.mxu0 %v2110
      %2130 = vmatprep.subr.bf16.mxu0 0
      %2131 = vmatpush1.bf16.msra.mxu0 %v2111
      %2132 = vmatprep.subr.bf16.mxu0 0
      %2133 = vmatpush1.bf16.msra.mxu0 %v2112
      %2134 = vmatprep.subr.bf16.mxu0 0
      %2135 = vmatpush1.bf16.msra.mxu0 %v2113
      %2136 = vmatprep.subr.bf16.mxu0 0
      %2137 = vmatpush1.bf16.msra.mxu0 %v2114
      %2138 = vmatprep.subr.bf16.mxu0 0
      %2139 = vmatpush1.bf16.msra.mxu0 %v2115
      %2140 = vmatprep.subr.bf16.mxu0 0
      %2141 = vmatpush1.bf16.msra.mxu0 0
      %2142 = vmatprep.subr.bf16.mxu0 0
      %2143 = vmatpush1.bf16.msra.mxu0 0
      %2144 = vmatprep.subr.bf16.mxu0 0
      %2145 = vmatpush1.bf16.msra.mxu0 0
      %2146 = vmatprep.subr.bf16.mxu0 0
      %2147 = vmatpush1.bf16.msra.mxu0 0
      %2148 = vmatprep.subr.bf16.mxu0 0
      %2149 = vmatpush1.bf16.msra.mxu0 0
      %2150 = vmatprep.subr.bf16.mxu0 0
      %2151 = vmatpush1.bf16.msra.mxu0 0
      %2152 = vmatprep.subr.bf16.mxu0 0
      %2153 = vmatpush1.bf16.msra.mxu0 0
      %2154 = vmatprep.subr.bf16.mxu0 0
      %2155 = vmatpush1.bf16.msra.mxu0 0
      %2156 = vmatprep.mubr.bf16.mxu0 0
      %2157 = vmatmul.mubr.bf16.gmra.mrb[0].mxu0 %v2052
      %v2158 = vpop.f32.mrb[0].mxu0
      %v2159 = vadd.f32 %v2074, %v2158
      %v2160 = vpop.f32.mrb[0].mxu0
      %v2161 = vpop.f32.mrb[0].mxu0
      %v2162 = vpop.f32.mrb[0].mxu0
      %2163 = vdwg.mxu0
      %v2164 = vmul.f32 %v2159, %v2159
      %v2165 = vmul.f32 %v2159, %v2164
      %v2166 = vmul.f32 %v2165, 0.044715
      %v2167 = vadd.f32 %v2159, %v2166
      %v2168 = vmul.f32 %v2167, 0.7978846
      %v2169 = vtanh.pop %v2168
      %v2170 = vadd.f32 %v2169, 1.0
      %v2171 = vmul.f32 %v2170, 0.5
      %v2172 = vmul.f32 %v2159, %v2171
      %v2173 = vpack.c.bf16 %v2172, %v2172
      %v2174 = vld [vmem:[%s901] sm:$0xf]
      %v2175 = vld [vmem:[%s901 + $0x4] sm:$0xf]
      %v2176 = vld [vmem:[%s901 + $0x8] sm:$0xf]
      %v2177 = vld [vmem:[%s901 + $0xc] sm:$0xf]
      %v2178 = vld [vmem:[%s901 + $0x10] sm:$0xf]
      %v2179 = vld [vmem:[%s901 + $0x14] sm:$0xf]
      %v2180 = vld [vmem:[%s901 + $0x18] sm:$0xf]
      %v2181 = vld [vmem:[%s901 + $0x1c] sm:$0xf]
      %v2182 = vld [vmem:[%s901 + $0x20] sm:$0xf]
      %v2183 = vld [vmem:[%s901 + $0x24] sm:$0xf]
      %v2184 = vld [vmem:[%s901 + $0x28] sm:$0xf]
      %v2185 = vld [vmem:[%s901 + $0x2c] sm:$0xf]
      %v2186 = vld [vmem:[%s901 + $0x30] sm:$0xf]
      %v2187 = vld [vmem:[%s901 + $0x34] sm:$0xf]
      %v2188 = vld [vmem:[%s901 + $0x38] sm:$0xf]
      %v2189 = vld [vmem:[%s901 + $0x3c] sm:$0xf]
      %v2206 = vunpack.c.l.b16 %v2174
      %v2207 = vunpack.c.l.b16 %v2175
      %v2208 = vunpack.c.l.b16 %v2176
      %v2209 = vunpack.c.l.b16 %v2177
      %v2210 = vunpack.c.l.b16 %v2178
      %v2211 = vunpack.c.l.b16 %v2179
      %v2212 = vunpack.c.l.b16 %v2180
      %v2213 = vunpack.c.l.b16 %v2181
      %v2214 = vunpack.c.l.b16 %v2182
      %v2215 = vunpack.c.l.b16 %v2183
      %v2216 = vunpack.c.l.b16 %v2184
      %v2217 = vunpack.c.l.b16 %v2185
      %v2218 = vunpack.c.l.b16 %v2186
      %v2219 = vunpack.c.l.b16 %v2187
      %v2220 = vunpack.c.l.b16 %v2188
      %v2221 = vunpack.c.l.b16 %v2189
      %v2222 = vpack.c.b16 %v2207, %v2206
      %v2223 = vpack.c.b16 %v2209, %v2208
      %v2224 = vpack.c.b16 %v2211, %v2210
      %v2225 = vpack.c.b16 %v2213, %v2212
      %v2226 = vpack.c.b16 %v2215, %v2214
      %v2227 = vpack.c.b16 %v2217, %v2216
      %v2228 = vpack.c.b16 %v2219, %v2218
      %v2229 = vpack.c.b16 %v2221, %v2220
      %2238 = vmatprep.subr.bf16.mxu0 0
      %2239 = vmatpush1.bf16.msra.mxu0 %v2222
      %2240 = vmatprep.subr.bf16.mxu0 0
      %2241 = vmatpush1.bf16.msra.mxu0 %v2223
      %2242 = vmatprep.subr.bf16.mxu0 0
      %2243 = vmatpush1.bf16.msra.mxu0 %v2224
      %2244 = vmatprep.subr.bf16.mxu0 0
      %2245 = vmatpush1.bf16.msra.mxu0 %v2225
      %2246 = vmatprep.subr.bf16.mxu0 0
      %2247 = vmatpush1.bf16.msra.mxu0 %v2226
      %2248 = vmatprep.subr.bf16.mxu0 0
      %2249 = vmatpush1.bf16.msra.mxu0 %v2227
      %2250 = vmatprep.subr.bf16.mxu0 0
      %2251 = vmatpush1.bf16.msra.mxu0 %v2228
      %2252 = vmatprep.subr.bf16.mxu0 0
      %2253 = vmatpush1.bf16.msra.mxu0 %v2229
      %2254 = vmatprep.subr.bf16.mxu0 0
      %2255 = vmatpush1.bf16.msra.mxu0 0
      %2256 = vmatprep.subr.bf16.mxu0 0
      %2257 = vmatpush1.bf16.msra.mxu0 0
      %2258 = vmatprep.subr.bf16.mxu0 0
      %2259 = vmatpush1.bf16.msra.mxu0 0
      %2260 = vmatprep.subr.bf16.mxu0 0
      %2261 = vmatpush1.bf16.msra.mxu0 0
      %2262 = vmatprep.subr.bf16.mxu0 0
      %2263 = vmatpush1.bf16.msra.mxu0 0
      %2264 = vmatprep.subr.bf16.mxu0 0
      %2265 = vmatpush1.bf16.msra.mxu0 0
      %2266 = vmatprep.subr.bf16.mxu0 0
      %2267 = vmatpush1.bf16.msra.mxu0 0
      %2268 = vmatprep.subr.bf16.mxu0 0
      %2269 = vmatpush1.bf16.msra.mxu0 0
      %2270 = vmatprep.mubr.bf16.mxu0 0
      %2271 = vmatmul.mubr.bf16.gmra.mrb[0].mxu0 %v2173
      %v2272 = vpop.f32.mrb[0].mxu0
      %v2273 = vadd.f32 0.0, %v2272
      %v2274 = vpop.f32.mrb[0].mxu0
      %v2275 = vpop.f32.mrb[0].mxu0
      %v2276 = vpop.f32.mrb[0].mxu0
      %2277 = vdwg.mxu0
      %v2278 = vadd.f32 %v2022, %v2273
      %v2279 = vld [vmem:[%s904] sm:$0x1]
      %v2281 = vlaneseq
      %v2282 = vshrl.u32 %v2281, 7
      %v2283 = vsub.s32 0, %v2282
      %v2284 = vrot.slane %v2279, %v2283
      %v2286 = vadd.f32 %v2278, %v2284
      %2287 = vst [vmem:[#allocation2] sm:$0xff] %v2286
      %p2288 = scmp.eq.s32.totalorder %s38, 1
      // Predicated region
      $region113: #{tokenpose_b_forward.5} parent=107 // pred_check
        %p2289 = pneg %p2288
      $region114: #{tokenpose_b_forward.5} parent=107 // pred_check_branch
        %2291 = sbr.rel (%p2289) target = $region116
      $region115: #{tokenpose_b_forward.5} parent=107 // pred_region
        %v2292 = vld [vmem:[%s18] sm:$0x1]
        %v2293 = vld [vmem:[%s19] sm:$0x1]
        %v2294 = vsel %vm1771, %v2286, 0.0
        %2295 = vadd.xlane.f32.xlu0 %v2294
        %v2296 = vpop.xlane.xlu0 %2295
        %v2297 = vmul.f32 %v2296, 0.03125
        %v2298 = vmul.f32 %v2286, %v2286
        %v2299 = vsel %vm1771, %v2298, 0.0
        %2300 = vadd.xlane.f32.xlu0 %v2299
        %v2301 = vpop.xlane.xlu0 %2300
        %v2302 = vmul.f32 %v2301, 0.03125
        %v2303 = vmul.f32 %v2297, %v2297
        %v2304 = vsub.f32 %v2302, %v2303
        %v2305 = vsub.f32 %v2286, %v2297
        %v2306 = vadd.f32 %v2304, 1e-05
        %v2307 = vrsqrt.pop %v2306
        %v2308 = vmul.f32 %v2305, %v2307
        %v2310 = vlaneseq
        %v2311 = vshrl.u32 %v2310, 7
        %v2312 = vsub.s32 0, %v2311
        %v2313 = vrot.slane %v2292, %v2312
        %v2315 = vmul.f32 %v2308, %v2313
        %v2317 = vlaneseq
        %v2318 = vshrl.u32 %v2317, 7
        %v2319 = vsub.s32 0, %v2318
        %v2320 = vrot.slane %v2293, %v2319
        %v2322 = vadd.f32 %v2315, %v2320
        %v2323 = vpack.c.bf16 %v2322, %v2322
        %v2324 = vld [vmem:[%s20] sm:$0xf]
        %v2325 = vld [vmem:[%s20 + $0x4] sm:$0xf]
        %v2326 = vld [vmem:[%s20 + $0x8] sm:$0xf]
        %v2327 = vld [vmem:[%s20 + $0xc] sm:$0xf]
        %v2328 = vld [vmem:[%s20 + $0x10] sm:$0xf]
        %v2329 = vld [vmem:[%s20 + $0x14] sm:$0xf]
        %v2330 = vld [vmem:[%s20 + $0x18] sm:$0xf]
        %v2331 = vld [vmem:[%s20 + $0x1c] sm:$0xf]
        %v2332 = vld [vmem:[%s20 + $0x20] sm:$0xf]
        %v2333 = vld [vmem:[%s20 + $0x24] sm:$0xf]
        %v2334 = vld [vmem:[%s20 + $0x28] sm:$0xf]
        %v2335 = vld [vmem:[%s20 + $0x2c] sm:$0xf]
        %v2336 = vld [vmem:[%s20 + $0x30] sm:$0xf]
        %v2337 = vld [vmem:[%s20 + $0x34] sm:$0xf]
        %v2338 = vld [vmem:[%s20 + $0x38] sm:$0xf]
        %v2339 = vld [vmem:[%s20 + $0x3c] sm:$0xf]
        %v2340 = vld [vmem:[%s21] sm:$0x1]
        %v2342 = vlaneseq
        %v2343 = vshrl.u32 %v2342, 7
        %v2344 = vsub.s32 0, %v2343
        %v2345 = vrot.slane %v2340, %v2344
        %v2363 = vunpack.c.l.b16 %v2324
        %v2364 = vunpack.c.l.b16 %v2325
        %v2365 = vunpack.c.l.b16 %v2326
        %v2366 = vunpack.c.l.b16 %v2327
        %v2367 = vunpack.c.l.b16 %v2328
        %v2368 = vunpack.c.l.b16 %v2329
        %v2369 = vunpack.c.l.b16 %v2330
        %v2370 = vunpack.c.l.b16 %v2331
        %v2371 = vunpack.c.l.b16 %v2332
        %v2372 = vunpack.c.l.b16 %v2333
        %v2373 = vunpack.c.l.b16 %v2334
        %v2374 = vunpack.c.l.b16 %v2335
        %v2375 = vunpack.c.l.b16 %v2336
        %v2376 = vunpack.c.l.b16 %v2337
        %v2377 = vunpack.c.l.b16 %v2338
        %v2378 = vunpack.c.l.b16 %v2339
        %v2379 = vpack.c.b16 %v2364, %v2363
        %v2380 = vpack.c.b16 %v2366, %v2365
        %v2381 = vpack.c.b16 %v2368, %v2367
        %v2382 = vpack.c.b16 %v2370, %v2369
        %v2383 = vpack.c.b16 %v2372, %v2371
        %v2384 = vpack.c.b16 %v2374, %v2373
        %v2385 = vpack.c.b16 %v2376, %v2375
        %v2386 = vpack.c.b16 %v2378, %v2377
        %2395 = vmatprep.subr.bf16.mxu0 0
        %2396 = vmatpush1.bf16.msra.mxu0 %v2379
        %2397 = vmatprep.subr.bf16.mxu0 0
        %2398 = vmatpush1.bf16.msra.mxu0 %v2380
        %2399 = vmatprep.subr.bf16.mxu0 0
        %2400 = vmatpush1.bf16.msra.mxu0 %v2381
        %2401 = vmatprep.subr.bf16.mxu0 0
        %2402 = vmatpush1.bf16.msra.mxu0 %v2382
        %2403 = vmatprep.subr.bf16.mxu0 0
        %2404 = vmatpush1.bf16.msra.mxu0 %v2383
        %2405 = vmatprep.subr.bf16.mxu0 0
        %2406 = vmatpush1.bf16.msra.mxu0 %v2384
        %2407 = vmatprep.subr.bf16.mxu0 0
        %2408 = vmatpush1.bf16.msra.mxu0 %v2385
        %2409 = vmatprep.subr.bf16.mxu0 0
        %2410 = vmatpush1.bf16.msra.mxu0 %v2386
        %2411 = vmatprep.subr.bf16.mxu0 0
        %2412 = vmatpush1.bf16.msra.mxu0 0
        %2413 = vmatprep.subr.bf16.mxu0 0
        %2414 = vmatpush1.bf16.msra.mxu0 0
        %2415 = vmatprep.subr.bf16.mxu0 0
        %2416 = vmatpush1.bf16.msra.mxu0 0
        %2417 = vmatprep.subr.bf16.mxu0 0
        %2418 = vmatpush1.bf16.msra.mxu0 0
        %2419 = vmatprep.subr.bf16.mxu0 0
        %2420 = vmatpush1.bf16.msra.mxu0 0
        %2421 = vmatprep.subr.bf16.mxu0 0
        %2422 = vmatpush1.bf16.msra.mxu0 0
        %2423 = vmatprep.subr.bf16.mxu0 0
        %2424 = vmatpush1.bf16.msra.mxu0 0
        %2425 = vmatprep.subr.bf16.mxu0 0
        %2426 = vmatpush1.bf16.msra.mxu0 0
        %2427 = vmatprep.mubr.bf16.mxu0 0
        %2428 = vmatmul.mubr.bf16.gmra.mrb[0].mxu0 %v2323
        %v2429 = vpop.f32.mrb[0].mxu0
        %v2430 = vadd.f32 %v2345, %v2429
        %v2431 = vpop.f32.mrb[0].mxu0
        %v2432 = vpop.f32.mrb[0].mxu0
        %v2433 = vpop.f32.mrb[0].mxu0
        %2434 = vdwg.mxu0
        %vm2435 = vcmask 519168
        %2436 = vst.msk [vmem:[%s908] sm:$0xf] %vm2435, %v2430
      $region116: #{tokenpose_b_forward.5} parent=107 // pred_fallthru
        _
      %p2437 = scmp.lt.s32.totalorder %s37, 1
      %s2438 = scalar_select %p2437, %s37, 1
      %s2439 = smul.addr %s2438, 4
      %s2440 = scalar_lea.vmem %s22, %s2439
      // Predicated region
      $region117: #{tokenpose_b_forward.5} parent=107 // pred_check
        %p2441 = pneg %p595
      $region118: #{tokenpose_b_forward.5} parent=107 // pred_check_branch
        %2443 = sbr.rel (%p2441) target = $region120
      $region119: #{tokenpose_b_forward.5} parent=107 // pred_region
        _
      $region120: #{tokenpose_b_forward.5} parent=107 // pred_fallthru
        _
    $region108: #{tokenpose_b_forward.5} parent=5 // pred_fallthru
      _
    %p2444 = scmp.le.s32.totalorder 2, %s28
    // Predicated region
    $region121: #{tokenpose_b_forward.5} parent=5 // pred_check
      %p2445 = pneg %p2444
    $region122: #{tokenpose_b_forward.5} parent=5 // pred_check_branch
      %2447 = sbr.rel (%p2445) target = $region124
    $region123: #{tokenpose_b_forward.5} parent=5 // pred_region
      %s2448 = ssub.s32 %s28, 2
      // Predicated region
      $region125: #{tokenpose_b_forward.5} parent=123 // pred_check
        %p2449 = pneg %p601
      $region126: #{tokenpose_b_forward.5} parent=123 // pred_check_branch
        %2451 = sbr.rel (%p2449) target = $region128
      $region127: #{tokenpose_b_forward.5} parent=123 // pred_region
        %p2452 = scmp.lt.s32.totalorder %s39, 1
        %s2453 = scalar_select %p2452, %s39, 1
        %s2454 = smul.addr %s2453, 4
        %s2455 = scalar_lea.vmem %s22, %s2454
      $region128: #{tokenpose_b_forward.5} parent=123 // pred_fallthru
        _
    $region124: #{tokenpose_b_forward.5} parent=5 // pred_fallthru
      _
  $region6: #{tokenpose_b_forward.5} parent=0 // loop_footer
    %s32 = sadd.s32 1, %s28
  $region7: #{tokenpose_b_forward.5} parent=0 // loop_footer_branch
    %27 = sbr.rel target = $region3
  $region8: #{tokenpose_b_forward.5} parent=0 // loop_exit
    _

</llo_original>
